<compile_context>
chip_gen: v7x
topology: tpu7x:2x2x1
jax: 0.10.0
libtpu: 0.0.40
codegen_flags: <defaults>
</compile_context>

<pallas_src>
import jax
import jax.numpy as jnp
from jax.experimental import pallas as pl
from jax.experimental.pallas import tpu as pltpu

NUM_CLASSES = 10
HIDDEN0 = 1000
HIDDEN0_PAD = 1024   # pad 1000 -> multiple of 128 lanes
HIDDEN1 = 50
OUT_PAD = 128        # lane-dense output block; valid classes are [:, :10]


def firstnet_kernel(x_ref, w0_ref, b0_ref, w1_ref, b1_ref, w2_ref, b2_ref,
                    mask_ref, out_ref):
    """Fused MLP forward: 3 x (bf16 matmul + f32 bias/relu), masked log_softmax.

    Weights arrive as bf16 and are fed to the MXU directly (no f32 upcast);
    the small (TB, .) operands are cast to bf16 before each dot.  All
    accumulation and elementwise epilogue math is f32.
    """
    x = x_ref[...].astype(jnp.bfloat16)                   # (TB, image_size)

    # fc0 + relu                                          # (TB, 1024)
    h = jnp.dot(x, w0_ref[...], preferred_element_type=jnp.float32)
    h = jnp.maximum(h + b0_ref[...], 0.0)                 # padded cols stay 0

    # fc1 + relu                                          # (TB, 50)
    h = jnp.dot(h.astype(jnp.bfloat16), w1_ref[...],
                preferred_element_type=jnp.float32)
    h = jnp.maximum(h + b1_ref[...], 0.0)

    # fc2 + relu                                          # (TB, 128)
    h = jnp.dot(h.astype(jnp.bfloat16), w2_ref[...],
                preferred_element_type=jnp.float32)
    h = jnp.maximum(h + b2_ref[...], 0.0)                 # padded cols == 0

    # Additive class mask (-1e30 on padded lanes), then log_softmax along the
    # class axis (PyTorch F.log_softmax, dim=1).
    logits = h + mask_ref[...]
    m = jnp.max(logits, axis=-1, keepdims=True)
    shifted = logits - m
    lse = jnp.log(jnp.sum(jnp.exp(shifted), axis=-1, keepdims=True))
    out_ref[...] = shifted - lse                          # (TB, 128)


def prepare_params(params):
    """One-time, out-of-hot-path parameter prep.

    PyTorch nn.Linear weights are (out, in); transpose to (in, out), zero-pad
    to lane-friendly shapes (1000->1024 hidden, 10->128 classes), cast the
    weights to bf16 (biases stay f32 for the exact f32 epilogue).  Also builds
    the additive -1e30 class mask for the padded softmax lanes.
    """
    w0, b0, w1, b1, w2, b2 = params
    image_size = w0.shape[1]

    w0t = jnp.zeros((image_size, HIDDEN0_PAD), jnp.float32).at[:, :HIDDEN0].set(w0.T)
    b0p = jnp.zeros((1, HIDDEN0_PAD), jnp.float32).at[:, :HIDDEN0].set(b0)
    w1t = jnp.zeros((HIDDEN0_PAD, HIDDEN1), jnp.float32).at[:HIDDEN0, :].set(w1.T)
    b1p = b1.reshape(1, HIDDEN1).astype(jnp.float32)
    w2t = jnp.zeros((HIDDEN1, OUT_PAD), jnp.float32).at[:, :NUM_CLASSES].set(w2.T)
    b2p = jnp.zeros((1, OUT_PAD), jnp.float32).at[:, :NUM_CLASSES].set(b2)
    mask = jnp.where(jnp.arange(OUT_PAD) < NUM_CLASSES, 0.0, -1e30
                     ).reshape(1, OUT_PAD).astype(jnp.float32)

    return (w0t.astype(jnp.bfloat16), b0p,
            w1t.astype(jnp.bfloat16), b1p,
            w2t.astype(jnp.bfloat16), b2p,
            mask)


@jax.jit
def firstnet_forward(x_nchw, prepared):
    """Flatten NCHW input and run the fused kernel on pre-prepped params."""
    w0t, b0p, w1t, b1p, w2t, b2p, mask = prepared
    B = x_nchw.shape[0]
    image_size = w0t.shape[0]
    x2d = x_nchw.reshape(B, image_size).astype(jnp.float32)

    # Batch tile: whole batch at small B; cap at 128 rows for large batches so
    # x/out tiles double-buffer against MXU work while weights stay resident.
    TB = B if B <= 128 else 128
    assert B % TB == 0, "batch must be a multiple of the batch tile"
    grid = (B // TB,)

    flops = 2 * B * (image_size * HIDDEN0_PAD
                     + HIDDEN0_PAD * HIDDEN1
                     + HIDDEN1 * OUT_PAD)
    bytes_accessed = (x2d.size * 4
                      + w0t.size * 2 + b0p.size * 4
                      + w1t.size * 2 + b1p.size * 4
                      + w2t.size * 2 + b2p.size * 4
                      + mask.size * 4
                      + B * OUT_PAD * 4)
    cost = pl.CostEstimate(flops=flops,
                           transcendentals=B * (OUT_PAD + 1),
                           bytes_accessed=bytes_accessed)

    # Weights/biases/mask: full-array blocks with a constant index_map -> one
    # HBM fetch per call, resident in VMEM across all batch tiles.
    const = lambda b: (0, 0)
    in_specs = [
        pl.BlockSpec((TB, image_size), lambda b: (b, 0)),          # x tile
        pl.BlockSpec((image_size, HIDDEN0_PAD), const),            # w0
        pl.BlockSpec((1, HIDDEN0_PAD), const),                     # b0
        pl.BlockSpec((HIDDEN0_PAD, HIDDEN1), const),               # w1
        pl.BlockSpec((1, HIDDEN1), const),                         # b1
        pl.BlockSpec((HIDDEN1, OUT_PAD), const),                   # w2
        pl.BlockSpec((1, OUT_PAD), const),                         # b2
        pl.BlockSpec((1, OUT_PAD), const),                         # class mask
    ]
    out_spec = pl.BlockSpec((TB, OUT_PAD), lambda b: (b, 0))

    out_padded = pl.pallas_call(
        firstnet_kernel,
        out_shape=jax.ShapeDtypeStruct((B, OUT_PAD), jnp.float32),
        grid_spec=pltpu.PrefetchScalarGridSpec(
            num_scalar_prefetch=0,
            grid=grid,
            in_specs=in_specs,
            out_specs=out_spec,
        ),
        compiler_params=pltpu.CompilerParams(
            # "arbitrary": in the mem-bound small-batch regime, megacore
            # "parallel" would duplicate the weight DMA per TensorCore.
            dimension_semantics=("arbitrary",),
        ),
        cost_estimate=cost,
    )(x2d, w0t, b0p, w1t, b1p, w2t, b2p, mask)
    return out_padded[:, :NUM_CLASSES]


def init_params(key, image_size):
    """Deterministic synthetic parameter init (PyTorch weight layout (out, in))."""
    k0, k1, k2, k3, k4, k5 = jax.random.split(key, 6)
    scale0 = 1.0 / jnp.sqrt(image_size)
    scale1 = 1.0 / jnp.sqrt(1000.0)
    scale2 = 1.0 / jnp.sqrt(50.0)
    w0 = jax.random.uniform(k0, (1000, image_size), jnp.float32, -scale0, scale0)
    b0 = jax.random.uniform(k1, (1000,), jnp.float32, -scale0, scale0)
    w1 = jax.random.uniform(k2, (50, 1000), jnp.float32, -scale1, scale1)
    b1 = jax.random.uniform(k3, (50,), jnp.float32, -scale1, scale1)
    w2 = jax.random.uniform(k4, (10, 50), jnp.float32, -scale2, scale2)
    b2 = jax.random.uniform(k5, (10,), jnp.float32, -scale2, scale2)
    return (w0, b0, w1, b1, w2, b2)


if __name__ == "__main__":
    key = jax.random.PRNGKey(0)
    kx, kp = jax.random.split(key)

    # MNIST-like small input: batch=8, NCHW (8, 1, 28, 28), image_size=784.
    B, C, H, W = 8, 1, 28, 28
    image_size = C * H * W
    x = jax.random.normal(kx, (B, C, H, W), dtype=jnp.float32)
    params = init_params(kp, image_size)
    prepared = prepare_params(params)      # transpose/pad/bf16 cast, done once

    out = firstnet_forward(x, prepared)
    out = jax.block_until_ready(out)

    # Pure-JAX reference using the SAME bf16 rounding of weights and of the
    # (B, .) operands fed to each matmul (f32 accumulation / epilogue).
    w0, b0, w1, b1, w2, b2 = params
    bf = lambda a: a.astype(jnp.bfloat16)
    x2d = x.reshape(B, image_size)
    h = jnp.maximum(jnp.dot(bf(x2d), bf(w0).T,
                            preferred_element_type=jnp.float32) + b0, 0.0)
    h = jnp.maximum(jnp.dot(bf(h), bf(w1).T,
                            preferred_element_type=jnp.float32) + b1, 0.0)
    h = jnp.maximum(jnp.dot(bf(h), bf(w2).T,
                            preferred_element_type=jnp.float32) + b2, 0.0)
    ref = jax.nn.log_softmax(h, axis=-1)

    assert out.shape == (B, NUM_CLASSES)
    assert jnp.allclose(out, ref, atol=2e-3, rtol=2e-3), \
        float(jnp.max(jnp.abs(out - ref)))
    # log_softmax rows must sum (in prob space) to 1.
    assert jnp.allclose(jnp.sum(jnp.exp(out), axis=-1), 1.0, atol=1e-4)

    print("KERNEL_OK")
</pallas_src>

<mosaic_0001>
module attributes {stable_mosaic.version = 11 : i64} {
  func.func @firstnet_kernel(%arg0: i32, %arg1: memref<8x784xf32, #tpu.memory_space<vmem>>, %arg2: memref<784x1024xbf16, #tpu.memory_space<vmem>>, %arg3: memref<1x1024xf32, #tpu.memory_space<vmem>>, %arg4: memref<1024x50xbf16, #tpu.memory_space<vmem>>, %arg5: memref<1x50xf32, #tpu.memory_space<vmem>>, %arg6: memref<50x128xbf16, #tpu.memory_space<vmem>>, %arg7: memref<1x128xf32, #tpu.memory_space<vmem>>, %arg8: memref<1x128xf32, #tpu.memory_space<vmem>>, %arg9: memref<8x128xf32, #tpu.memory_space<vmem>>) attributes {dimension_semantics = [#tpu.dimension_semantics<arbitrary>], iteration_bounds = array<i64: 1>, scalar_prefetch = 0 : i64, scratch_operands = 0 : i64, tpu.core_type = #tpu.core_type<tc>, window_params = [{transform_indices = @transform_0, window_bounds = array<i64: 8, 784>}, {pipeline_mode = #tpu.pipeline_mode<synchronous>, transform_indices = @transform_1, window_bounds = array<i64: 784, 1024>}, {pipeline_mode = #tpu.pipeline_mode<synchronous>, transform_indices = @transform_2, window_bounds = array<i64: 1, 1024>}, {pipeline_mode = #tpu.pipeline_mode<synchronous>, transform_indices = @transform_3, window_bounds = array<i64: 1024, 50>}, {pipeline_mode = #tpu.pipeline_mode<synchronous>, transform_indices = @transform_4, window_bounds = array<i64: 1, 50>}, {pipeline_mode = #tpu.pipeline_mode<synchronous>, transform_indices = @transform_5, window_bounds = array<i64: 50, 128>}, {pipeline_mode = #tpu.pipeline_mode<synchronous>, transform_indices = @transform_6, window_bounds = array<i64: 1, 128>}, {pipeline_mode = #tpu.pipeline_mode<synchronous>, transform_indices = @transform_7, window_bounds = array<i64: 1, 128>}, {transform_indices = @transform_8, window_bounds = array<i64: 8, 128>}]} {
    %c0 = arith.constant 0 : index
    %c0_0 = arith.constant 0 : index
    %0 = vector.load %arg1[%c0, %c0_0] : memref<8x784xf32, #tpu.memory_space<vmem>>, vector<8x784xf32>
    %1 = arith.truncf %0 : vector<8x784xf32> to vector<8x784xbf16>
    %c0_1 = arith.constant 0 : index
    %c0_2 = arith.constant 0 : index
    %2 = vector.load %arg2[%c0_1, %c0_2] : memref<784x1024xbf16, #tpu.memory_space<vmem>>, vector<784x1024xbf16>
    %cst = arith.constant dense<0.000000e+00> : vector<8x1024xf32>
    %3 = tpu.matmul %1, %2, %cst {dimension_numbers = #tpu.dot_dimension_numbers<[1], [0], [0], [1], [0, 0, 1, 1], [], []>} : vector<8x784xbf16>, vector<784x1024xbf16>, vector<8x1024xf32> -> vector<8x1024xf32>
    %c0_3 = arith.constant 0 : index
    %c0_4 = arith.constant 0 : index
    %4 = vector.load %arg3[%c0_3, %c0_4] : memref<1x1024xf32, #tpu.memory_space<vmem>>, vector<1x1024xf32>
    %5 = vector.broadcast %4 : vector<1x1024xf32> to vector<8x1024xf32>
    %6 = arith.addf %3, %5 : vector<8x1024xf32>
    %cst_5 = arith.constant 0.000000e+00 : f32
    %7 = vector.broadcast %cst_5 : f32 to vector<8x1024xf32>
    %8 = arith.maximumf %6, %7 : vector<8x1024xf32>
    %9 = arith.truncf %8 : vector<8x1024xf32> to vector<8x1024xbf16>
    %c0_6 = arith.constant 0 : index
    %c0_7 = arith.constant 0 : index
    %10 = vector.load %arg4[%c0_6, %c0_7] : memref<1024x50xbf16, #tpu.memory_space<vmem>>, vector<1024x50xbf16>
    %cst_8 = arith.constant dense<0.000000e+00> : vector<8x50xf32>
    %11 = tpu.matmul %9, %10, %cst_8 {dimension_numbers = #tpu.dot_dimension_numbers<[1], [0], [0], [1], [0, 0, 1, 1], [], []>} : vector<8x1024xbf16>, vector<1024x50xbf16>, vector<8x50xf32> -> vector<8x50xf32>
    %c0_9 = arith.constant 0 : index
    %c0_10 = arith.constant 0 : index
    %12 = vector.load %arg5[%c0_9, %c0_10] : memref<1x50xf32, #tpu.memory_space<vmem>>, vector<1x50xf32>
    %13 = vector.broadcast %12 : vector<1x50xf32> to vector<8x50xf32>
    %14 = arith.addf %11, %13 : vector<8x50xf32>
    %cst_11 = arith.constant 0.000000e+00 : f32
    %15 = vector.broadcast %cst_11 : f32 to vector<8x50xf32>
    %16 = arith.maximumf %14, %15 : vector<8x50xf32>
    %17 = arith.truncf %16 : vector<8x50xf32> to vector<8x50xbf16>
    %c0_12 = arith.constant 0 : index
    %c0_13 = arith.constant 0 : index
    %18 = vector.load %arg6[%c0_12, %c0_13] : memref<50x128xbf16, #tpu.memory_space<vmem>>, vector<50x128xbf16>
    %cst_14 = arith.constant dense<0.000000e+00> : vector<8x128xf32>
    %19 = tpu.matmul %17, %18, %cst_14 {dimension_numbers = #tpu.dot_dimension_numbers<[1], [0], [0], [1], [0, 0, 1, 1], [], []>} : vector<8x50xbf16>, vector<50x128xbf16>, vector<8x128xf32> -> vector<8x128xf32>
    %c0_15 = arith.constant 0 : index
    %c0_16 = arith.constant 0 : index
    %20 = vector.load %arg7[%c0_15, %c0_16] : memref<1x128xf32, #tpu.memory_space<vmem>>, vector<1x128xf32>
    %21 = vector.broadcast %20 : vector<1x128xf32> to vector<8x128xf32>
    %22 = arith.addf %19, %21 : vector<8x128xf32>
    %cst_17 = arith.constant 0.000000e+00 : f32
    %23 = vector.broadcast %cst_17 : f32 to vector<8x128xf32>
    %24 = arith.maximumf %22, %23 : vector<8x128xf32>
    %c0_18 = arith.constant 0 : index
    %c0_19 = arith.constant 0 : index
    %25 = vector.load %arg8[%c0_18, %c0_19] : memref<1x128xf32, #tpu.memory_space<vmem>>, vector<1x128xf32>
    %26 = vector.broadcast %25 : vector<1x128xf32> to vector<8x128xf32>
    %27 = arith.addf %24, %26 : vector<8x128xf32>
    %cst_20 = arith.constant dense<0xFF800000> : vector<8xf32>
    %28 = vector.multi_reduction <maximumf>, %27, %cst_20 [1] : vector<8x128xf32> to vector<8xf32>
    %29 = vector.shape_cast %28 : vector<8xf32> to vector<8x1xf32>
    %30 = vector.broadcast %29 : vector<8x1xf32> to vector<8x128xf32>
    %31 = arith.subf %27, %30 : vector<8x128xf32>
    %32 = math.exp %31 : vector<8x128xf32>
    %cst_21 = arith.constant dense<0.000000e+00> : vector<8xf32>
    %33 = vector.multi_reduction <add>, %32, %cst_21 [1] : vector<8x128xf32> to vector<8xf32>
    %34 = vector.shape_cast %33 : vector<8xf32> to vector<8x1xf32>
    %35 = math.log %34 : vector<8x1xf32>
    %36 = vector.broadcast %35 : vector<8x1xf32> to vector<8x128xf32>
    %37 = arith.subf %31, %36 : vector<8x128xf32>
    %c0_22 = arith.constant 0 : index
    %c0_23 = arith.constant 0 : index
    %38 = vector.load %arg9[%c0_22, %c0_23] : memref<8x128xf32, #tpu.memory_space<vmem>>, vector<8x128xf32>
    tpu.vector_store %arg9[%c0_22, %c0_23], %37 {strides = array<i32>} : memref<8x128xf32, #tpu.memory_space<vmem>>, vector<8x128xf32>,
    return
  }
  func.func @transform_0(%arg0: i32) -> (i32, i32) {
    %c0_i32 = arith.constant 0 : i32
    %c0_i32_0 = arith.constant 0 : i32
    return %arg0, %c0_i32 : i32, i32
  }
  func.func @transform_1(%arg0: i32) -> (i32, i32) {
    %c0_i32 = arith.constant 0 : i32
    %c0_i32_0 = arith.constant 0 : i32
    %c0_i32_1 = arith.constant 0 : i32
    return %c0_i32, %c0_i32_0 : i32, i32
  }
  func.func @transform_2(%arg0: i32) -> (i32, i32) {
    %c0_i32 = arith.constant 0 : i32
    %c0_i32_0 = arith.constant 0 : i32
    %c0_i32_1 = arith.constant 0 : i32
    return %c0_i32, %c0_i32_0 : i32, i32
  }
  func.func @transform_3(%arg0: i32) -> (i32, i32) {
    %c0_i32 = arith.constant 0 : i32
    %c0_i32_0 = arith.constant 0 : i32
    %c0_i32_1 = arith.constant 0 : i32
    return %c0_i32, %c0_i32_0 : i32, i32
  }
  func.func @transform_4(%arg0: i32) -> (i32, i32) {
    %c0_i32 = arith.constant 0 : i32
    %c0_i32_0 = arith.constant 0 : i32
    %c0_i32_1 = arith.constant 0 : i32
    return %c0_i32, %c0_i32_0 : i32, i32
  }
  func.func @transform_5(%arg0: i32) -> (i32, i32) {
    %c0_i32 = arith.constant 0 : i32
    %c0_i32_0 = arith.constant 0 : i32
    %c0_i32_1 = arith.constant 0 : i32
    return %c0_i32, %c0_i32_0 : i32, i32
  }
  func.func @transform_6(%arg0: i32) -> (i32, i32) {
    %c0_i32 = arith.constant 0 : i32
    %c0_i32_0 = arith.constant 0 : i32
    %c0_i32_1 = arith.constant 0 : i32
    return %c0_i32, %c0_i32_0 : i32, i32
  }
  func.func @transform_7(%arg0: i32) -> (i32, i32) {
    %c0_i32 = arith.constant 0 : i32
    %c0_i32_0 = arith.constant 0 : i32
    %c0_i32_1 = arith.constant 0 : i32
    return %c0_i32, %c0_i32_0 : i32, i32
  }
  func.func @transform_8(%arg0: i32) -> (i32, i32) {
    %c0_i32 = arith.constant 0 : i32
    %c0_i32_0 = arith.constant 0 : i32
    return %arg0, %c0_i32 : i32, i32
  }
}

</mosaic_0001>

<llo_original>
// kernel: firstnet_forward.1
$region0: #{firstnet_forward.1}
  #allocation0 [shape = 'u32[]', space=smem, size = 0x4, offset = 0x4, fixed_abs, tag = 'smem constant byte address 0x4 - core index']
  #allocation1 [shape = 'u32[144,128]{1,0:T(1,128)}', space=vmem, size = 0x12000, scoped, tag = 'internal scratch']
  %s0 = inlined_call_operand.vmem [shape: f32[8,784], index: 0, kind: input, shape index: {}]
  %s1 = inlined_call_operand.hbm [shape: bf16[784,1024], index: 1, kind: input, shape index: {}]
  %s2 = inlined_call_operand.hbm [shape: f32[1,1024], index: 2, kind: input, shape index: {}]
  %s3 = inlined_call_operand.vmem [shape: bf16[1024,50], index: 3, kind: input, shape index: {}]
  %s4 = inlined_call_operand.hbm [shape: f32[1,50], index: 4, kind: input, shape index: {}]
  %s5 = inlined_call_operand.hbm [shape: bf16[50,128], index: 5, kind: input, shape index: {}]
  %s6 = inlined_call_operand.hbm [shape: f32[1,128], index: 6, kind: input, shape index: {}]
  %s7 = inlined_call_operand.hbm [shape: f32[1,128], index: 7, kind: input, shape index: {}]
  %s8 = inlined_call_operand.hbm [shape: f32[8,128], index: 8, kind: output, shape index: {}]
  %s9 = sld [smem:[#allocation0]]
  $region66: #{firstnet_forward.1} parent=0
    _
  %s11 = ssub.s32 1, %s9
  %s12 = scalar_select 0, %s11, %s9
  $region1: #{firstnet_forward.1} parent=0
    #allocation2 [shape = 'u8[1605632]{0}', space=vmem, size = 0x188000, scoped, tag = 'input window, operand 1, single buffered']
    #allocation3 [shape = 's32[1]{0}', space=sflag, size = 0x4, scoped, tag = 'scoped memory for firstnet_forward.1']
    #allocation4 [shape = 's32[1]{0}', space=sflag, size = 0x4, scoped, tag = 'scoped memory for firstnet_forward.1']
    #allocation5 [shape = 'u8[4096]{0}', space=vmem, size = 0x1000, scoped, tag = 'input window, operand 2, single buffered']
    #allocation6 [shape = 's32[1]{0}', space=sflag, size = 0x4, scoped, tag = 'scoped memory for firstnet_forward.1']
    #allocation7 [shape = 'u8[512]{0}', space=vmem, size = 0x400, scoped, tag = 'input window, operand 4, single buffered']
    #allocation8 [shape = 'u8[14336]{0}', space=vmem, size = 0x3800, scoped, tag = 'input window, operand 5, single buffered']
    #allocation9 [shape = 's32[1]{0}', space=sflag, size = 0x4, scoped, tag = 'scoped memory for firstnet_forward.1']
    #allocation10 [shape = 'u8[512]{0}', space=vmem, size = 0x400, scoped, tag = 'input window, operand 6, single buffered']
    #allocation11 [shape = 'u8[512]{0}', space=vmem, size = 0x400, scoped, tag = 'input window, operand 7, single buffered']
    #allocation12 [shape = 's32[1]{0}', space=sflag, size = 0x4, scoped, tag = 'scoped memory for firstnet_forward.1']
    #allocation13 [shape = 'u8[4096]{0}', space=vmem, size = 0x1000, scoped, tag = 'output window, operand 0, single buffered']
    %13 = vsyncpa [#allocation3], 0
    %14 = vsyncpa [#allocation6], 0
    %15 = vsyncpa [#allocation9], 0
    %16 = vsyncpa [#allocation12], 0
    %17 = vsyncpa [#allocation4], 0
    // Predicated region
    $region2: #{firstnet_forward.1} parent=1 // pred_check
      _
    $region3: #{firstnet_forward.1} parent=1 // pred_check_branch
      %19 = sbr.rel (0) target = $region5
    $region4: #{firstnet_forward.1} parent=1 // pred_region
      _
    $region5: #{firstnet_forward.1} parent=1 // pred_fallthru
      _
    // Predicated region
    $region6: #{firstnet_forward.1} parent=1 // pred_check
      _
    $region7: #{firstnet_forward.1} parent=1 // pred_check_branch
      %21 = sbr.rel (0) target = $region9
    $region8: #{firstnet_forward.1} parent=1 // pred_region
      %s23 = ssub.s32 50176, 50176
      %24 = vsyncadd [#allocation3], %s23
      %s25 = sshll.u32 [#allocation2], 4
      %s26 = int_to_ptr.vmem [resolvable:$true] %s25
      %31 = dma.hbm_to_vmem [thread:$0]  %s1, 50176, %s26, [#allocation3], 512, 512, 32
    $region9: #{firstnet_forward.1} parent=1 // pred_fallthru
      _
    // Predicated region
    $region10: #{firstnet_forward.1} parent=1 // pred_check
      _
    $region11: #{firstnet_forward.1} parent=1 // pred_check_branch
      %33 = sbr.rel (0) target = $region13
    $region12: #{firstnet_forward.1} parent=1 // pred_region
      %s35 = ssub.s32 128, 128
      %36 = vsyncadd [#allocation6], %s35
      %s38 = sshll.u32 [#allocation5], 4
      %s39 = int_to_ptr.vmem [resolvable:$true] %s38
      %41 = dma.hbm_to_vmem [thread:$0]  %s2, 128, %s39, [#allocation6]
    $region13: #{firstnet_forward.1} parent=1 // pred_fallthru
      _
    // Predicated region
    $region14: #{firstnet_forward.1} parent=1 // pred_check
      _
    $region15: #{firstnet_forward.1} parent=1 // pred_check_branch
      %43 = sbr.rel (0) target = $region17
    $region16: #{firstnet_forward.1} parent=1 // pred_region
      _
    $region17: #{firstnet_forward.1} parent=1 // pred_fallthru
      _
    // Predicated region
    $region18: #{firstnet_forward.1} parent=1 // pred_check
      _
    $region19: #{firstnet_forward.1} parent=1 // pred_check_branch
      %45 = sbr.rel (0) target = $region21
    $region20: #{firstnet_forward.1} parent=1 // pred_region
      %s47 = ssub.s32 16, 16
      %48 = vsyncadd [#allocation6], %s47
      %s50 = sshll.u32 [#allocation7], 4
      %s51 = int_to_ptr.vmem [resolvable:$true] %s50
      %53 = dma.hbm_to_vmem [thread:$0]  %s4, 16, %s51, [#allocation6]
    $region21: #{firstnet_forward.1} parent=1 // pred_fallthru
      _
    // Predicated region
    $region22: #{firstnet_forward.1} parent=1 // pred_check
      _
    $region23: #{firstnet_forward.1} parent=1 // pred_check_branch
      %55 = sbr.rel (0) target = $region25
    $region24: #{firstnet_forward.1} parent=1 // pred_region
      %s57 = ssub.s32 448, 448
      %58 = vsyncadd [#allocation9], %s57
      %s59 = sshll.u32 [#allocation8], 4
      %s60 = int_to_ptr.vmem [resolvable:$true] %s59
      %65 = dma.hbm_to_vmem [thread:$0]  %s5, 448, %s60, [#allocation9], 64, 64, 4
    $region25: #{firstnet_forward.1} parent=1 // pred_fallthru
      _
    // Predicated region
    $region26: #{firstnet_forward.1} parent=1 // pred_check
      _
    $region27: #{firstnet_forward.1} parent=1 // pred_check_branch
      %67 = sbr.rel (0) target = $region29
    $region28: #{firstnet_forward.1} parent=1 // pred_region
      %s69 = ssub.s32 16, 16
      %70 = vsyncadd [#allocation9], %s69
      %s72 = sshll.u32 [#allocation10], 4
      %s73 = int_to_ptr.vmem [resolvable:$true] %s72
      %75 = dma.hbm_to_vmem [thread:$0]  %s6, 16, %s73, [#allocation9]
    $region29: #{firstnet_forward.1} parent=1 // pred_fallthru
      _
    // Predicated region
    $region30: #{firstnet_forward.1} parent=1 // pred_check
      _
    $region31: #{firstnet_forward.1} parent=1 // pred_check_branch
      %77 = sbr.rel (0) target = $region33
    $region32: #{firstnet_forward.1} parent=1 // pred_region
      %s79 = ssub.s32 16, 16
      %80 = vsyncadd [#allocation12], %s79
      %s82 = sshll.u32 [#allocation11], 4
      %s83 = int_to_ptr.vmem [resolvable:$true] %s82
      %85 = dma.hbm_to_vmem [thread:$0]  %s7, 16, %s83, [#allocation12]
    $region33: #{firstnet_forward.1} parent=1 // pred_fallthru
      _
    // Predicated region
    $region34: #{firstnet_forward.1} parent=1 // pred_check
      _
    $region35: #{firstnet_forward.1} parent=1 // pred_check_branch
      %87 = sbr.rel (0) target = $region37
    $region36: #{firstnet_forward.1} parent=1 // pred_region
      %88 = dma.done [#allocation3], 50176
    $region37: #{firstnet_forward.1} parent=1 // pred_fallthru
      _
    // Predicated region
    $region38: #{firstnet_forward.1} parent=1 // pred_check
      _
    $region39: #{firstnet_forward.1} parent=1 // pred_check_branch
      %90 = sbr.rel (0) target = $region41
    $region40: #{firstnet_forward.1} parent=1 // pred_region
      %91 = dma.done [#allocation6], 128
    $region41: #{firstnet_forward.1} parent=1 // pred_fallthru
      _
    // Predicated region
    $region42: #{firstnet_forward.1} parent=1 // pred_check
      _
    $region43: #{firstnet_forward.1} parent=1 // pred_check_branch
      %93 = sbr.rel (0) target = $region45
    $region44: #{firstnet_forward.1} parent=1 // pred_region
      %94 = dma.done [#allocation6], 16
    $region45: #{firstnet_forward.1} parent=1 // pred_fallthru
      _
    // Predicated region
    $region46: #{firstnet_forward.1} parent=1 // pred_check
      _
    $region47: #{firstnet_forward.1} parent=1 // pred_check_branch
      %96 = sbr.rel (0) target = $region49
    $region48: #{firstnet_forward.1} parent=1 // pred_region
      %97 = dma.done [#allocation9], 448
    $region49: #{firstnet_forward.1} parent=1 // pred_fallthru
      _
    // Predicated region
    $region50: #{firstnet_forward.1} parent=1 // pred_check
      _
    $region51: #{firstnet_forward.1} parent=1 // pred_check_branch
      %99 = sbr.rel (0) target = $region53
    $region52: #{firstnet_forward.1} parent=1 // pred_region
      %100 = dma.done [#allocation9], 16
    $region53: #{firstnet_forward.1} parent=1 // pred_fallthru
      _
    // Predicated region
    $region54: #{firstnet_forward.1} parent=1 // pred_check
      _
    $region55: #{firstnet_forward.1} parent=1 // pred_check_branch
      %102 = sbr.rel (0) target = $region57
    $region56: #{firstnet_forward.1} parent=1 // pred_region
      %103 = dma.done [#allocation12], 16
    $region57: #{firstnet_forward.1} parent=1 // pred_fallthru
      _
    %v105 = vld [vmem:[%s0] sm:$0xff]
    %v106 = vld [vmem:[%s0 + $0x8] sm:$0xff]
    %v107 = vld [vmem:[%s0 + $0x10] sm:$0xff]
    %v108 = vld [vmem:[%s0 + $0x18] sm:$0xff]
    %v109 = vld [vmem:[%s0 + $0x20] sm:$0xff]
    %v110 = vld [vmem:[%s0 + $0x28] sm:$0xff]
    %v111 = vld [vmem:[%s0 + $0x30] sm:$0xff]
    %v112 = vpack.c.bf16 %v105, %v105
    %v113 = vpack.c.bf16 %v106, %v106
    %v114 = vpack.c.bf16 %v107, %v107
    %v115 = vpack.c.bf16 %v108, %v108
    %v116 = vpack.c.bf16 %v109, %v109
    %v117 = vpack.c.bf16 %v110, %v110
    %v118 = vpack.c.bf16 %v111, %v111
    %v119 = vld [vmem:[#allocation2] sm:$0xff]
    %v120 = vld [vmem:[#allocation2 + $0x8] sm:$0xff]
    %v121 = vld [vmem:[#allocation2 + $0x10] sm:$0xff]
    %v122 = vld [vmem:[#allocation2 + $0x18] sm:$0xff]
    %v123 = vld [vmem:[#allocation2 + $0x20] sm:$0xff]
    %v124 = vld [vmem:[#allocation2 + $0x28] sm:$0xff]
    %v125 = vld [vmem:[#allocation2 + $0x30] sm:$0xff]
    %v126 = vld [vmem:[#allocation2 + $0x38] sm:$0xff]
    %v127 = vld [vmem:[#allocation2 + $0x40] sm:$0xff]
    %v128 = vld [vmem:[#allocation2 + $0x48] sm:$0xff]
    %v129 = vld [vmem:[#allocation2 + $0x50] sm:$0xff]
    %v130 = vld [vmem:[#allocation2 + $0x58] sm:$0xff]
    %v131 = vld [vmem:[#allocation2 + $0x60] sm:$0xff]
    %v132 = vld [vmem:[#allocation2 + $0x68] sm:$0xff]
    %v133 = vld [vmem:[#allocation2 + $0x70] sm:$0xff]
    %v134 = vld [vmem:[#allocation2 + $0x78] sm:$0xff]
    %v135 = vld [vmem:[#allocation2 + $0x80] sm:$0xff]
    %v136 = vld [vmem:[#allocation2 + $0x88] sm:$0xff]
    %v137 = vld [vmem:[#allocation2 + $0x90] sm:$0xff]
    %v138 = vld [vmem:[#allocation2 + $0x98] sm:$0xff]
    %v139 = vld [vmem:[#allocation2 + $0xa0] sm:$0xff]
    %v140 = vld [vmem:[#allocation2 + $0xa8] sm:$0xff]
    %v141 = vld [vmem:[#allocation2 + $0xb0] sm:$0xff]
    %v142 = vld [vmem:[#allocation2 + $0xb8] sm:$0xff]
    %v143 = vld [vmem:[#allocation2 + $0xc0] sm:$0xff]
    %v144 = vld [vmem:[#allocation2 + $0xc8] sm:$0xff]
    %v145 = vld [vmem:[#allocation2 + $0xd0] sm:$0xff]
    %v146 = vld [vmem:[#allocation2 + $0xd8] sm:$0xff]
    %v147 = vld [vmem:[#allocation2 + $0xe0] sm:$0xff]
    %v148 = vld [vmem:[#allocation2 + $0xe8] sm:$0xff]
    %v149 = vld [vmem:[#allocation2 + $0xf0] sm:$0xff]
    %v150 = vld [vmem:[#allocation2 + $0xf8] sm:$0xff]
    %v151 = vld [vmem:[#allocation2 + $0x100] sm:$0xff]
    %v152 = vld [vmem:[#allocation2 + $0x108] sm:$0xff]
    %v153 = vld [vmem:[#allocation2 + $0x110] sm:$0xff]
    %v154 = vld [vmem:[#allocation2 + $0x118] sm:$0xff]
    %v155 = vld [vmem:[#allocation2 + $0x120] sm:$0xff]
    %v156 = vld [vmem:[#allocation2 + $0x128] sm:$0xff]
    %v157 = vld [vmem:[#allocation2 + $0x130] sm:$0xff]
    %v158 = vld [vmem:[#allocation2 + $0x138] sm:$0xff]
    %v159 = vld [vmem:[#allocation2 + $0x140] sm:$0xff]
    %v160 = vld [vmem:[#allocation2 + $0x148] sm:$0xff]
    %v161 = vld [vmem:[#allocation2 + $0x150] sm:$0xff]
    %v162 = vld [vmem:[#allocation2 + $0x158] sm:$0xff]
    %v163 = vld [vmem:[#allocation2 + $0x160] sm:$0xff]
    %v164 = vld [vmem:[#allocation2 + $0x168] sm:$0xff]
    %v165 = vld [vmem:[#allocation2 + $0x170] sm:$0xff]
    %v166 = vld [vmem:[#allocation2 + $0x178] sm:$0xff]
    %v167 = vld [vmem:[#allocation2 + $0x180] sm:$0xff]
    %v168 = vld [vmem:[#allocation2 + $0x188] sm:$0xff]
    %v169 = vld [vmem:[#allocation2 + $0x190] sm:$0xff]
    %v170 = vld [vmem:[#allocation2 + $0x198] sm:$0xff]
    %v171 = vld [vmem:[#allocation2 + $0x1a0] sm:$0xff]
    %v172 = vld [vmem:[#allocation2 + $0x1a8] sm:$0xff]
    %v173 = vld [vmem:[#allocation2 + $0x1b0] sm:$0xff]
    %v174 = vld [vmem:[#allocation2 + $0x1b8] sm:$0xff]
    %v175 = vld [vmem:[#allocation2 + $0x1c0] sm:$0xff]
    %v176 = vld [vmem:[#allocation2 + $0x1c8] sm:$0xff]
    %v177 = vld [vmem:[#allocation2 + $0x1d0] sm:$0xff]
    %v178 = vld [vmem:[#allocation2 + $0x1d8] sm:$0xff]
    %v179 = vld [vmem:[#allocation2 + $0x1e0] sm:$0xff]
    %v180 = vld [vmem:[#allocation2 + $0x1e8] sm:$0xff]
    %v181 = vld [vmem:[#allocation2 + $0x1f0] sm:$0xff]
    %v182 = vld [vmem:[#allocation2 + $0x1f8] sm:$0xff]
    %v183 = vld [vmem:[#allocation2 + $0x200] sm:$0xff]
    %v184 = vld [vmem:[#allocation2 + $0x208] sm:$0xff]
    %v185 = vld [vmem:[#allocation2 + $0x210] sm:$0xff]
    %v186 = vld [vmem:[#allocation2 + $0x218] sm:$0xff]
    %v187 = vld [vmem:[#allocation2 + $0x220] sm:$0xff]
    %v188 = vld [vmem:[#allocation2 + $0x228] sm:$0xff]
    %v189 = vld [vmem:[#allocation2 + $0x230] sm:$0xff]
    %v190 = vld [vmem:[#allocation2 + $0x238] sm:$0xff]
    %v191 = vld [vmem:[#allocation2 + $0x240] sm:$0xff]
    %v192 = vld [vmem:[#allocation2 + $0x248] sm:$0xff]
    %v193 = vld [vmem:[#allocation2 + $0x250] sm:$0xff]
    %v194 = vld [vmem:[#allocation2 + $0x258] sm:$0xff]
    %v195 = vld [vmem:[#allocation2 + $0x260] sm:$0xff]
    %v196 = vld [vmem:[#allocation2 + $0x268] sm:$0xff]
    %v197 = vld [vmem:[#allocation2 + $0x270] sm:$0xff]
    %v198 = vld [vmem:[#allocation2 + $0x278] sm:$0xff]
    %v199 = vld [vmem:[#allocation2 + $0x280] sm:$0xff]
    %v200 = vld [vmem:[#allocation2 + $0x288] sm:$0xff]
    %v201 = vld [vmem:[#allocation2 + $0x290] sm:$0xff]
    %v202 = vld [vmem:[#allocation2 + $0x298] sm:$0xff]
    %v203 = vld [vmem:[#allocation2 + $0x2a0] sm:$0xff]
    %v204 = vld [vmem:[#allocation2 + $0x2a8] sm:$0xff]
    %v205 = vld [vmem:[#allocation2 + $0x2b0] sm:$0xff]
    %v206 = vld [vmem:[#allocation2 + $0x2b8] sm:$0xff]
    %v207 = vld [vmem:[#allocation2 + $0x2c0] sm:$0xff]
    %v208 = vld [vmem:[#allocation2 + $0x2c8] sm:$0xff]
    %v209 = vld [vmem:[#allocation2 + $0x2d0] sm:$0xff]
    %v210 = vld [vmem:[#allocation2 + $0x2d8] sm:$0xff]
    %v211 = vld [vmem:[#allocation2 + $0x2e0] sm:$0xff]
    %v212 = vld [vmem:[#allocation2 + $0x2e8] sm:$0xff]
    %v213 = vld [vmem:[#allocation2 + $0x2f0] sm:$0xff]
    %v214 = vld [vmem:[#allocation2 + $0x2f8] sm:$0xff]
    %v215 = vld [vmem:[#allocation2 + $0x300] sm:$0xff]
    %v216 = vld [vmem:[#allocation2 + $0x308] sm:$0xff]
    %v217 = vld [vmem:[#allocation2 + $0x310] sm:$0xff]
    %v218 = vld [vmem:[#allocation2 + $0x318] sm:$0xff]
    %v219 = vld [vmem:[#allocation2 + $0x320] sm:$0xff]
    %v220 = vld [vmem:[#allocation2 + $0x328] sm:$0xff]
    %v221 = vld [vmem:[#allocation2 + $0x330] sm:$0xff]
    %v222 = vld [vmem:[#allocation2 + $0x338] sm:$0xff]
    %v223 = vld [vmem:[#allocation2 + $0x340] sm:$0xff]
    %v224 = vld [vmem:[#allocation2 + $0x348] sm:$0xff]
    %v225 = vld [vmem:[#allocation2 + $0x350] sm:$0xff]
    %v226 = vld [vmem:[#allocation2 + $0x358] sm:$0xff]
    %v227 = vld [vmem:[#allocation2 + $0x360] sm:$0xff]
    %v228 = vld [vmem:[#allocation2 + $0x368] sm:$0xff]
    %v229 = vld [vmem:[#allocation2 + $0x370] sm:$0xff]
    %v230 = vld [vmem:[#allocation2 + $0x378] sm:$0xff]
    %v231 = vld [vmem:[#allocation2 + $0x380] sm:$0xff]
    %v232 = vld [vmem:[#allocation2 + $0x388] sm:$0xff]
    %v233 = vld [vmem:[#allocation2 + $0x390] sm:$0xff]
    %v234 = vld [vmem:[#allocation2 + $0x398] sm:$0xff]
    %v235 = vld [vmem:[#allocation2 + $0x3a0] sm:$0xff]
    %v236 = vld [vmem:[#allocation2 + $0x3a8] sm:$0xff]
    %v237 = vld [vmem:[#allocation2 + $0x3b0] sm:$0xff]
    %v238 = vld [vmem:[#allocation2 + $0x3b8] sm:$0xff]
    %v239 = vld [vmem:[#allocation2 + $0x3c0] sm:$0xff]
    %v240 = vld [vmem:[#allocation2 + $0x3c8] sm:$0xff]
    %v241 = vld [vmem:[#allocation2 + $0x3d0] sm:$0xff]
    %v242 = vld [vmem:[#allocation2 + $0x3d8] sm:$0xff]
    %v243 = vld [vmem:[#allocation2 + $0x3e0] sm:$0xff]
    %v244 = vld [vmem:[#allocation2 + $0x3e8] sm:$0xff]
    %v245 = vld [vmem:[#allocation2 + $0x3f0] sm:$0xff]
    %v246 = vld [vmem:[#allocation2 + $0x3f8] sm:$0xff]
    %v247 = vld [vmem:[#allocation2 + $0x400] sm:$0xff]
    %v248 = vld [vmem:[#allocation2 + $0x408] sm:$0xff]
    %v249 = vld [vmem:[#allocation2 + $0x410] sm:$0xff]
    %v250 = vld [vmem:[#allocation2 + $0x418] sm:$0xff]
    %v251 = vld [vmem:[#allocation2 + $0x420] sm:$0xff]
    %v252 = vld [vmem:[#allocation2 + $0x428] sm:$0xff]
    %v253 = vld [vmem:[#allocation2 + $0x430] sm:$0xff]
    %v254 = vld [vmem:[#allocation2 + $0x438] sm:$0xff]
    %v255 = vld [vmem:[#allocation2 + $0x440] sm:$0xff]
    %v256 = vld [vmem:[#allocation2 + $0x448] sm:$0xff]
    %v257 = vld [vmem:[#allocation2 + $0x450] sm:$0xff]
    %v258 = vld [vmem:[#allocation2 + $0x458] sm:$0xff]
    %v259 = vld [vmem:[#allocation2 + $0x460] sm:$0xff]
    %v260 = vld [vmem:[#allocation2 + $0x468] sm:$0xff]
    %v261 = vld [vmem:[#allocation2 + $0x470] sm:$0xff]
    %v262 = vld [vmem:[#allocation2 + $0x478] sm:$0xff]
    %v263 = vld [vmem:[#allocation2 + $0x480] sm:$0xff]
    %v264 = vld [vmem:[#allocation2 + $0x488] sm:$0xff]
    %v265 = vld [vmem:[#allocation2 + $0x490] sm:$0xff]
    %v266 = vld [vmem:[#allocation2 + $0x498] sm:$0xff]
    %v267 = vld [vmem:[#allocation2 + $0x4a0] sm:$0xff]
    %v268 = vld [vmem:[#allocation2 + $0x4a8] sm:$0xff]
    %v269 = vld [vmem:[#allocation2 + $0x4b0] sm:$0xff]
    %v270 = vld [vmem:[#allocation2 + $0x4b8] sm:$0xff]
    %v271 = vld [vmem:[#allocation2 + $0x4c0] sm:$0xff]
    %v272 = vld [vmem:[#allocation2 + $0x4c8] sm:$0xff]
    %v273 = vld [vmem:[#allocation2 + $0x4d0] sm:$0xff]
    %v274 = vld [vmem:[#allocation2 + $0x4d8] sm:$0xff]
    %v275 = vld [vmem:[#allocation2 + $0x4e0] sm:$0xff]
    %v276 = vld [vmem:[#allocation2 + $0x4e8] sm:$0xff]
    %v277 = vld [vmem:[#allocation2 + $0x4f0] sm:$0xff]
    %v278 = vld [vmem:[#allocation2 + $0x4f8] sm:$0xff]
    %v279 = vld [vmem:[#allocation2 + $0x500] sm:$0xff]
    %v280 = vld [vmem:[#allocation2 + $0x508] sm:$0xff]
    %v281 = vld [vmem:[#allocation2 + $0x510] sm:$0xff]
    %v282 = vld [vmem:[#allocation2 + $0x518] sm:$0xff]
    %v283 = vld [vmem:[#allocation2 + $0x520] sm:$0xff]
    %v284 = vld [vmem:[#allocation2 + $0x528] sm:$0xff]
    %v285 = vld [vmem:[#allocation2 + $0x530] sm:$0xff]
    %v286 = vld [vmem:[#allocation2 + $0x538] sm:$0xff]
    %v287 = vld [vmem:[#allocation2 + $0x540] sm:$0xff]
    %v288 = vld [vmem:[#allocation2 + $0x548] sm:$0xff]
    %v289 = vld [vmem:[#allocation2 + $0x550] sm:$0xff]
    %v290 = vld [vmem:[#allocation2 + $0x558] sm:$0xff]
    %v291 = vld [vmem:[#allocation2 + $0x560] sm:$0xff]
    %v292 = vld [vmem:[#allocation2 + $0x568] sm:$0xff]
    %v293 = vld [vmem:[#allocation2 + $0x570] sm:$0xff]
    %v294 = vld [vmem:[#allocation2 + $0x578] sm:$0xff]
    %v295 = vld [vmem:[#allocation2 + $0x580] sm:$0xff]
    %v296 = vld [vmem:[#allocation2 + $0x588] sm:$0xff]
    %v297 = vld [vmem:[#allocation2 + $0x590] sm:$0xff]
    %v298 = vld [vmem:[#allocation2 + $0x598] sm:$0xff]
    %v299 = vld [vmem:[#allocation2 + $0x5a0] sm:$0xff]
    %v300 = vld [vmem:[#allocation2 + $0x5a8] sm:$0xff]
    %v301 = vld [vmem:[#allocation2 + $0x5b0] sm:$0xff]
    %v302 = vld [vmem:[#allocation2 + $0x5b8] sm:$0xff]
    %v303 = vld [vmem:[#allocation2 + $0x5c0] sm:$0xff]
    %v304 = vld [vmem:[#allocation2 + $0x5c8] sm:$0xff]
    %v305 = vld [vmem:[#allocation2 + $0x5d0] sm:$0xff]
    %v306 = vld [vmem:[#allocation2 + $0x5d8] sm:$0xff]
    %v307 = vld [vmem:[#allocation2 + $0x5e0] sm:$0xff]
    %v308 = vld [vmem:[#allocation2 + $0x5e8] sm:$0xff]
    %v309 = vld [vmem:[#allocation2 + $0x5f0] sm:$0xff]
    %v310 = vld [vmem:[#allocation2 + $0x5f8] sm:$0xff]
    %v311 = vld [vmem:[#allocation2 + $0x600] sm:$0xff]
    %v312 = vld [vmem:[#allocation2 + $0x608] sm:$0xff]
    %v313 = vld [vmem:[#allocation2 + $0x610] sm:$0xff]
    %v314 = vld [vmem:[#allocation2 + $0x618] sm:$0xff]
    %v315 = vld [vmem:[#allocation2 + $0x620] sm:$0xff]
    %v316 = vld [vmem:[#allocation2 + $0x628] sm:$0xff]
    %v317 = vld [vmem:[#allocation2 + $0x630] sm:$0xff]
    %v318 = vld [vmem:[#allocation2 + $0x638] sm:$0xff]
    %v319 = vld [vmem:[#allocation2 + $0x640] sm:$0xff]
    %v320 = vld [vmem:[#allocation2 + $0x648] sm:$0xff]
    %v321 = vld [vmem:[#allocation2 + $0x650] sm:$0xff]
    %v322 = vld [vmem:[#allocation2 + $0x658] sm:$0xff]
    %v323 = vld [vmem:[#allocation2 + $0x660] sm:$0xff]
    %v324 = vld [vmem:[#allocation2 + $0x668] sm:$0xff]
    %v325 = vld [vmem:[#allocation2 + $0x670] sm:$0xff]
    %v326 = vld [vmem:[#allocation2 + $0x678] sm:$0xff]
    %v327 = vld [vmem:[#allocation2 + $0x680] sm:$0xff]
    %v328 = vld [vmem:[#allocation2 + $0x688] sm:$0xff]
    %v329 = vld [vmem:[#allocation2 + $0x690] sm:$0xff]
    %v330 = vld [vmem:[#allocation2 + $0x698] sm:$0xff]
    %v331 = vld [vmem:[#allocation2 + $0x6a0] sm:$0xff]
    %v332 = vld [vmem:[#allocation2 + $0x6a8] sm:$0xff]
    %v333 = vld [vmem:[#allocation2 + $0x6b0] sm:$0xff]
    %v334 = vld [vmem:[#allocation2 + $0x6b8] sm:$0xff]
    %v335 = vld [vmem:[#allocation2 + $0x6c0] sm:$0xff]
    %v336 = vld [vmem:[#allocation2 + $0x6c8] sm:$0xff]
    %v337 = vld [vmem:[#allocation2 + $0x6d0] sm:$0xff]
    %v338 = vld [vmem:[#allocation2 + $0x6d8] sm:$0xff]
    %v339 = vld [vmem:[#allocation2 + $0x6e0] sm:$0xff]
    %v340 = vld [vmem:[#allocation2 + $0x6e8] sm:$0xff]
    %v341 = vld [vmem:[#allocation2 + $0x6f0] sm:$0xff]
    %v342 = vld [vmem:[#allocation2 + $0x6f8] sm:$0xff]
    %v343 = vld [vmem:[#allocation2 + $0x700] sm:$0xff]
    %v344 = vld [vmem:[#allocation2 + $0x708] sm:$0xff]
    %v345 = vld [vmem:[#allocation2 + $0x710] sm:$0xff]
    %v346 = vld [vmem:[#allocation2 + $0x718] sm:$0xff]
    %v347 = vld [vmem:[#allocation2 + $0x720] sm:$0xff]
    %v348 = vld [vmem:[#allocation2 + $0x728] sm:$0xff]
    %v349 = vld [vmem:[#allocation2 + $0x730] sm:$0xff]
    %v350 = vld [vmem:[#allocation2 + $0x738] sm:$0xff]
    %v351 = vld [vmem:[#allocation2 + $0x740] sm:$0xff]
    %v352 = vld [vmem:[#allocation2 + $0x748] sm:$0xff]
    %v353 = vld [vmem:[#allocation2 + $0x750] sm:$0xff]
    %v354 = vld [vmem:[#allocation2 + $0x758] sm:$0xff]
    %v355 = vld [vmem:[#allocation2 + $0x760] sm:$0xff]
    %v356 = vld [vmem:[#allocation2 + $0x768] sm:$0xff]
    %v357 = vld [vmem:[#allocation2 + $0x770] sm:$0xff]
    %v358 = vld [vmem:[#allocation2 + $0x778] sm:$0xff]
    %v359 = vld [vmem:[#allocation2 + $0x780] sm:$0xff]
    %v360 = vld [vmem:[#allocation2 + $0x788] sm:$0xff]
    %v361 = vld [vmem:[#allocation2 + $0x790] sm:$0xff]
    %v362 = vld [vmem:[#allocation2 + $0x798] sm:$0xff]
    %v363 = vld [vmem:[#allocation2 + $0x7a0] sm:$0xff]
    %v364 = vld [vmem:[#allocation2 + $0x7a8] sm:$0xff]
    %v365 = vld [vmem:[#allocation2 + $0x7b0] sm:$0xff]
    %v366 = vld [vmem:[#allocation2 + $0x7b8] sm:$0xff]
    %v367 = vld [vmem:[#allocation2 + $0x7c0] sm:$0xff]
    %v368 = vld [vmem:[#allocation2 + $0x7c8] sm:$0xff]
    %v369 = vld [vmem:[#allocation2 + $0x7d0] sm:$0xff]
    %v370 = vld [vmem:[#allocation2 + $0x7d8] sm:$0xff]
    %v371 = vld [vmem:[#allocation2 + $0x7e0] sm:$0xff]
    %v372 = vld [vmem:[#allocation2 + $0x7e8] sm:$0xff]
    %v373 = vld [vmem:[#allocation2 + $0x7f0] sm:$0xff]
    %v374 = vld [vmem:[#allocation2 + $0x7f8] sm:$0xff]
    %v375 = vld [vmem:[#allocation2 + $0x800] sm:$0xff]
    %v376 = vld [vmem:[#allocation2 + $0x808] sm:$0xff]
    %v377 = vld [vmem:[#allocation2 + $0x810] sm:$0xff]
    %v378 = vld [vmem:[#allocation2 + $0x818] sm:$0xff]
    %v379 = vld [vmem:[#allocation2 + $0x820] sm:$0xff]
    %v380 = vld [vmem:[#allocation2 + $0x828] sm:$0xff]
    %v381 = vld [vmem:[#allocation2 + $0x830] sm:$0xff]
    %v382 = vld [vmem:[#allocation2 + $0x838] sm:$0xff]
    %v383 = vld [vmem:[#allocation2 + $0x840] sm:$0xff]
    %v384 = vld [vmem:[#allocation2 + $0x848] sm:$0xff]
    %v385 = vld [vmem:[#allocation2 + $0x850] sm:$0xff]
    %v386 = vld [vmem:[#allocation2 + $0x858] sm:$0xff]
    %v387 = vld [vmem:[#allocation2 + $0x860] sm:$0xff]
    %v388 = vld [vmem:[#allocation2 + $0x868] sm:$0xff]
    %v389 = vld [vmem:[#allocation2 + $0x870] sm:$0xff]
    %v390 = vld [vmem:[#allocation2 + $0x878] sm:$0xff]
    %v391 = vld [vmem:[#allocation2 + $0x880] sm:$0xff]
    %v392 = vld [vmem:[#allocation2 + $0x888] sm:$0xff]
    %v393 = vld [vmem:[#allocation2 + $0x890] sm:$0xff]
    %v394 = vld [vmem:[#allocation2 + $0x898] sm:$0xff]
    %v395 = vld [vmem:[#allocation2 + $0x8a0] sm:$0xff]
    %v396 = vld [vmem:[#allocation2 + $0x8a8] sm:$0xff]
    %v397 = vld [vmem:[#allocation2 + $0x8b0] sm:$0xff]
    %v398 = vld [vmem:[#allocation2 + $0x8b8] sm:$0xff]
    %v399 = vld [vmem:[#allocation2 + $0x8c0] sm:$0xff]
    %v400 = vld [vmem:[#allocation2 + $0x8c8] sm:$0xff]
    %v401 = vld [vmem:[#allocation2 + $0x8d0] sm:$0xff]
    %v402 = vld [vmem:[#allocation2 + $0x8d8] sm:$0xff]
    %v403 = vld [vmem:[#allocation2 + $0x8e0] sm:$0xff]
    %v404 = vld [vmem:[#allocation2 + $0x8e8] sm:$0xff]
    %v405 = vld [vmem:[#allocation2 + $0x8f0] sm:$0xff]
    %v406 = vld [vmem:[#allocation2 + $0x8f8] sm:$0xff]
    %v407 = vld [vmem:[#allocation2 + $0x900] sm:$0xff]
    %v408 = vld [vmem:[#allocation2 + $0x908] sm:$0xff]
    %v409 = vld [vmem:[#allocation2 + $0x910] sm:$0xff]
    %v410 = vld [vmem:[#allocation2 + $0x918] sm:$0xff]
    %v411 = vld [vmem:[#allocation2 + $0x920] sm:$0xff]
    %v412 = vld [vmem:[#allocation2 + $0x928] sm:$0xff]
    %v413 = vld [vmem:[#allocation2 + $0x930] sm:$0xff]
    %v414 = vld [vmem:[#allocation2 + $0x938] sm:$0xff]
    %v415 = vld [vmem:[#allocation2 + $0x940] sm:$0xff]
    %v416 = vld [vmem:[#allocation2 + $0x948] sm:$0xff]
    %v417 = vld [vmem:[#allocation2 + $0x950] sm:$0xff]
    %v418 = vld [vmem:[#allocation2 + $0x958] sm:$0xff]
    %v419 = vld [vmem:[#allocation2 + $0x960] sm:$0xff]
    %v420 = vld [vmem:[#allocation2 + $0x968] sm:$0xff]
    %v421 = vld [vmem:[#allocation2 + $0x970] sm:$0xff]
    %v422 = vld [vmem:[#allocation2 + $0x978] sm:$0xff]
    %v423 = vld [vmem:[#allocation2 + $0x980] sm:$0xff]
    %v424 = vld [vmem:[#allocation2 + $0x988] sm:$0xff]
    %v425 = vld [vmem:[#allocation2 + $0x990] sm:$0xff]
    %v426 = vld [vmem:[#allocation2 + $0x998] sm:$0xff]
    %v427 = vld [vmem:[#allocation2 + $0x9a0] sm:$0xff]
    %v428 = vld [vmem:[#allocation2 + $0x9a8] sm:$0xff]
    %v429 = vld [vmem:[#allocation2 + $0x9b0] sm:$0xff]
    %v430 = vld [vmem:[#allocation2 + $0x9b8] sm:$0xff]
    %v431 = vld [vmem:[#allocation2 + $0x9c0] sm:$0xff]
    %v432 = vld [vmem:[#allocation2 + $0x9c8] sm:$0xff]
    %v433 = vld [vmem:[#allocation2 + $0x9d0] sm:$0xff]
    %v434 = vld [vmem:[#allocation2 + $0x9d8] sm:$0xff]
    %v435 = vld [vmem:[#allocation2 + $0x9e0] sm:$0xff]
    %v436 = vld [vmem:[#allocation2 + $0x9e8] sm:$0xff]
    %v437 = vld [vmem:[#allocation2 + $0x9f0] sm:$0xff]
    %v438 = vld [vmem:[#allocation2 + $0x9f8] sm:$0xff]
    %v439 = vld [vmem:[#allocation2 + $0xa00] sm:$0xff]
    %v440 = vld [vmem:[#allocation2 + $0xa08] sm:$0xff]
    %v441 = vld [vmem:[#allocation2 + $0xa10] sm:$0xff]
    %v442 = vld [vmem:[#allocation2 + $0xa18] sm:$0xff]
    %v443 = vld [vmem:[#allocation2 + $0xa20] sm:$0xff]
    %v444 = vld [vmem:[#allocation2 + $0xa28] sm:$0xff]
    %v445 = vld [vmem:[#allocation2 + $0xa30] sm:$0xff]
    %v446 = vld [vmem:[#allocation2 + $0xa38] sm:$0xff]
    %v447 = vld [vmem:[#allocation2 + $0xa40] sm:$0xff]
    %v448 = vld [vmem:[#allocation2 + $0xa48] sm:$0xff]
    %v449 = vld [vmem:[#allocation2 + $0xa50] sm:$0xff]
    %v450 = vld [vmem:[#allocation2 + $0xa58] sm:$0xff]
    %v451 = vld [vmem:[#allocation2 + $0xa60] sm:$0xff]
    %v452 = vld [vmem:[#allocation2 + $0xa68] sm:$0xff]
    %v453 = vld [vmem:[#allocation2 + $0xa70] sm:$0xff]
    %v454 = vld [vmem:[#allocation2 + $0xa78] sm:$0xff]
    %v455 = vld [vmem:[#allocation2 + $0xa80] sm:$0xff]
    %v456 = vld [vmem:[#allocation2 + $0xa88] sm:$0xff]
    %v457 = vld [vmem:[#allocation2 + $0xa90] sm:$0xff]
    %v458 = vld [vmem:[#allocation2 + $0xa98] sm:$0xff]
    %v459 = vld [vmem:[#allocation2 + $0xaa0] sm:$0xff]
    %v460 = vld [vmem:[#allocation2 + $0xaa8] sm:$0xff]
    %v461 = vld [vmem:[#allocation2 + $0xab0] sm:$0xff]
    %v462 = vld [vmem:[#allocation2 + $0xab8] sm:$0xff]
    %v463 = vld [vmem:[#allocation2 + $0xac0] sm:$0xff]
    %v464 = vld [vmem:[#allocation2 + $0xac8] sm:$0xff]
    %v465 = vld [vmem:[#allocation2 + $0xad0] sm:$0xff]
    %v466 = vld [vmem:[#allocation2 + $0xad8] sm:$0xff]
    %v467 = vld [vmem:[#allocation2 + $0xae0] sm:$0xff]
    %v468 = vld [vmem:[#allocation2 + $0xae8] sm:$0xff]
    %v469 = vld [vmem:[#allocation2 + $0xaf0] sm:$0xff]
    %v470 = vld [vmem:[#allocation2 + $0xaf8] sm:$0xff]
    %v471 = vld [vmem:[#allocation2 + $0xb00] sm:$0xff]
    %v472 = vld [vmem:[#allocation2 + $0xb08] sm:$0xff]
    %v473 = vld [vmem:[#allocation2 + $0xb10] sm:$0xff]
    %v474 = vld [vmem:[#allocation2 + $0xb18] sm:$0xff]
    %v475 = vld [vmem:[#allocation2 + $0xb20] sm:$0xff]
    %v476 = vld [vmem:[#allocation2 + $0xb28] sm:$0xff]
    %v477 = vld [vmem:[#allocation2 + $0xb30] sm:$0xff]
    %v478 = vld [vmem:[#allocation2 + $0xb38] sm:$0xff]
    %v479 = vld [vmem:[#allocation2 + $0xb40] sm:$0xff]
    %v480 = vld [vmem:[#allocation2 + $0xb48] sm:$0xff]
    %v481 = vld [vmem:[#allocation2 + $0xb50] sm:$0xff]
    %v482 = vld [vmem:[#allocation2 + $0xb58] sm:$0xff]
    %v483 = vld [vmem:[#allocation2 + $0xb60] sm:$0xff]
    %v484 = vld [vmem:[#allocation2 + $0xb68] sm:$0xff]
    %v485 = vld [vmem:[#allocation2 + $0xb70] sm:$0xff]
    %v486 = vld [vmem:[#allocation2 + $0xb78] sm:$0xff]
    %v487 = vld [vmem:[#allocation2 + $0xb80] sm:$0xff]
    %v488 = vld [vmem:[#allocation2 + $0xb88] sm:$0xff]
    %v489 = vld [vmem:[#allocation2 + $0xb90] sm:$0xff]
    %v490 = vld [vmem:[#allocation2 + $0xb98] sm:$0xff]
    %v491 = vld [vmem:[#allocation2 + $0xba0] sm:$0xff]
    %v492 = vld [vmem:[#allocation2 + $0xba8] sm:$0xff]
    %v493 = vld [vmem:[#allocation2 + $0xbb0] sm:$0xff]
    %v494 = vld [vmem:[#allocation2 + $0xbb8] sm:$0xff]
    %v495 = vld [vmem:[#allocation2 + $0xbc0] sm:$0xff]
    %v496 = vld [vmem:[#allocation2 + $0xbc8] sm:$0xff]
    %v497 = vld [vmem:[#allocation2 + $0xbd0] sm:$0xff]
    %v498 = vld [vmem:[#allocation2 + $0xbd8] sm:$0xff]
    %v499 = vld [vmem:[#allocation2 + $0xbe0] sm:$0xff]
    %v500 = vld [vmem:[#allocation2 + $0xbe8] sm:$0xff]
    %v501 = vld [vmem:[#allocation2 + $0xbf0] sm:$0xff]
    %v502 = vld [vmem:[#allocation2 + $0xbf8] sm:$0xff]
    %v503 = vld [vmem:[#allocation2 + $0xc00] sm:$0xff]
    %v504 = vld [vmem:[#allocation2 + $0xc08] sm:$0xff]
    %v505 = vld [vmem:[#allocation2 + $0xc10] sm:$0xff]
    %v506 = vld [vmem:[#allocation2 + $0xc18] sm:$0xff]
    %v507 = vld [vmem:[#allocation2 + $0xc20] sm:$0xff]
    %v508 = vld [vmem:[#allocation2 + $0xc28] sm:$0xff]
    %v509 = vld [vmem:[#allocation2 + $0xc30] sm:$0xff]
    %v510 = vld [vmem:[#allocation2 + $0xc38] sm:$0xff]
    %v511 = vld [vmem:[#allocation5] sm:$0xff]
    %v513 = vlaneseq
    %v514 = vshrl.u32 %v513, 7
    %v515 = vsub.s32 0, %v514
    %v516 = vrot.slane %v511, %v515
    %v517 = vlaneseq
    %v518 = vshrl.u32 %v517, 7
    %v519 = vsub.s32 1, %v518
    %v520 = vrot.slane %v511, %v519
    %v521 = vlaneseq
    %v522 = vshrl.u32 %v521, 7
    %v523 = vsub.s32 2, %v522
    %v524 = vrot.slane %v511, %v523
    %v525 = vlaneseq
    %v526 = vshrl.u32 %v525, 7
    %v527 = vsub.s32 3, %v526
    %v528 = vrot.slane %v511, %v527
    %v529 = vlaneseq
    %v530 = vshrl.u32 %v529, 7
    %v531 = vsub.s32 4, %v530
    %v532 = vrot.slane %v511, %v531
    %v533 = vlaneseq
    %v534 = vshrl.u32 %v533, 7
    %v535 = vsub.s32 5, %v534
    %v536 = vrot.slane %v511, %v535
    %v537 = vlaneseq
    %v538 = vshrl.u32 %v537, 7
    %v539 = vsub.s32 6, %v538
    %v540 = vrot.slane %v511, %v539
    %v541 = vlaneseq
    %v542 = vshrl.u32 %v541, 7
    %v543 = vsub.s32 7, %v542
    %v544 = vrot.slane %v511, %v543
    %v945 = vunpack.c.l.b16 %v119
    %v946 = vunpack.c.h.b16 %v119
    %v947 = vunpack.c.l.b16 %v120
    %v948 = vunpack.c.h.b16 %v120
    %v949 = vunpack.c.l.b16 %v121
    %v950 = vunpack.c.h.b16 %v121
    %v951 = vunpack.c.l.b16 %v122
    %v952 = vunpack.c.h.b16 %v122
    %v953 = vunpack.c.l.b16 %v123
    %v954 = vunpack.c.h.b16 %v123
    %v955 = vunpack.c.l.b16 %v124
    %v956 = vunpack.c.h.b16 %v124
    %v957 = vunpack.c.l.b16 %v125
    %v958 = vunpack.c.h.b16 %v125
    %v959 = vunpack.c.l.b16 %v126
    %v960 = vunpack.c.h.b16 %v126
    %v961 = vunpack.c.l.b16 %v127
    %v962 = vunpack.c.h.b16 %v127
    %v963 = vunpack.c.l.b16 %v128
    %v964 = vunpack.c.h.b16 %v128
    %v965 = vunpack.c.l.b16 %v129
    %v966 = vunpack.c.h.b16 %v129
    %v967 = vunpack.c.l.b16 %v130
    %v968 = vunpack.c.h.b16 %v130
    %v969 = vunpack.c.l.b16 %v131
    %v970 = vunpack.c.h.b16 %v131
    %v971 = vunpack.c.l.b16 %v132
    %v972 = vunpack.c.h.b16 %v132
    %v973 = vunpack.c.l.b16 %v133
    %v974 = vunpack.c.h.b16 %v133
    %v975 = vunpack.c.l.b16 %v134
    %v976 = vunpack.c.h.b16 %v134
    %v977 = vunpack.c.l.b16 %v135
    %v978 = vunpack.c.h.b16 %v135
    %v979 = vunpack.c.l.b16 %v136
    %v980 = vunpack.c.h.b16 %v136
    %v981 = vunpack.c.l.b16 %v137
    %v982 = vunpack.c.h.b16 %v137
    %v983 = vunpack.c.l.b16 %v138
    %v984 = vunpack.c.h.b16 %v138
    %v985 = vunpack.c.l.b16 %v139
    %v986 = vunpack.c.h.b16 %v139
    %v987 = vunpack.c.l.b16 %v140
    %v988 = vunpack.c.h.b16 %v140
    %v989 = vunpack.c.l.b16 %v141
    %v990 = vunpack.c.h.b16 %v141
    %v991 = vunpack.c.l.b16 %v142
    %v992 = vunpack.c.h.b16 %v142
    %v993 = vunpack.c.l.b16 %v143
    %v994 = vunpack.c.h.b16 %v143
    %v995 = vunpack.c.l.b16 %v144
    %v996 = vunpack.c.h.b16 %v144
    %v997 = vunpack.c.l.b16 %v145
    %v998 = vunpack.c.h.b16 %v145
    %v999 = vunpack.c.l.b16 %v146
    %v1000 = vunpack.c.h.b16 %v146
    %v1001 = vunpack.c.l.b16 %v147
    %v1002 = vunpack.c.h.b16 %v147
    %v1003 = vunpack.c.l.b16 %v148
    %v1004 = vunpack.c.h.b16 %v148
    %v1005 = vunpack.c.l.b16 %v149
    %v1006 = vunpack.c.h.b16 %v149
    %v1007 = vunpack.c.l.b16 %v150
    %v1008 = vunpack.c.h.b16 %v150
    %v1009 = vunpack.c.l.b16 %v151
    %v1010 = vunpack.c.h.b16 %v151
    %v1011 = vunpack.c.l.b16 %v152
    %v1012 = vunpack.c.h.b16 %v152
    %v1013 = vunpack.c.l.b16 %v153
    %v1014 = vunpack.c.h.b16 %v153
    %v1015 = vunpack.c.l.b16 %v154
    %v1016 = vunpack.c.h.b16 %v154
    %v1017 = vunpack.c.l.b16 %v155
    %v1018 = vunpack.c.h.b16 %v155
    %v1019 = vunpack.c.l.b16 %v156
    %v1020 = vunpack.c.h.b16 %v156
    %v1021 = vunpack.c.l.b16 %v157
    %v1022 = vunpack.c.h.b16 %v157
    %v1023 = vunpack.c.l.b16 %v158
    %v1024 = vunpack.c.h.b16 %v158
    %v1025 = vunpack.c.l.b16 %v159
    %v1026 = vunpack.c.h.b16 %v159
    %v1027 = vunpack.c.l.b16 %v160
    %v1028 = vunpack.c.h.b16 %v160
    %v1029 = vunpack.c.l.b16 %v161
    %v1030 = vunpack.c.h.b16 %v161
    %v1031 = vunpack.c.l.b16 %v162
    %v1032 = vunpack.c.h.b16 %v162
    %v1033 = vunpack.c.l.b16 %v163
    %v1034 = vunpack.c.h.b16 %v163
    %v1035 = vunpack.c.l.b16 %v164
    %v1036 = vunpack.c.h.b16 %v164
    %v1037 = vunpack.c.l.b16 %v165
    %v1038 = vunpack.c.h.b16 %v165
    %v1039 = vunpack.c.l.b16 %v166
    %v1040 = vunpack.c.h.b16 %v166
    %v1041 = vunpack.c.l.b16 %v167
    %v1042 = vunpack.c.h.b16 %v167
    %v1043 = vunpack.c.l.b16 %v168
    %v1044 = vunpack.c.h.b16 %v168
    %v1045 = vunpack.c.l.b16 %v169
    %v1046 = vunpack.c.h.b16 %v169
    %v1047 = vunpack.c.l.b16 %v170
    %v1048 = vunpack.c.h.b16 %v170
    %v1049 = vunpack.c.l.b16 %v171
    %v1050 = vunpack.c.h.b16 %v171
    %v1051 = vunpack.c.l.b16 %v172
    %v1052 = vunpack.c.h.b16 %v172
    %v1053 = vunpack.c.l.b16 %v173
    %v1054 = vunpack.c.h.b16 %v173
    %v1055 = vunpack.c.l.b16 %v174
    %v1056 = vunpack.c.h.b16 %v174
    %v1057 = vunpack.c.l.b16 %v175
    %v1058 = vunpack.c.h.b16 %v175
    %v1059 = vunpack.c.l.b16 %v176
    %v1060 = vunpack.c.h.b16 %v176
    %v1061 = vunpack.c.l.b16 %v177
    %v1062 = vunpack.c.h.b16 %v177
    %v1063 = vunpack.c.l.b16 %v178
    %v1064 = vunpack.c.h.b16 %v178
    %v1065 = vunpack.c.l.b16 %v179
    %v1066 = vunpack.c.h.b16 %v179
    %v1067 = vunpack.c.l.b16 %v180
    %v1068 = vunpack.c.h.b16 %v180
    %v1069 = vunpack.c.l.b16 %v181
    %v1070 = vunpack.c.h.b16 %v181
    %v1071 = vunpack.c.l.b16 %v182
    %v1072 = vunpack.c.h.b16 %v182
    %v1073 = vunpack.c.l.b16 %v183
    %v1074 = vunpack.c.h.b16 %v183
    %v1075 = vunpack.c.l.b16 %v184
    %v1076 = vunpack.c.h.b16 %v184
    %v1077 = vunpack.c.l.b16 %v185
    %v1078 = vunpack.c.h.b16 %v185
    %v1079 = vunpack.c.l.b16 %v186
    %v1080 = vunpack.c.h.b16 %v186
    %v1081 = vunpack.c.l.b16 %v187
    %v1082 = vunpack.c.h.b16 %v187
    %v1083 = vunpack.c.l.b16 %v188
    %v1084 = vunpack.c.h.b16 %v188
    %v1085 = vunpack.c.l.b16 %v189
    %v1086 = vunpack.c.h.b16 %v189
    %v1087 = vunpack.c.l.b16 %v190
    %v1088 = vunpack.c.h.b16 %v190
    %v1089 = vunpack.c.l.b16 %v191
    %v1090 = vunpack.c.h.b16 %v191
    %v1091 = vunpack.c.l.b16 %v192
    %v1092 = vunpack.c.h.b16 %v192
    %v1093 = vunpack.c.l.b16 %v193
    %v1094 = vunpack.c.h.b16 %v193
    %v1095 = vunpack.c.l.b16 %v194
    %v1096 = vunpack.c.h.b16 %v194
    %v1097 = vunpack.c.l.b16 %v195
    %v1098 = vunpack.c.h.b16 %v195
    %v1099 = vunpack.c.l.b16 %v196
    %v1100 = vunpack.c.h.b16 %v196
    %v1101 = vunpack.c.l.b16 %v197
    %v1102 = vunpack.c.h.b16 %v197
    %v1103 = vunpack.c.l.b16 %v198
    %v1104 = vunpack.c.h.b16 %v198
    %v1105 = vunpack.c.l.b16 %v199
    %v1106 = vunpack.c.h.b16 %v199
    %v1107 = vunpack.c.l.b16 %v200
    %v1108 = vunpack.c.h.b16 %v200
    %v1109 = vunpack.c.l.b16 %v201
    %v1110 = vunpack.c.h.b16 %v201
    %v1111 = vunpack.c.l.b16 %v202
    %v1112 = vunpack.c.h.b16 %v202
    %v1113 = vunpack.c.l.b16 %v203
    %v1114 = vunpack.c.h.b16 %v203
    %v1115 = vunpack.c.l.b16 %v204
    %v1116 = vunpack.c.h.b16 %v204
    %v1117 = vunpack.c.l.b16 %v205
    %v1118 = vunpack.c.h.b16 %v205
    %v1119 = vunpack.c.l.b16 %v206
    %v1120 = vunpack.c.h.b16 %v206
    %v1121 = vunpack.c.l.b16 %v207
    %v1122 = vunpack.c.h.b16 %v207
    %v1123 = vunpack.c.l.b16 %v208
    %v1124 = vunpack.c.h.b16 %v208
    %v1125 = vunpack.c.l.b16 %v209
    %v1126 = vunpack.c.h.b16 %v209
    %v1127 = vunpack.c.l.b16 %v210
    %v1128 = vunpack.c.h.b16 %v210
    %v1129 = vunpack.c.l.b16 %v211
    %v1130 = vunpack.c.h.b16 %v211
    %v1131 = vunpack.c.l.b16 %v212
    %v1132 = vunpack.c.h.b16 %v212
    %v1133 = vunpack.c.l.b16 %v213
    %v1134 = vunpack.c.h.b16 %v213
    %v1135 = vunpack.c.l.b16 %v214
    %v1136 = vunpack.c.h.b16 %v214
    %v1137 = vunpack.c.l.b16 %v215
    %v1138 = vunpack.c.h.b16 %v215
    %v1139 = vunpack.c.l.b16 %v216
    %v1140 = vunpack.c.h.b16 %v216
    %v1141 = vunpack.c.l.b16 %v217
    %v1142 = vunpack.c.h.b16 %v217
    %v1143 = vunpack.c.l.b16 %v218
    %v1144 = vunpack.c.h.b16 %v218
    %v1145 = vunpack.c.l.b16 %v219
    %v1146 = vunpack.c.h.b16 %v219
    %v1147 = vunpack.c.l.b16 %v220
    %v1148 = vunpack.c.h.b16 %v220
    %v1149 = vunpack.c.l.b16 %v221
    %v1150 = vunpack.c.h.b16 %v221
    %v1151 = vunpack.c.l.b16 %v222
    %v1152 = vunpack.c.h.b16 %v222
    %v1153 = vunpack.c.l.b16 %v223
    %v1154 = vunpack.c.h.b16 %v223
    %v1155 = vunpack.c.l.b16 %v224
    %v1156 = vunpack.c.h.b16 %v224
    %v1157 = vunpack.c.l.b16 %v225
    %v1158 = vunpack.c.h.b16 %v225
    %v1159 = vunpack.c.l.b16 %v226
    %v1160 = vunpack.c.h.b16 %v226
    %v1161 = vunpack.c.l.b16 %v227
    %v1162 = vunpack.c.h.b16 %v227
    %v1163 = vunpack.c.l.b16 %v228
    %v1164 = vunpack.c.h.b16 %v228
    %v1165 = vunpack.c.l.b16 %v229
    %v1166 = vunpack.c.h.b16 %v229
    %v1167 = vunpack.c.l.b16 %v230
    %v1168 = vunpack.c.h.b16 %v230
    %v1169 = vunpack.c.l.b16 %v231
    %v1170 = vunpack.c.h.b16 %v231
    %v1171 = vunpack.c.l.b16 %v232
    %v1172 = vunpack.c.h.b16 %v232
    %v1173 = vunpack.c.l.b16 %v233
    %v1174 = vunpack.c.h.b16 %v233
    %v1175 = vunpack.c.l.b16 %v234
    %v1176 = vunpack.c.h.b16 %v234
    %v1177 = vunpack.c.l.b16 %v235
    %v1178 = vunpack.c.h.b16 %v235
    %v1179 = vunpack.c.l.b16 %v236
    %v1180 = vunpack.c.h.b16 %v236
    %v1181 = vunpack.c.l.b16 %v237
    %v1182 = vunpack.c.h.b16 %v237
    %v1183 = vunpack.c.l.b16 %v238
    %v1184 = vunpack.c.h.b16 %v238
    %v1185 = vunpack.c.l.b16 %v239
    %v1186 = vunpack.c.h.b16 %v239
    %v1187 = vunpack.c.l.b16 %v240
    %v1188 = vunpack.c.h.b16 %v240
    %v1189 = vunpack.c.l.b16 %v241
    %v1190 = vunpack.c.h.b16 %v241
    %v1191 = vunpack.c.l.b16 %v242
    %v1192 = vunpack.c.h.b16 %v242
    %v1193 = vunpack.c.l.b16 %v243
    %v1194 = vunpack.c.h.b16 %v243
    %v1195 = vunpack.c.l.b16 %v244
    %v1196 = vunpack.c.h.b16 %v244
    %v1197 = vunpack.c.l.b16 %v245
    %v1198 = vunpack.c.h.b16 %v245
    %v1199 = vunpack.c.l.b16 %v246
    %v1200 = vunpack.c.h.b16 %v246
    %v1201 = vunpack.c.l.b16 %v247
    %v1202 = vunpack.c.h.b16 %v247
    %v1203 = vunpack.c.l.b16 %v248
    %v1204 = vunpack.c.h.b16 %v248
    %v1205 = vunpack.c.l.b16 %v249
    %v1206 = vunpack.c.h.b16 %v249
    %v1207 = vunpack.c.l.b16 %v250
    %v1208 = vunpack.c.h.b16 %v250
    %v1209 = vunpack.c.l.b16 %v251
    %v1210 = vunpack.c.h.b16 %v251
    %v1211 = vunpack.c.l.b16 %v252
    %v1212 = vunpack.c.h.b16 %v252
    %v1213 = vunpack.c.l.b16 %v253
    %v1214 = vunpack.c.h.b16 %v253
    %v1215 = vunpack.c.l.b16 %v254
    %v1216 = vunpack.c.h.b16 %v254
    %v1217 = vunpack.c.l.b16 %v255
    %v1218 = vunpack.c.h.b16 %v255
    %v1219 = vunpack.c.l.b16 %v256
    %v1220 = vunpack.c.h.b16 %v256
    %v1221 = vunpack.c.l.b16 %v257
    %v1222 = vunpack.c.h.b16 %v257
    %v1223 = vunpack.c.l.b16 %v258
    %v1224 = vunpack.c.h.b16 %v258
    %v1225 = vunpack.c.l.b16 %v259
    %v1226 = vunpack.c.h.b16 %v259
    %v1227 = vunpack.c.l.b16 %v260
    %v1228 = vunpack.c.h.b16 %v260
    %v1229 = vunpack.c.l.b16 %v261
    %v1230 = vunpack.c.h.b16 %v261
    %v1231 = vunpack.c.l.b16 %v262
    %v1232 = vunpack.c.h.b16 %v262
    %v1233 = vunpack.c.l.b16 %v263
    %v1234 = vunpack.c.h.b16 %v263
    %v1235 = vunpack.c.l.b16 %v264
    %v1236 = vunpack.c.h.b16 %v264
    %v1237 = vunpack.c.l.b16 %v265
    %v1238 = vunpack.c.h.b16 %v265
    %v1239 = vunpack.c.l.b16 %v266
    %v1240 = vunpack.c.h.b16 %v266
    %v1241 = vunpack.c.l.b16 %v267
    %v1242 = vunpack.c.h.b16 %v267
    %v1243 = vunpack.c.l.b16 %v268
    %v1244 = vunpack.c.h.b16 %v268
    %v1245 = vunpack.c.l.b16 %v269
    %v1246 = vunpack.c.h.b16 %v269
    %v1247 = vunpack.c.l.b16 %v270
    %v1248 = vunpack.c.h.b16 %v270
    %v1249 = vunpack.c.l.b16 %v271
    %v1250 = vunpack.c.h.b16 %v271
    %v1251 = vunpack.c.l.b16 %v272
    %v1252 = vunpack.c.h.b16 %v272
    %v1253 = vunpack.c.l.b16 %v273
    %v1254 = vunpack.c.h.b16 %v273
    %v1255 = vunpack.c.l.b16 %v274
    %v1256 = vunpack.c.h.b16 %v274
    %v1257 = vunpack.c.l.b16 %v275
    %v1258 = vunpack.c.h.b16 %v275
    %v1259 = vunpack.c.l.b16 %v276
    %v1260 = vunpack.c.h.b16 %v276
    %v1261 = vunpack.c.l.b16 %v277
    %v1262 = vunpack.c.h.b16 %v277
    %v1263 = vunpack.c.l.b16 %v278
    %v1264 = vunpack.c.h.b16 %v278
    %v1265 = vunpack.c.l.b16 %v279
    %v1266 = vunpack.c.h.b16 %v279
    %v1267 = vunpack.c.l.b16 %v280
    %v1268 = vunpack.c.h.b16 %v280
    %v1269 = vunpack.c.l.b16 %v281
    %v1270 = vunpack.c.h.b16 %v281
    %v1271 = vunpack.c.l.b16 %v282
    %v1272 = vunpack.c.h.b16 %v282
    %v1273 = vunpack.c.l.b16 %v283
    %v1274 = vunpack.c.h.b16 %v283
    %v1275 = vunpack.c.l.b16 %v284
    %v1276 = vunpack.c.h.b16 %v284
    %v1277 = vunpack.c.l.b16 %v285
    %v1278 = vunpack.c.h.b16 %v285
    %v1279 = vunpack.c.l.b16 %v286
    %v1280 = vunpack.c.h.b16 %v286
    %v1281 = vunpack.c.l.b16 %v287
    %v1282 = vunpack.c.h.b16 %v287
    %v1283 = vunpack.c.l.b16 %v288
    %v1284 = vunpack.c.h.b16 %v288
    %v1285 = vunpack.c.l.b16 %v289
    %v1286 = vunpack.c.h.b16 %v289
    %v1287 = vunpack.c.l.b16 %v290
    %v1288 = vunpack.c.h.b16 %v290
    %v1289 = vunpack.c.l.b16 %v291
    %v1290 = vunpack.c.h.b16 %v291
    %v1291 = vunpack.c.l.b16 %v292
    %v1292 = vunpack.c.h.b16 %v292
    %v1293 = vunpack.c.l.b16 %v293
    %v1294 = vunpack.c.h.b16 %v293
    %v1295 = vunpack.c.l.b16 %v294
    %v1296 = vunpack.c.h.b16 %v294
    %v1297 = vunpack.c.l.b16 %v295
    %v1298 = vunpack.c.h.b16 %v295
    %v1299 = vunpack.c.l.b16 %v296
    %v1300 = vunpack.c.h.b16 %v296
    %v1301 = vunpack.c.l.b16 %v297
    %v1302 = vunpack.c.h.b16 %v297
    %v1303 = vunpack.c.l.b16 %v298
    %v1304 = vunpack.c.h.b16 %v298
    %v1305 = vunpack.c.l.b16 %v299
    %v1306 = vunpack.c.h.b16 %v299
    %v1307 = vunpack.c.l.b16 %v300
    %v1308 = vunpack.c.h.b16 %v300
    %v1309 = vunpack.c.l.b16 %v301
    %v1310 = vunpack.c.h.b16 %v301
    %v1311 = vunpack.c.l.b16 %v302
    %v1312 = vunpack.c.h.b16 %v302
    %v1313 = vunpack.c.l.b16 %v303
    %v1314 = vunpack.c.h.b16 %v303
    %v1315 = vunpack.c.l.b16 %v304
    %v1316 = vunpack.c.h.b16 %v304
    %v1317 = vunpack.c.l.b16 %v305
    %v1318 = vunpack.c.h.b16 %v305
    %v1319 = vunpack.c.l.b16 %v306
    %v1320 = vunpack.c.h.b16 %v306
    %v1321 = vunpack.c.l.b16 %v307
    %v1322 = vunpack.c.h.b16 %v307
    %v1323 = vunpack.c.l.b16 %v308
    %v1324 = vunpack.c.h.b16 %v308
    %v1325 = vunpack.c.l.b16 %v309
    %v1326 = vunpack.c.h.b16 %v309
    %v1327 = vunpack.c.l.b16 %v310
    %v1328 = vunpack.c.h.b16 %v310
    %v1329 = vunpack.c.l.b16 %v311
    %v1330 = vunpack.c.h.b16 %v311
    %v1331 = vunpack.c.l.b16 %v312
    %v1332 = vunpack.c.h.b16 %v312
    %v1333 = vunpack.c.l.b16 %v313
    %v1334 = vunpack.c.h.b16 %v313
    %v1335 = vunpack.c.l.b16 %v314
    %v1336 = vunpack.c.h.b16 %v314
    %v1337 = vunpack.c.l.b16 %v315
    %v1338 = vunpack.c.h.b16 %v315
    %v1339 = vunpack.c.l.b16 %v316
    %v1340 = vunpack.c.h.b16 %v316
    %v1341 = vunpack.c.l.b16 %v317
    %v1342 = vunpack.c.h.b16 %v317
    %v1343 = vunpack.c.l.b16 %v318
    %v1344 = vunpack.c.h.b16 %v318
    %v1345 = vunpack.c.l.b16 %v319
    %v1346 = vunpack.c.h.b16 %v319
    %v1347 = vunpack.c.l.b16 %v320
    %v1348 = vunpack.c.h.b16 %v320
    %v1349 = vunpack.c.l.b16 %v321
    %v1350 = vunpack.c.h.b16 %v321
    %v1351 = vunpack.c.l.b16 %v322
    %v1352 = vunpack.c.h.b16 %v322
    %v1353 = vunpack.c.l.b16 %v323
    %v1354 = vunpack.c.h.b16 %v323
    %v1355 = vunpack.c.l.b16 %v324
    %v1356 = vunpack.c.h.b16 %v324
    %v1357 = vunpack.c.l.b16 %v325
    %v1358 = vunpack.c.h.b16 %v325
    %v1359 = vunpack.c.l.b16 %v326
    %v1360 = vunpack.c.h.b16 %v326
    %v1361 = vunpack.c.l.b16 %v327
    %v1362 = vunpack.c.h.b16 %v327
    %v1363 = vunpack.c.l.b16 %v328
    %v1364 = vunpack.c.h.b16 %v328
    %v1365 = vunpack.c.l.b16 %v329
    %v1366 = vunpack.c.h.b16 %v329
    %v1367 = vunpack.c.l.b16 %v330
    %v1368 = vunpack.c.h.b16 %v330
    %v1369 = vunpack.c.l.b16 %v331
    %v1370 = vunpack.c.h.b16 %v331
    %v1371 = vunpack.c.l.b16 %v332
    %v1372 = vunpack.c.h.b16 %v332
    %v1373 = vunpack.c.l.b16 %v333
    %v1374 = vunpack.c.h.b16 %v333
    %v1375 = vunpack.c.l.b16 %v334
    %v1376 = vunpack.c.h.b16 %v334
    %v1377 = vunpack.c.l.b16 %v335
    %v1378 = vunpack.c.h.b16 %v335
    %v1379 = vunpack.c.l.b16 %v336
    %v1380 = vunpack.c.h.b16 %v336
    %v1381 = vunpack.c.l.b16 %v337
    %v1382 = vunpack.c.h.b16 %v337
    %v1383 = vunpack.c.l.b16 %v338
    %v1384 = vunpack.c.h.b16 %v338
    %v1385 = vunpack.c.l.b16 %v339
    %v1386 = vunpack.c.h.b16 %v339
    %v1387 = vunpack.c.l.b16 %v340
    %v1388 = vunpack.c.h.b16 %v340
    %v1389 = vunpack.c.l.b16 %v341
    %v1390 = vunpack.c.h.b16 %v341
    %v1391 = vunpack.c.l.b16 %v342
    %v1392 = vunpack.c.h.b16 %v342
    %v1393 = vunpack.c.l.b16 %v343
    %v1394 = vunpack.c.h.b16 %v343
    %v1395 = vunpack.c.l.b16 %v344
    %v1396 = vunpack.c.h.b16 %v344
    %v1397 = vunpack.c.l.b16 %v345
    %v1398 = vunpack.c.h.b16 %v345
    %v1399 = vunpack.c.l.b16 %v346
    %v1400 = vunpack.c.h.b16 %v346
    %v1401 = vunpack.c.l.b16 %v347
    %v1402 = vunpack.c.h.b16 %v347
    %v1403 = vunpack.c.l.b16 %v348
    %v1404 = vunpack.c.h.b16 %v348
    %v1405 = vunpack.c.l.b16 %v349
    %v1406 = vunpack.c.h.b16 %v349
    %v1407 = vunpack.c.l.b16 %v350
    %v1408 = vunpack.c.h.b16 %v350
    %v1409 = vunpack.c.l.b16 %v351
    %v1410 = vunpack.c.h.b16 %v351
    %v1411 = vunpack.c.l.b16 %v352
    %v1412 = vunpack.c.h.b16 %v352
    %v1413 = vunpack.c.l.b16 %v353
    %v1414 = vunpack.c.h.b16 %v353
    %v1415 = vunpack.c.l.b16 %v354
    %v1416 = vunpack.c.h.b16 %v354
    %v1417 = vunpack.c.l.b16 %v355
    %v1418 = vunpack.c.h.b16 %v355
    %v1419 = vunpack.c.l.b16 %v356
    %v1420 = vunpack.c.h.b16 %v356
    %v1421 = vunpack.c.l.b16 %v357
    %v1422 = vunpack.c.h.b16 %v357
    %v1423 = vunpack.c.l.b16 %v358
    %v1424 = vunpack.c.h.b16 %v358
    %v1425 = vunpack.c.l.b16 %v359
    %v1426 = vunpack.c.h.b16 %v359
    %v1427 = vunpack.c.l.b16 %v360
    %v1428 = vunpack.c.h.b16 %v360
    %v1429 = vunpack.c.l.b16 %v361
    %v1430 = vunpack.c.h.b16 %v361
    %v1431 = vunpack.c.l.b16 %v362
    %v1432 = vunpack.c.h.b16 %v362
    %v1433 = vunpack.c.l.b16 %v363
    %v1434 = vunpack.c.h.b16 %v363
    %v1435 = vunpack.c.l.b16 %v364
    %v1436 = vunpack.c.h.b16 %v364
    %v1437 = vunpack.c.l.b16 %v365
    %v1438 = vunpack.c.h.b16 %v365
    %v1439 = vunpack.c.l.b16 %v366
    %v1440 = vunpack.c.h.b16 %v366
    %v1441 = vunpack.c.l.b16 %v367
    %v1442 = vunpack.c.h.b16 %v367
    %v1443 = vunpack.c.l.b16 %v368
    %v1444 = vunpack.c.h.b16 %v368
    %v1445 = vunpack.c.l.b16 %v369
    %v1446 = vunpack.c.h.b16 %v369
    %v1447 = vunpack.c.l.b16 %v370
    %v1448 = vunpack.c.h.b16 %v370
    %v1449 = vunpack.c.l.b16 %v371
    %v1450 = vunpack.c.h.b16 %v371
    %v1451 = vunpack.c.l.b16 %v372
    %v1452 = vunpack.c.h.b16 %v372
    %v1453 = vunpack.c.l.b16 %v373
    %v1454 = vunpack.c.h.b16 %v373
    %v1455 = vunpack.c.l.b16 %v374
    %v1456 = vunpack.c.h.b16 %v374
    %v1457 = vunpack.c.l.b16 %v375
    %v1458 = vunpack.c.h.b16 %v375
    %v1459 = vunpack.c.l.b16 %v376
    %v1460 = vunpack.c.h.b16 %v376
    %v1461 = vunpack.c.l.b16 %v377
    %v1462 = vunpack.c.h.b16 %v377
    %v1463 = vunpack.c.l.b16 %v378
    %v1464 = vunpack.c.h.b16 %v378
    %v1465 = vunpack.c.l.b16 %v379
    %v1466 = vunpack.c.h.b16 %v379
    %v1467 = vunpack.c.l.b16 %v380
    %v1468 = vunpack.c.h.b16 %v380
    %v1469 = vunpack.c.l.b16 %v381
    %v1470 = vunpack.c.h.b16 %v381
    %v1471 = vunpack.c.l.b16 %v382
    %v1472 = vunpack.c.h.b16 %v382
    %v1473 = vunpack.c.l.b16 %v383
    %v1474 = vunpack.c.h.b16 %v383
    %v1475 = vunpack.c.l.b16 %v384
    %v1476 = vunpack.c.h.b16 %v384
    %v1477 = vunpack.c.l.b16 %v385
    %v1478 = vunpack.c.h.b16 %v385
    %v1479 = vunpack.c.l.b16 %v386
    %v1480 = vunpack.c.h.b16 %v386
    %v1481 = vunpack.c.l.b16 %v387
    %v1482 = vunpack.c.h.b16 %v387
    %v1483 = vunpack.c.l.b16 %v388
    %v1484 = vunpack.c.h.b16 %v388
    %v1485 = vunpack.c.l.b16 %v389
    %v1486 = vunpack.c.h.b16 %v389
    %v1487 = vunpack.c.l.b16 %v390
    %v1488 = vunpack.c.h.b16 %v390
    %v1489 = vunpack.c.l.b16 %v391
    %v1490 = vunpack.c.h.b16 %v391
    %v1491 = vunpack.c.l.b16 %v392
    %v1492 = vunpack.c.h.b16 %v392
    %v1493 = vunpack.c.l.b16 %v393
    %v1494 = vunpack.c.h.b16 %v393
    %v1495 = vunpack.c.l.b16 %v394
    %v1496 = vunpack.c.h.b16 %v394
    %v1497 = vunpack.c.l.b16 %v395
    %v1498 = vunpack.c.h.b16 %v395
    %v1499 = vunpack.c.l.b16 %v396
    %v1500 = vunpack.c.h.b16 %v396
    %v1501 = vunpack.c.l.b16 %v397
    %v1502 = vunpack.c.h.b16 %v397
    %v1503 = vunpack.c.l.b16 %v398
    %v1504 = vunpack.c.h.b16 %v398
    %v1505 = vunpack.c.l.b16 %v399
    %v1506 = vunpack.c.h.b16 %v399
    %v1507 = vunpack.c.l.b16 %v400
    %v1508 = vunpack.c.h.b16 %v400
    %v1509 = vunpack.c.l.b16 %v401
    %v1510 = vunpack.c.h.b16 %v401
    %v1511 = vunpack.c.l.b16 %v402
    %v1512 = vunpack.c.h.b16 %v402
    %v1513 = vunpack.c.l.b16 %v403
    %v1514 = vunpack.c.h.b16 %v403
    %v1515 = vunpack.c.l.b16 %v404
    %v1516 = vunpack.c.h.b16 %v404
    %v1517 = vunpack.c.l.b16 %v405
    %v1518 = vunpack.c.h.b16 %v405
    %v1519 = vunpack.c.l.b16 %v406
    %v1520 = vunpack.c.h.b16 %v406
    %v1521 = vunpack.c.l.b16 %v407
    %v1522 = vunpack.c.h.b16 %v407
    %v1523 = vunpack.c.l.b16 %v408
    %v1524 = vunpack.c.h.b16 %v408
    %v1525 = vunpack.c.l.b16 %v409
    %v1526 = vunpack.c.h.b16 %v409
    %v1527 = vunpack.c.l.b16 %v410
    %v1528 = vunpack.c.h.b16 %v410
    %v1529 = vunpack.c.l.b16 %v411
    %v1530 = vunpack.c.h.b16 %v411
    %v1531 = vunpack.c.l.b16 %v412
    %v1532 = vunpack.c.h.b16 %v412
    %v1533 = vunpack.c.l.b16 %v413
    %v1534 = vunpack.c.h.b16 %v413
    %v1535 = vunpack.c.l.b16 %v414
    %v1536 = vunpack.c.h.b16 %v414
    %v1537 = vunpack.c.l.b16 %v415
    %v1538 = vunpack.c.h.b16 %v415
    %v1539 = vunpack.c.l.b16 %v416
    %v1540 = vunpack.c.h.b16 %v416
    %v1541 = vunpack.c.l.b16 %v417
    %v1542 = vunpack.c.h.b16 %v417
    %v1543 = vunpack.c.l.b16 %v418
    %v1544 = vunpack.c.h.b16 %v418
    %v1545 = vunpack.c.l.b16 %v419
    %v1546 = vunpack.c.h.b16 %v419
    %v1547 = vunpack.c.l.b16 %v420
    %v1548 = vunpack.c.h.b16 %v420
    %v1549 = vunpack.c.l.b16 %v421
    %v1550 = vunpack.c.h.b16 %v421
    %v1551 = vunpack.c.l.b16 %v422
    %v1552 = vunpack.c.h.b16 %v422
    %v1553 = vunpack.c.l.b16 %v423
    %v1554 = vunpack.c.h.b16 %v423
    %v1555 = vunpack.c.l.b16 %v424
    %v1556 = vunpack.c.h.b16 %v424
    %v1557 = vunpack.c.l.b16 %v425
    %v1558 = vunpack.c.h.b16 %v425
    %v1559 = vunpack.c.l.b16 %v426
    %v1560 = vunpack.c.h.b16 %v426
    %v1561 = vunpack.c.l.b16 %v427
    %v1562 = vunpack.c.h.b16 %v427
    %v1563 = vunpack.c.l.b16 %v428
    %v1564 = vunpack.c.h.b16 %v428
    %v1565 = vunpack.c.l.b16 %v429
    %v1566 = vunpack.c.h.b16 %v429
    %v1567 = vunpack.c.l.b16 %v430
    %v1568 = vunpack.c.h.b16 %v430
    %v1569 = vunpack.c.l.b16 %v431
    %v1570 = vunpack.c.h.b16 %v431
    %v1571 = vunpack.c.l.b16 %v432
    %v1572 = vunpack.c.h.b16 %v432
    %v1573 = vunpack.c.l.b16 %v433
    %v1574 = vunpack.c.h.b16 %v433
    %v1575 = vunpack.c.l.b16 %v434
    %v1576 = vunpack.c.h.b16 %v434
    %v1577 = vunpack.c.l.b16 %v435
    %v1578 = vunpack.c.h.b16 %v435
    %v1579 = vunpack.c.l.b16 %v436
    %v1580 = vunpack.c.h.b16 %v436
    %v1581 = vunpack.c.l.b16 %v437
    %v1582 = vunpack.c.h.b16 %v437
    %v1583 = vunpack.c.l.b16 %v438
    %v1584 = vunpack.c.h.b16 %v438
    %v1585 = vunpack.c.l.b16 %v439
    %v1586 = vunpack.c.h.b16 %v439
    %v1587 = vunpack.c.l.b16 %v440
    %v1588 = vunpack.c.h.b16 %v440
    %v1589 = vunpack.c.l.b16 %v441
    %v1590 = vunpack.c.h.b16 %v441
    %v1591 = vunpack.c.l.b16 %v442
    %v1592 = vunpack.c.h.b16 %v442
    %v1593 = vunpack.c.l.b16 %v443
    %v1594 = vunpack.c.h.b16 %v443
    %v1595 = vunpack.c.l.b16 %v444
    %v1596 = vunpack.c.h.b16 %v444
    %v1597 = vunpack.c.l.b16 %v445
    %v1598 = vunpack.c.h.b16 %v445
    %v1599 = vunpack.c.l.b16 %v446
    %v1600 = vunpack.c.h.b16 %v446
    %v1601 = vunpack.c.l.b16 %v447
    %v1602 = vunpack.c.h.b16 %v447
    %v1603 = vunpack.c.l.b16 %v448
    %v1604 = vunpack.c.h.b16 %v448
    %v1605 = vunpack.c.l.b16 %v449
    %v1606 = vunpack.c.h.b16 %v449
    %v1607 = vunpack.c.l.b16 %v450
    %v1608 = vunpack.c.h.b16 %v450
    %v1609 = vunpack.c.l.b16 %v451
    %v1610 = vunpack.c.h.b16 %v451
    %v1611 = vunpack.c.l.b16 %v452
    %v1612 = vunpack.c.h.b16 %v452
    %v1613 = vunpack.c.l.b16 %v453
    %v1614 = vunpack.c.h.b16 %v453
    %v1615 = vunpack.c.l.b16 %v454
    %v1616 = vunpack.c.h.b16 %v454
    %v1617 = vunpack.c.l.b16 %v455
    %v1618 = vunpack.c.h.b16 %v455
    %v1619 = vunpack.c.l.b16 %v456
    %v1620 = vunpack.c.h.b16 %v456
    %v1621 = vunpack.c.l.b16 %v457
    %v1622 = vunpack.c.h.b16 %v457
    %v1623 = vunpack.c.l.b16 %v458
    %v1624 = vunpack.c.h.b16 %v458
    %v1625 = vunpack.c.l.b16 %v459
    %v1626 = vunpack.c.h.b16 %v459
    %v1627 = vunpack.c.l.b16 %v460
    %v1628 = vunpack.c.h.b16 %v460
    %v1629 = vunpack.c.l.b16 %v461
    %v1630 = vunpack.c.h.b16 %v461
    %v1631 = vunpack.c.l.b16 %v462
    %v1632 = vunpack.c.h.b16 %v462
    %v1633 = vunpack.c.l.b16 %v463
    %v1634 = vunpack.c.h.b16 %v463
    %v1635 = vunpack.c.l.b16 %v464
    %v1636 = vunpack.c.h.b16 %v464
    %v1637 = vunpack.c.l.b16 %v465
    %v1638 = vunpack.c.h.b16 %v465
    %v1639 = vunpack.c.l.b16 %v466
    %v1640 = vunpack.c.h.b16 %v466
    %v1641 = vunpack.c.l.b16 %v467
    %v1642 = vunpack.c.h.b16 %v467
    %v1643 = vunpack.c.l.b16 %v468
    %v1644 = vunpack.c.h.b16 %v468
    %v1645 = vunpack.c.l.b16 %v469
    %v1646 = vunpack.c.h.b16 %v469
    %v1647 = vunpack.c.l.b16 %v470
    %v1648 = vunpack.c.h.b16 %v470
    %v1649 = vunpack.c.l.b16 %v471
    %v1650 = vunpack.c.h.b16 %v471
    %v1651 = vunpack.c.l.b16 %v472
    %v1652 = vunpack.c.h.b16 %v472
    %v1653 = vunpack.c.l.b16 %v473
    %v1654 = vunpack.c.h.b16 %v473
    %v1655 = vunpack.c.l.b16 %v474
    %v1656 = vunpack.c.h.b16 %v474
    %v1657 = vunpack.c.l.b16 %v475
    %v1658 = vunpack.c.h.b16 %v475
    %v1659 = vunpack.c.l.b16 %v476
    %v1660 = vunpack.c.h.b16 %v476
    %v1661 = vunpack.c.l.b16 %v477
    %v1662 = vunpack.c.h.b16 %v477
    %v1663 = vunpack.c.l.b16 %v478
    %v1664 = vunpack.c.h.b16 %v478
    %v1665 = vunpack.c.l.b16 %v479
    %v1666 = vunpack.c.h.b16 %v479
    %v1667 = vunpack.c.l.b16 %v480
    %v1668 = vunpack.c.h.b16 %v480
    %v1669 = vunpack.c.l.b16 %v481
    %v1670 = vunpack.c.h.b16 %v481
    %v1671 = vunpack.c.l.b16 %v482
    %v1672 = vunpack.c.h.b16 %v482
    %v1673 = vunpack.c.l.b16 %v483
    %v1674 = vunpack.c.h.b16 %v483
    %v1675 = vunpack.c.l.b16 %v484
    %v1676 = vunpack.c.h.b16 %v484
    %v1677 = vunpack.c.l.b16 %v485
    %v1678 = vunpack.c.h.b16 %v485
    %v1679 = vunpack.c.l.b16 %v486
    %v1680 = vunpack.c.h.b16 %v486
    %v1681 = vunpack.c.l.b16 %v487
    %v1682 = vunpack.c.h.b16 %v487
    %v1683 = vunpack.c.l.b16 %v488
    %v1684 = vunpack.c.h.b16 %v488
    %v1685 = vunpack.c.l.b16 %v489
    %v1686 = vunpack.c.h.b16 %v489
    %v1687 = vunpack.c.l.b16 %v490
    %v1688 = vunpack.c.h.b16 %v490
    %v1689 = vunpack.c.l.b16 %v491
    %v1690 = vunpack.c.h.b16 %v491
    %v1691 = vunpack.c.l.b16 %v492
    %v1692 = vunpack.c.h.b16 %v492
    %v1693 = vunpack.c.l.b16 %v493
    %v1694 = vunpack.c.h.b16 %v493
    %v1695 = vunpack.c.l.b16 %v494
    %v1696 = vunpack.c.h.b16 %v494
    %v1697 = vunpack.c.l.b16 %v495
    %v1698 = vunpack.c.h.b16 %v495
    %v1699 = vunpack.c.l.b16 %v496
    %v1700 = vunpack.c.h.b16 %v496
    %v1701 = vunpack.c.l.b16 %v497
    %v1702 = vunpack.c.h.b16 %v497
    %v1703 = vunpack.c.l.b16 %v498
    %v1704 = vunpack.c.h.b16 %v498
    %v1705 = vunpack.c.l.b16 %v499
    %v1706 = vunpack.c.h.b16 %v499
    %v1707 = vunpack.c.l.b16 %v500
    %v1708 = vunpack.c.h.b16 %v500
    %v1709 = vunpack.c.l.b16 %v501
    %v1710 = vunpack.c.h.b16 %v501
    %v1711 = vunpack.c.l.b16 %v502
    %v1712 = vunpack.c.h.b16 %v502
    %v1713 = vunpack.c.l.b16 %v503
    %v1714 = vunpack.c.h.b16 %v503
    %v1715 = vunpack.c.l.b16 %v504
    %v1716 = vunpack.c.h.b16 %v504
    %v1717 = vunpack.c.l.b16 %v505
    %v1718 = vunpack.c.h.b16 %v505
    %v1719 = vunpack.c.l.b16 %v506
    %v1720 = vunpack.c.h.b16 %v506
    %v1721 = vunpack.c.l.b16 %v507
    %v1722 = vunpack.c.h.b16 %v507
    %v1723 = vunpack.c.l.b16 %v508
    %v1724 = vunpack.c.h.b16 %v508
    %v1725 = vunpack.c.l.b16 %v509
    %v1726 = vunpack.c.h.b16 %v509
    %v1727 = vunpack.c.l.b16 %v510
    %v1728 = vunpack.c.h.b16 %v510
    %v1729 = vpack.c.b16 %v953, %v945
    %v1730 = vpack.c.b16 %v954, %v946
    %v1731 = vpack.c.b16 %v955, %v947
    %v1732 = vpack.c.b16 %v956, %v948
    %v1733 = vpack.c.b16 %v957, %v949
    %v1734 = vpack.c.b16 %v958, %v950
    %v1735 = vpack.c.b16 %v959, %v951
    %v1736 = vpack.c.b16 %v960, %v952
    %v1737 = vpack.c.b16 %v969, %v961
    %v1738 = vpack.c.b16 %v970, %v962
    %v1739 = vpack.c.b16 %v971, %v963
    %v1740 = vpack.c.b16 %v972, %v964
    %v1741 = vpack.c.b16 %v973, %v965
    %v1742 = vpack.c.b16 %v974, %v966
    %v1743 = vpack.c.b16 %v975, %v967
    %v1744 = vpack.c.b16 %v976, %v968
    %v1745 = vpack.c.b16 %v985, %v977
    %v1746 = vpack.c.b16 %v986, %v978
    %v1747 = vpack.c.b16 %v987, %v979
    %v1748 = vpack.c.b16 %v988, %v980
    %v1749 = vpack.c.b16 %v989, %v981
    %v1750 = vpack.c.b16 %v990, %v982
    %v1751 = vpack.c.b16 %v991, %v983
    %v1752 = vpack.c.b16 %v992, %v984
    %v1753 = vpack.c.b16 %v1001, %v993
    %v1754 = vpack.c.b16 %v1002, %v994
    %v1755 = vpack.c.b16 %v1003, %v995
    %v1756 = vpack.c.b16 %v1004, %v996
    %v1757 = vpack.c.b16 %v1005, %v997
    %v1758 = vpack.c.b16 %v1006, %v998
    %v1759 = vpack.c.b16 %v1007, %v999
    %v1760 = vpack.c.b16 %v1008, %v1000
    %v1761 = vpack.c.b16 %v1017, %v1009
    %v1762 = vpack.c.b16 %v1018, %v1010
    %v1763 = vpack.c.b16 %v1019, %v1011
    %v1764 = vpack.c.b16 %v1020, %v1012
    %v1765 = vpack.c.b16 %v1021, %v1013
    %v1766 = vpack.c.b16 %v1022, %v1014
    %v1767 = vpack.c.b16 %v1023, %v1015
    %v1768 = vpack.c.b16 %v1024, %v1016
    %v1769 = vpack.c.b16 %v1033, %v1025
    %v1770 = vpack.c.b16 %v1034, %v1026
    %v1771 = vpack.c.b16 %v1035, %v1027
    %v1772 = vpack.c.b16 %v1036, %v1028
    %v1773 = vpack.c.b16 %v1037, %v1029
    %v1774 = vpack.c.b16 %v1038, %v1030
    %v1775 = vpack.c.b16 %v1039, %v1031
    %v1776 = vpack.c.b16 %v1040, %v1032
    %v1777 = vpack.c.b16 %v1049, %v1041
    %v1778 = vpack.c.b16 %v1050, %v1042
    %v1779 = vpack.c.b16 %v1051, %v1043
    %v1780 = vpack.c.b16 %v1052, %v1044
    %v1781 = vpack.c.b16 %v1053, %v1045
    %v1782 = vpack.c.b16 %v1054, %v1046
    %v1783 = vpack.c.b16 %v1055, %v1047
    %v1784 = vpack.c.b16 %v1056, %v1048
    %v1785 = vpack.c.b16 %v1065, %v1057
    %v1786 = vpack.c.b16 %v1066, %v1058
    %v1787 = vpack.c.b16 %v1067, %v1059
    %v1788 = vpack.c.b16 %v1068, %v1060
    %v1789 = vpack.c.b16 %v1069, %v1061
    %v1790 = vpack.c.b16 %v1070, %v1062
    %v1791 = vpack.c.b16 %v1071, %v1063
    %v1792 = vpack.c.b16 %v1072, %v1064
    %v1793 = vpack.c.b16 %v1081, %v1073
    %v1794 = vpack.c.b16 %v1082, %v1074
    %v1795 = vpack.c.b16 %v1083, %v1075
    %v1796 = vpack.c.b16 %v1084, %v1076
    %v1797 = vpack.c.b16 %v1085, %v1077
    %v1798 = vpack.c.b16 %v1086, %v1078
    %v1799 = vpack.c.b16 %v1087, %v1079
    %v1800 = vpack.c.b16 %v1088, %v1080
    %v1801 = vpack.c.b16 %v1097, %v1089
    %v1802 = vpack.c.b16 %v1098, %v1090
    %v1803 = vpack.c.b16 %v1099, %v1091
    %v1804 = vpack.c.b16 %v1100, %v1092
    %v1805 = vpack.c.b16 %v1101, %v1093
    %v1806 = vpack.c.b16 %v1102, %v1094
    %v1807 = vpack.c.b16 %v1103, %v1095
    %v1808 = vpack.c.b16 %v1104, %v1096
    %v1809 = vpack.c.b16 %v1113, %v1105
    %v1810 = vpack.c.b16 %v1114, %v1106
    %v1811 = vpack.c.b16 %v1115, %v1107
    %v1812 = vpack.c.b16 %v1116, %v1108
    %v1813 = vpack.c.b16 %v1117, %v1109
    %v1814 = vpack.c.b16 %v1118, %v1110
    %v1815 = vpack.c.b16 %v1119, %v1111
    %v1816 = vpack.c.b16 %v1120, %v1112
    %v1817 = vpack.c.b16 %v1129, %v1121
    %v1818 = vpack.c.b16 %v1130, %v1122
    %v1819 = vpack.c.b16 %v1131, %v1123
    %v1820 = vpack.c.b16 %v1132, %v1124
    %v1821 = vpack.c.b16 %v1133, %v1125
    %v1822 = vpack.c.b16 %v1134, %v1126
    %v1823 = vpack.c.b16 %v1135, %v1127
    %v1824 = vpack.c.b16 %v1136, %v1128
    %v1825 = vpack.c.b16 %v1145, %v1137
    %v1826 = vpack.c.b16 %v1146, %v1138
    %v1827 = vpack.c.b16 %v1147, %v1139
    %v1828 = vpack.c.b16 %v1148, %v1140
    %v1829 = vpack.c.b16 %v1149, %v1141
    %v1830 = vpack.c.b16 %v1150, %v1142
    %v1831 = vpack.c.b16 %v1151, %v1143
    %v1832 = vpack.c.b16 %v1152, %v1144
    %v1833 = vpack.c.b16 %v1161, %v1153
    %v1834 = vpack.c.b16 %v1162, %v1154
    %v1835 = vpack.c.b16 %v1163, %v1155
    %v1836 = vpack.c.b16 %v1164, %v1156
    %v1837 = vpack.c.b16 %v1165, %v1157
    %v1838 = vpack.c.b16 %v1166, %v1158
    %v1839 = vpack.c.b16 %v1167, %v1159
    %v1840 = vpack.c.b16 %v1168, %v1160
    %v1841 = vpack.c.b16 %v1177, %v1169
    %v1842 = vpack.c.b16 %v1178, %v1170
    %v1843 = vpack.c.b16 %v1179, %v1171
    %v1844 = vpack.c.b16 %v1180, %v1172
    %v1845 = vpack.c.b16 %v1181, %v1173
    %v1846 = vpack.c.b16 %v1182, %v1174
    %v1847 = vpack.c.b16 %v1183, %v1175
    %v1848 = vpack.c.b16 %v1184, %v1176
    %v1849 = vpack.c.b16 %v1193, %v1185
    %v1850 = vpack.c.b16 %v1194, %v1186
    %v1851 = vpack.c.b16 %v1195, %v1187
    %v1852 = vpack.c.b16 %v1196, %v1188
    %v1853 = vpack.c.b16 %v1197, %v1189
    %v1854 = vpack.c.b16 %v1198, %v1190
    %v1855 = vpack.c.b16 %v1199, %v1191
    %v1856 = vpack.c.b16 %v1200, %v1192
    %v1857 = vpack.c.b16 %v1209, %v1201
    %v1858 = vpack.c.b16 %v1210, %v1202
    %v1859 = vpack.c.b16 %v1211, %v1203
    %v1860 = vpack.c.b16 %v1212, %v1204
    %v1861 = vpack.c.b16 %v1213, %v1205
    %v1862 = vpack.c.b16 %v1214, %v1206
    %v1863 = vpack.c.b16 %v1215, %v1207
    %v1864 = vpack.c.b16 %v1216, %v1208
    %v1865 = vpack.c.b16 %v1225, %v1217
    %v1866 = vpack.c.b16 %v1226, %v1218
    %v1867 = vpack.c.b16 %v1227, %v1219
    %v1868 = vpack.c.b16 %v1228, %v1220
    %v1869 = vpack.c.b16 %v1229, %v1221
    %v1870 = vpack.c.b16 %v1230, %v1222
    %v1871 = vpack.c.b16 %v1231, %v1223
    %v1872 = vpack.c.b16 %v1232, %v1224
    %v1873 = vpack.c.b16 %v1241, %v1233
    %v1874 = vpack.c.b16 %v1242, %v1234
    %v1875 = vpack.c.b16 %v1243, %v1235
    %v1876 = vpack.c.b16 %v1244, %v1236
    %v1877 = vpack.c.b16 %v1245, %v1237
    %v1878 = vpack.c.b16 %v1246, %v1238
    %v1879 = vpack.c.b16 %v1247, %v1239
    %v1880 = vpack.c.b16 %v1248, %v1240
    %v1881 = vpack.c.b16 %v1257, %v1249
    %v1882 = vpack.c.b16 %v1258, %v1250
    %v1883 = vpack.c.b16 %v1259, %v1251
    %v1884 = vpack.c.b16 %v1260, %v1252
    %v1885 = vpack.c.b16 %v1261, %v1253
    %v1886 = vpack.c.b16 %v1262, %v1254
    %v1887 = vpack.c.b16 %v1263, %v1255
    %v1888 = vpack.c.b16 %v1264, %v1256
    %v1889 = vpack.c.b16 %v1273, %v1265
    %v1890 = vpack.c.b16 %v1274, %v1266
    %v1891 = vpack.c.b16 %v1275, %v1267
    %v1892 = vpack.c.b16 %v1276, %v1268
    %v1893 = vpack.c.b16 %v1277, %v1269
    %v1894 = vpack.c.b16 %v1278, %v1270
    %v1895 = vpack.c.b16 %v1279, %v1271
    %v1896 = vpack.c.b16 %v1280, %v1272
    %v1897 = vpack.c.b16 %v1289, %v1281
    %v1898 = vpack.c.b16 %v1290, %v1282
    %v1899 = vpack.c.b16 %v1291, %v1283
    %v1900 = vpack.c.b16 %v1292, %v1284
    %v1901 = vpack.c.b16 %v1293, %v1285
    %v1902 = vpack.c.b16 %v1294, %v1286
    %v1903 = vpack.c.b16 %v1295, %v1287
    %v1904 = vpack.c.b16 %v1296, %v1288
    %v1905 = vpack.c.b16 %v1305, %v1297
    %v1906 = vpack.c.b16 %v1306, %v1298
    %v1907 = vpack.c.b16 %v1307, %v1299
    %v1908 = vpack.c.b16 %v1308, %v1300
    %v1909 = vpack.c.b16 %v1309, %v1301
    %v1910 = vpack.c.b16 %v1310, %v1302
    %v1911 = vpack.c.b16 %v1311, %v1303
    %v1912 = vpack.c.b16 %v1312, %v1304
    %v1913 = vpack.c.b16 %v1321, %v1313
    %v1914 = vpack.c.b16 %v1322, %v1314
    %v1915 = vpack.c.b16 %v1323, %v1315
    %v1916 = vpack.c.b16 %v1324, %v1316
    %v1917 = vpack.c.b16 %v1325, %v1317
    %v1918 = vpack.c.b16 %v1326, %v1318
    %v1919 = vpack.c.b16 %v1327, %v1319
    %v1920 = vpack.c.b16 %v1328, %v1320
    %v1921 = vpack.c.b16 %v1337, %v1329
    %v1922 = vpack.c.b16 %v1338, %v1330
    %v1923 = vpack.c.b16 %v1339, %v1331
    %v1924 = vpack.c.b16 %v1340, %v1332
    %v1925 = vpack.c.b16 %v1341, %v1333
    %v1926 = vpack.c.b16 %v1342, %v1334
    %v1927 = vpack.c.b16 %v1343, %v1335
    %v1928 = vpack.c.b16 %v1344, %v1336
    %v1929 = vpack.c.b16 %v1353, %v1345
    %v1930 = vpack.c.b16 %v1354, %v1346
    %v1931 = vpack.c.b16 %v1355, %v1347
    %v1932 = vpack.c.b16 %v1356, %v1348
    %v1933 = vpack.c.b16 %v1357, %v1349
    %v1934 = vpack.c.b16 %v1358, %v1350
    %v1935 = vpack.c.b16 %v1359, %v1351
    %v1936 = vpack.c.b16 %v1360, %v1352
    %v1937 = vpack.c.b16 %v1369, %v1361
    %v1938 = vpack.c.b16 %v1370, %v1362
    %v1939 = vpack.c.b16 %v1371, %v1363
    %v1940 = vpack.c.b16 %v1372, %v1364
    %v1941 = vpack.c.b16 %v1373, %v1365
    %v1942 = vpack.c.b16 %v1374, %v1366
    %v1943 = vpack.c.b16 %v1375, %v1367
    %v1944 = vpack.c.b16 %v1376, %v1368
    %v1945 = vpack.c.b16 %v1385, %v1377
    %v1946 = vpack.c.b16 %v1386, %v1378
    %v1947 = vpack.c.b16 %v1387, %v1379
    %v1948 = vpack.c.b16 %v1388, %v1380
    %v1949 = vpack.c.b16 %v1389, %v1381
    %v1950 = vpack.c.b16 %v1390, %v1382
    %v1951 = vpack.c.b16 %v1391, %v1383
    %v1952 = vpack.c.b16 %v1392, %v1384
    %v1953 = vpack.c.b16 %v1401, %v1393
    %v1954 = vpack.c.b16 %v1402, %v1394
    %v1955 = vpack.c.b16 %v1403, %v1395
    %v1956 = vpack.c.b16 %v1404, %v1396
    %v1957 = vpack.c.b16 %v1405, %v1397
    %v1958 = vpack.c.b16 %v1406, %v1398
    %v1959 = vpack.c.b16 %v1407, %v1399
    %v1960 = vpack.c.b16 %v1408, %v1400
    %v1961 = vpack.c.b16 %v1417, %v1409
    %v1962 = vpack.c.b16 %v1418, %v1410
    %v1963 = vpack.c.b16 %v1419, %v1411
    %v1964 = vpack.c.b16 %v1420, %v1412
    %v1965 = vpack.c.b16 %v1421, %v1413
    %v1966 = vpack.c.b16 %v1422, %v1414
    %v1967 = vpack.c.b16 %v1423, %v1415
    %v1968 = vpack.c.b16 %v1424, %v1416
    %v1969 = vpack.c.b16 %v1433, %v1425
    %v1970 = vpack.c.b16 %v1434, %v1426
    %v1971 = vpack.c.b16 %v1435, %v1427
    %v1972 = vpack.c.b16 %v1436, %v1428
    %v1973 = vpack.c.b16 %v1437, %v1429
    %v1974 = vpack.c.b16 %v1438, %v1430
    %v1975 = vpack.c.b16 %v1439, %v1431
    %v1976 = vpack.c.b16 %v1440, %v1432
    %v1977 = vpack.c.b16 %v1449, %v1441
    %v1978 = vpack.c.b16 %v1450, %v1442
    %v1979 = vpack.c.b16 %v1451, %v1443
    %v1980 = vpack.c.b16 %v1452, %v1444
    %v1981 = vpack.c.b16 %v1453, %v1445
    %v1982 = vpack.c.b16 %v1454, %v1446
    %v1983 = vpack.c.b16 %v1455, %v1447
    %v1984 = vpack.c.b16 %v1456, %v1448
    %v1985 = vpack.c.b16 %v1465, %v1457
    %v1986 = vpack.c.b16 %v1466, %v1458
    %v1987 = vpack.c.b16 %v1467, %v1459
    %v1988 = vpack.c.b16 %v1468, %v1460
    %v1989 = vpack.c.b16 %v1469, %v1461
    %v1990 = vpack.c.b16 %v1470, %v1462
    %v1991 = vpack.c.b16 %v1471, %v1463
    %v1992 = vpack.c.b16 %v1472, %v1464
    %v1993 = vpack.c.b16 %v1481, %v1473
    %v1994 = vpack.c.b16 %v1482, %v1474
    %v1995 = vpack.c.b16 %v1483, %v1475
    %v1996 = vpack.c.b16 %v1484, %v1476
    %v1997 = vpack.c.b16 %v1485, %v1477
    %v1998 = vpack.c.b16 %v1486, %v1478
    %v1999 = vpack.c.b16 %v1487, %v1479
    %v2000 = vpack.c.b16 %v1488, %v1480
    %v2001 = vpack.c.b16 %v1497, %v1489
    %v2002 = vpack.c.b16 %v1498, %v1490
    %v2003 = vpack.c.b16 %v1499, %v1491
    %v2004 = vpack.c.b16 %v1500, %v1492
    %v2005 = vpack.c.b16 %v1501, %v1493
    %v2006 = vpack.c.b16 %v1502, %v1494
    %v2007 = vpack.c.b16 %v1503, %v1495
    %v2008 = vpack.c.b16 %v1504, %v1496
    %v2009 = vpack.c.b16 %v1513, %v1505
    %v2010 = vpack.c.b16 %v1514, %v1506
    %v2011 = vpack.c.b16 %v1515, %v1507
    %v2012 = vpack.c.b16 %v1516, %v1508
    %v2013 = vpack.c.b16 %v1517, %v1509
    %v2014 = vpack.c.b16 %v1518, %v1510
    %v2015 = vpack.c.b16 %v1519, %v1511
    %v2016 = vpack.c.b16 %v1520, %v1512
    %v2017 = vpack.c.b16 %v1529, %v1521
    %v2018 = vpack.c.b16 %v1530, %v1522
    %v2019 = vpack.c.b16 %v1531, %v1523
    %v2020 = vpack.c.b16 %v1532, %v1524
    %v2021 = vpack.c.b16 %v1533, %v1525
    %v2022 = vpack.c.b16 %v1534, %v1526
    %v2023 = vpack.c.b16 %v1535, %v1527
    %v2024 = vpack.c.b16 %v1536, %v1528
    %v2025 = vpack.c.b16 %v1545, %v1537
    %v2026 = vpack.c.b16 %v1546, %v1538
    %v2027 = vpack.c.b16 %v1547, %v1539
    %v2028 = vpack.c.b16 %v1548, %v1540
    %v2029 = vpack.c.b16 %v1549, %v1541
    %v2030 = vpack.c.b16 %v1550, %v1542
    %v2031 = vpack.c.b16 %v1551, %v1543
    %v2032 = vpack.c.b16 %v1552, %v1544
    %v2033 = vpack.c.b16 %v1561, %v1553
    %v2034 = vpack.c.b16 %v1562, %v1554
    %v2035 = vpack.c.b16 %v1563, %v1555
    %v2036 = vpack.c.b16 %v1564, %v1556
    %v2037 = vpack.c.b16 %v1565, %v1557
    %v2038 = vpack.c.b16 %v1566, %v1558
    %v2039 = vpack.c.b16 %v1567, %v1559
    %v2040 = vpack.c.b16 %v1568, %v1560
    %v2041 = vpack.c.b16 %v1577, %v1569
    %v2042 = vpack.c.b16 %v1578, %v1570
    %v2043 = vpack.c.b16 %v1579, %v1571
    %v2044 = vpack.c.b16 %v1580, %v1572
    %v2045 = vpack.c.b16 %v1581, %v1573
    %v2046 = vpack.c.b16 %v1582, %v1574
    %v2047 = vpack.c.b16 %v1583, %v1575
    %v2048 = vpack.c.b16 %v1584, %v1576
    %v2049 = vpack.c.b16 %v1593, %v1585
    %v2050 = vpack.c.b16 %v1594, %v1586
    %v2051 = vpack.c.b16 %v1595, %v1587
    %v2052 = vpack.c.b16 %v1596, %v1588
    %v2053 = vpack.c.b16 %v1597, %v1589
    %v2054 = vpack.c.b16 %v1598, %v1590
    %v2055 = vpack.c.b16 %v1599, %v1591
    %v2056 = vpack.c.b16 %v1600, %v1592
    %v2057 = vpack.c.b16 %v1609, %v1601
    %v2058 = vpack.c.b16 %v1610, %v1602
    %v2059 = vpack.c.b16 %v1611, %v1603
    %v2060 = vpack.c.b16 %v1612, %v1604
    %v2061 = vpack.c.b16 %v1613, %v1605
    %v2062 = vpack.c.b16 %v1614, %v1606
    %v2063 = vpack.c.b16 %v1615, %v1607
    %v2064 = vpack.c.b16 %v1616, %v1608
    %v2065 = vpack.c.b16 %v1625, %v1617
    %v2066 = vpack.c.b16 %v1626, %v1618
    %v2067 = vpack.c.b16 %v1627, %v1619
    %v2068 = vpack.c.b16 %v1628, %v1620
    %v2069 = vpack.c.b16 %v1629, %v1621
    %v2070 = vpack.c.b16 %v1630, %v1622
    %v2071 = vpack.c.b16 %v1631, %v1623
    %v2072 = vpack.c.b16 %v1632, %v1624
    %v2073 = vpack.c.b16 %v1641, %v1633
    %v2074 = vpack.c.b16 %v1642, %v1634
    %v2075 = vpack.c.b16 %v1643, %v1635
    %v2076 = vpack.c.b16 %v1644, %v1636
    %v2077 = vpack.c.b16 %v1645, %v1637
    %v2078 = vpack.c.b16 %v1646, %v1638
    %v2079 = vpack.c.b16 %v1647, %v1639
    %v2080 = vpack.c.b16 %v1648, %v1640
    %v2081 = vpack.c.b16 %v1657, %v1649
    %v2082 = vpack.c.b16 %v1658, %v1650
    %v2083 = vpack.c.b16 %v1659, %v1651
    %v2084 = vpack.c.b16 %v1660, %v1652
    %v2085 = vpack.c.b16 %v1661, %v1653
    %v2086 = vpack.c.b16 %v1662, %v1654
    %v2087 = vpack.c.b16 %v1663, %v1655
    %v2088 = vpack.c.b16 %v1664, %v1656
    %v2089 = vpack.c.b16 %v1673, %v1665
    %v2090 = vpack.c.b16 %v1674, %v1666
    %v2091 = vpack.c.b16 %v1675, %v1667
    %v2092 = vpack.c.b16 %v1676, %v1668
    %v2093 = vpack.c.b16 %v1677, %v1669
    %v2094 = vpack.c.b16 %v1678, %v1670
    %v2095 = vpack.c.b16 %v1679, %v1671
    %v2096 = vpack.c.b16 %v1680, %v1672
    %v2097 = vpack.c.b16 %v1689, %v1681
    %v2098 = vpack.c.b16 %v1690, %v1682
    %v2099 = vpack.c.b16 %v1691, %v1683
    %v2100 = vpack.c.b16 %v1692, %v1684
    %v2101 = vpack.c.b16 %v1693, %v1685
    %v2102 = vpack.c.b16 %v1694, %v1686
    %v2103 = vpack.c.b16 %v1695, %v1687
    %v2104 = vpack.c.b16 %v1696, %v1688
    %v2105 = vpack.c.b16 %v1705, %v1697
    %v2106 = vpack.c.b16 %v1706, %v1698
    %v2107 = vpack.c.b16 %v1707, %v1699
    %v2108 = vpack.c.b16 %v1708, %v1700
    %v2109 = vpack.c.b16 %v1709, %v1701
    %v2110 = vpack.c.b16 %v1710, %v1702
    %v2111 = vpack.c.b16 %v1711, %v1703
    %v2112 = vpack.c.b16 %v1712, %v1704
    %v2113 = vpack.c.b16 %v1721, %v1713
    %v2114 = vpack.c.b16 %v1722, %v1714
    %v2115 = vpack.c.b16 %v1723, %v1715
    %v2116 = vpack.c.b16 %v1724, %v1716
    %v2117 = vpack.c.b16 %v1725, %v1717
    %v2118 = vpack.c.b16 %v1726, %v1718
    %v2119 = vpack.c.b16 %v1727, %v1719
    %v2120 = vpack.c.b16 %v1728, %v1720
    %vm2513 = vcmask 130048
    %v2515 = vsel %vm2513, %v118, 0
    %2517 = vmatprep.subr.bf16.mxu0 %v1730
    %2518 = vmatpush1.bf16.msra.mxu0 %v1729
    %2519 = vmatprep.subr.bf16.mxu0 %v1738
    %2520 = vmatpush1.bf16.msra.mxu0 %v1737
    %2521 = vmatprep.subr.bf16.mxu0 %v1746
    %2522 = vmatpush1.bf16.msra.mxu0 %v1745
    %2523 = vmatprep.subr.bf16.mxu0 %v1754
    %2524 = vmatpush1.bf16.msra.mxu0 %v1753
    %2525 = vmatprep.subr.bf16.mxu0 %v1762
    %2526 = vmatpush1.bf16.msra.mxu0 %v1761
    %2527 = vmatprep.subr.bf16.mxu0 %v1770
    %2528 = vmatpush1.bf16.msra.mxu0 %v1769
    %2529 = vmatprep.subr.bf16.mxu0 %v1778
    %2530 = vmatpush1.bf16.msra.mxu0 %v1777
    %2531 = vmatprep.subr.bf16.mxu0 %v1786
    %2532 = vmatpush1.bf16.msra.mxu0 %v1785
    %2533 = vmatprep.subr.bf16.mxu0 %v1794
    %2534 = vmatpush1.bf16.msra.mxu0 %v1793
    %2535 = vmatprep.subr.bf16.mxu0 %v1802
    %2536 = vmatpush1.bf16.msra.mxu0 %v1801
    %2537 = vmatprep.subr.bf16.mxu0 %v1810
    %2538 = vmatpush1.bf16.msra.mxu0 %v1809
    %2539 = vmatprep.subr.bf16.mxu0 %v1818
    %2540 = vmatpush1.bf16.msra.mxu0 %v1817
    %2541 = vmatprep.subr.bf16.mxu0 %v1826
    %2542 = vmatpush1.bf16.msra.mxu0 %v1825
    %2543 = vmatprep.subr.bf16.mxu0 %v1834
    %2544 = vmatpush1.bf16.msra.mxu0 %v1833
    %2545 = vmatprep.subr.bf16.mxu0 %v1842
    %2546 = vmatpush1.bf16.msra.mxu0 %v1841
    %2547 = vmatprep.subr.bf16.mxu0 %v1850
    %2548 = vmatpush1.bf16.msra.mxu0 %v1849
    %2549 = vmatprep.mubr.bf16.mxu0 %v113
    %2550 = vmatmul.mubr.bf16.gmra.mrb[0].mxu0 %v112
    %v2551 = vpop.f32.mrb[0].mxu0
    %v2552 = vadd.f32 %v516, %v2551
    %v2553 = vpop.f32.mrb[0].mxu0
    %v2554 = vadd.f32 %v520, %v2553
    %v2555 = vpop.f32.mrb[0].mxu0
    %v2556 = vpop.f32.mrb[0].mxu0
    %2557 = vdwg.mxu0
    %2558 = vmatprep.subr.bf16.mxu0 %v1858
    %2559 = vmatpush1.bf16.msra.mxu0 %v1857
    %2560 = vmatprep.subr.bf16.mxu0 %v1866
    %2561 = vmatpush1.bf16.msra.mxu0 %v1865
    %2562 = vmatprep.subr.bf16.mxu0 %v1874
    %2563 = vmatpush1.bf16.msra.mxu0 %v1873
    %2564 = vmatprep.subr.bf16.mxu0 %v1882
    %2565 = vmatpush1.bf16.msra.mxu0 %v1881
    %2566 = vmatprep.subr.bf16.mxu0 %v1890
    %2567 = vmatpush1.bf16.msra.mxu0 %v1889
    %2568 = vmatprep.subr.bf16.mxu0 %v1898
    %2569 = vmatpush1.bf16.msra.mxu0 %v1897
    %2570 = vmatprep.subr.bf16.mxu0 %v1906
    %2571 = vmatpush1.bf16.msra.mxu0 %v1905
    %2572 = vmatprep.subr.bf16.mxu0 %v1914
    %2573 = vmatpush1.bf16.msra.mxu0 %v1913
    %2574 = vmatprep.subr.bf16.mxu0 %v1922
    %2575 = vmatpush1.bf16.msra.mxu0 %v1921
    %2576 = vmatprep.subr.bf16.mxu0 %v1930
    %2577 = vmatpush1.bf16.msra.mxu0 %v1929
    %2578 = vmatprep.subr.bf16.mxu0 %v1938
    %2579 = vmatpush1.bf16.msra.mxu0 %v1937
    %2580 = vmatprep.subr.bf16.mxu0 %v1946
    %2581 = vmatpush1.bf16.msra.mxu0 %v1945
    %2582 = vmatprep.subr.bf16.mxu0 %v1954
    %2583 = vmatpush1.bf16.msra.mxu0 %v1953
    %2584 = vmatprep.subr.bf16.mxu0 %v1962
    %2585 = vmatpush1.bf16.msra.mxu0 %v1961
    %2586 = vmatprep.subr.bf16.mxu0 %v1970
    %2587 = vmatpush1.bf16.msra.mxu0 %v1969
    %2588 = vmatprep.subr.bf16.mxu0 %v1978
    %2589 = vmatpush1.bf16.msra.mxu0 %v1977
    %2590 = vmatprep.mubr.bf16.mxu0 %v115
    %2591 = vmatmul.mubr.bf16.gmra.mrb[0].mxu0 %v114
    %v2592 = vpop.f32.mrb[0].mxu0
    %v2593 = vadd.f32 %v2552, %v2592
    %v2594 = vpop.f32.mrb[0].mxu0
    %v2595 = vadd.f32 %v2554, %v2594
    %v2596 = vpop.f32.mrb[0].mxu0
    %v2597 = vpop.f32.mrb[0].mxu0
    %2598 = vdwg.mxu0
    %2599 = vmatprep.subr.bf16.mxu0 %v1986
    %2600 = vmatpush1.bf16.msra.mxu0 %v1985
    %2601 = vmatprep.subr.bf16.mxu0 %v1994
    %2602 = vmatpush1.bf16.msra.mxu0 %v1993
    %2603 = vmatprep.subr.bf16.mxu0 %v2002
    %2604 = vmatpush1.bf16.msra.mxu0 %v2001
    %2605 = vmatprep.subr.bf16.mxu0 %v2010
    %2606 = vmatpush1.bf16.msra.mxu0 %v2009
    %2607 = vmatprep.subr.bf16.mxu0 %v2018
    %2608 = vmatpush1.bf16.msra.mxu0 %v2017
    %2609 = vmatprep.subr.bf16.mxu0 %v2026
    %2610 = vmatpush1.bf16.msra.mxu0 %v2025
    %2611 = vmatprep.subr.bf16.mxu0 %v2034
    %2612 = vmatpush1.bf16.msra.mxu0 %v2033
    %2613 = vmatprep.subr.bf16.mxu0 %v2042
    %2614 = vmatpush1.bf16.msra.mxu0 %v2041
    %2615 = vmatprep.subr.bf16.mxu0 %v2050
    %2616 = vmatpush1.bf16.msra.mxu0 %v2049
    %2617 = vmatprep.subr.bf16.mxu0 %v2058
    %2618 = vmatpush1.bf16.msra.mxu0 %v2057
    %2619 = vmatprep.subr.bf16.mxu0 %v2066
    %2620 = vmatpush1.bf16.msra.mxu0 %v2065
    %2621 = vmatprep.subr.bf16.mxu0 %v2074
    %2622 = vmatpush1.bf16.msra.mxu0 %v2073
    %2623 = vmatprep.subr.bf16.mxu0 %v2082
    %2624 = vmatpush1.bf16.msra.mxu0 %v2081
    %2625 = vmatprep.subr.bf16.mxu0 %v2090
    %2626 = vmatpush1.bf16.msra.mxu0 %v2089
    %2627 = vmatprep.subr.bf16.mxu0 %v2098
    %2628 = vmatpush1.bf16.msra.mxu0 %v2097
    %2629 = vmatprep.subr.bf16.mxu0 %v2106
    %2630 = vmatpush1.bf16.msra.mxu0 %v2105
    %2631 = vmatprep.mubr.bf16.mxu0 %v117
    %2632 = vmatmul.mubr.bf16.gmra.mrb[0].mxu0 %v116
    %v2633 = vpop.f32.mrb[0].mxu0
    %v2634 = vadd.f32 %v2593, %v2633
    %v2635 = vpop.f32.mrb[0].mxu0
    %v2636 = vadd.f32 %v2595, %v2635
    %v2637 = vpop.f32.mrb[0].mxu0
    %v2638 = vpop.f32.mrb[0].mxu0
    %2639 = vdwg.mxu0
    %2640 = vmatprep.subr.bf16.mxu0 %v2114
    %2641 = vmatpush1.bf16.msra.mxu0 %v2113
    %2642 = vmatprep.subr.bf16.mxu0 0
    %2643 = vmatpush1.bf16.msra.mxu0 0
    %2644 = vmatprep.subr.bf16.mxu0 0
    %2645 = vmatpush1.bf16.msra.mxu0 0
    %2646 = vmatprep.subr.bf16.mxu0 0
    %2647 = vmatpush1.bf16.msra.mxu0 0
    %2648 = vmatprep.subr.bf16.mxu0 0
    %2649 = vmatpush1.bf16.msra.mxu0 0
    %2650 = vmatprep.subr.bf16.mxu0 0
    %2651 = vmatpush1.bf16.msra.mxu0 0
    %2652 = vmatprep.subr.bf16.mxu0 0
    %2653 = vmatpush1.bf16.msra.mxu0 0
    %2654 = vmatprep.subr.bf16.mxu0 0
    %2655 = vmatpush1.bf16.msra.mxu0 0
    %2656 = vmatprep.subr.bf16.mxu0 0
    %2657 = vmatpush1.bf16.msra.mxu0 0
    %2658 = vmatprep.subr.bf16.mxu0 0
    %2659 = vmatpush1.bf16.msra.mxu0 0
    %2660 = vmatprep.subr.bf16.mxu0 0
    %2661 = vmatpush1.bf16.msra.mxu0 0
    %2662 = vmatprep.subr.bf16.mxu0 0
    %2663 = vmatpush1.bf16.msra.mxu0 0
    %2664 = vmatprep.subr.bf16.mxu0 0
    %2665 = vmatpush1.bf16.msra.mxu0 0
    %2666 = vmatprep.subr.bf16.mxu0 0
    %2667 = vmatpush1.bf16.msra.mxu0 0
    %2668 = vmatprep.subr.bf16.mxu0 0
    %2669 = vmatpush1.bf16.msra.mxu0 0
    %2670 = vmatprep.subr.bf16.mxu0 0
    %2671 = vmatpush1.bf16.msra.mxu0 0
    %2672 = vmatprep.mubr.bf16.mxu0 0
    %2673 = vmatmul.mubr.bf16.gmra.mrb[0].mxu0 %v2515
    %v2674 = vpop.f32.mrb[0].mxu0
    %v2675 = vadd.f32 %v2634, %v2674
    %v2676 = vpop.f32.mrb[0].mxu0
    %v2677 = vadd.f32 %v2636, %v2676
    %v2678 = vpop.f32.mrb[0].mxu0
    %v2679 = vpop.f32.mrb[0].mxu0
    %2680 = vdwg.mxu0
    %2681 = vmatprep.subr.bf16.mxu0 %v1732
    %2682 = vmatpush1.bf16.msra.mxu0 %v1731
    %2683 = vmatprep.subr.bf16.mxu0 %v1740
    %2684 = vmatpush1.bf16.msra.mxu0 %v1739
    %2685 = vmatprep.subr.bf16.mxu0 %v1748
    %2686 = vmatpush1.bf16.msra.mxu0 %v1747
    %2687 = vmatprep.subr.bf16.mxu0 %v1756
    %2688 = vmatpush1.bf16.msra.mxu0 %v1755
    %2689 = vmatprep.subr.bf16.mxu0 %v1764
    %2690 = vmatpush1.bf16.msra.mxu0 %v1763
    %2691 = vmatprep.subr.bf16.mxu0 %v1772
    %2692 = vmatpush1.bf16.msra.mxu0 %v1771
    %2693 = vmatprep.subr.bf16.mxu0 %v1780
    %2694 = vmatpush1.bf16.msra.mxu0 %v1779
    %2695 = vmatprep.subr.bf16.mxu0 %v1788
    %2696 = vmatpush1.bf16.msra.mxu0 %v1787
    %2697 = vmatprep.subr.bf16.mxu0 %v1796
    %2698 = vmatpush1.bf16.msra.mxu0 %v1795
    %2699 = vmatprep.subr.bf16.mxu0 %v1804
    %2700 = vmatpush1.bf16.msra.mxu0 %v1803
    %2701 = vmatprep.subr.bf16.mxu0 %v1812
    %2702 = vmatpush1.bf16.msra.mxu0 %v1811
    %2703 = vmatprep.subr.bf16.mxu0 %v1820
    %2704 = vmatpush1.bf16.msra.mxu0 %v1819
    %2705 = vmatprep.subr.bf16.mxu0 %v1828
    %2706 = vmatpush1.bf16.msra.mxu0 %v1827
    %2707 = vmatprep.subr.bf16.mxu0 %v1836
    %2708 = vmatpush1.bf16.msra.mxu0 %v1835
    %2709 = vmatprep.subr.bf16.mxu0 %v1844
    %2710 = vmatpush1.bf16.msra.mxu0 %v1843
    %2711 = vmatprep.subr.bf16.mxu0 %v1852
    %2712 = vmatpush1.bf16.msra.mxu0 %v1851
    %2713 = vmatprep.mubr.bf16.mxu0 %v113
    %2714 = vmatmul.mubr.bf16.gmra.mrb[0].mxu0 %v112
    %v2715 = vpop.f32.mrb[0].mxu0
    %v2716 = vadd.f32 %v524, %v2715
    %v2717 = vpop.f32.mrb[0].mxu0
    %v2718 = vadd.f32 %v528, %v2717
    %v2719 = vpop.f32.mrb[0].mxu0
    %v2720 = vpop.f32.mrb[0].mxu0
    %2721 = vdwg.mxu0
    %2722 = vmatprep.subr.bf16.mxu0 %v1860
    %2723 = vmatpush1.bf16.msra.mxu0 %v1859
    %2724 = vmatprep.subr.bf16.mxu0 %v1868
    %2725 = vmatpush1.bf16.msra.mxu0 %v1867
    %2726 = vmatprep.subr.bf16.mxu0 %v1876
    %2727 = vmatpush1.bf16.msra.mxu0 %v1875
    %2728 = vmatprep.subr.bf16.mxu0 %v1884
    %2729 = vmatpush1.bf16.msra.mxu0 %v1883
    %2730 = vmatprep.subr.bf16.mxu0 %v1892
    %2731 = vmatpush1.bf16.msra.mxu0 %v1891
    %2732 = vmatprep.subr.bf16.mxu0 %v1900
    %2733 = vmatpush1.bf16.msra.mxu0 %v1899
    %2734 = vmatprep.subr.bf16.mxu0 %v1908
    %2735 = vmatpush1.bf16.msra.mxu0 %v1907
    %2736 = vmatprep.subr.bf16.mxu0 %v1916
    %2737 = vmatpush1.bf16.msra.mxu0 %v1915
    %2738 = vmatprep.subr.bf16.mxu0 %v1924
    %2739 = vmatpush1.bf16.msra.mxu0 %v1923
    %2740 = vmatprep.subr.bf16.mxu0 %v1932
    %2741 = vmatpush1.bf16.msra.mxu0 %v1931
    %2742 = vmatprep.subr.bf16.mxu0 %v1940
    %2743 = vmatpush1.bf16.msra.mxu0 %v1939
    %2744 = vmatprep.subr.bf16.mxu0 %v1948
    %2745 = vmatpush1.bf16.msra.mxu0 %v1947
    %2746 = vmatprep.subr.bf16.mxu0 %v1956
    %2747 = vmatpush1.bf16.msra.mxu0 %v1955
    %2748 = vmatprep.subr.bf16.mxu0 %v1964
    %2749 = vmatpush1.bf16.msra.mxu0 %v1963
    %2750 = vmatprep.subr.bf16.mxu0 %v1972
    %2751 = vmatpush1.bf16.msra.mxu0 %v1971
    %2752 = vmatprep.subr.bf16.mxu0 %v1980
    %2753 = vmatpush1.bf16.msra.mxu0 %v1979
    %2754 = vmatprep.mubr.bf16.mxu0 %v115
    %2755 = vmatmul.mubr.bf16.gmra.mrb[0].mxu0 %v114
    %v2756 = vpop.f32.mrb[0].mxu0
    %v2757 = vadd.f32 %v2716, %v2756
    %v2758 = vpop.f32.mrb[0].mxu0
    %v2759 = vadd.f32 %v2718, %v2758
    %v2760 = vpop.f32.mrb[0].mxu0
    %v2761 = vpop.f32.mrb[0].mxu0
    %2762 = vdwg.mxu0
    %2763 = vmatprep.subr.bf16.mxu0 %v1988
    %2764 = vmatpush1.bf16.msra.mxu0 %v1987
    %2765 = vmatprep.subr.bf16.mxu0 %v1996
    %2766 = vmatpush1.bf16.msra.mxu0 %v1995
    %2767 = vmatprep.subr.bf16.mxu0 %v2004
    %2768 = vmatpush1.bf16.msra.mxu0 %v2003
    %2769 = vmatprep.subr.bf16.mxu0 %v2012
    %2770 = vmatpush1.bf16.msra.mxu0 %v2011
    %2771 = vmatprep.subr.bf16.mxu0 %v2020
    %2772 = vmatpush1.bf16.msra.mxu0 %v2019
    %2773 = vmatprep.subr.bf16.mxu0 %v2028
    %2774 = vmatpush1.bf16.msra.mxu0 %v2027
    %2775 = vmatprep.subr.bf16.mxu0 %v2036
    %2776 = vmatpush1.bf16.msra.mxu0 %v2035
    %2777 = vmatprep.subr.bf16.mxu0 %v2044
    %2778 = vmatpush1.bf16.msra.mxu0 %v2043
    %2779 = vmatprep.subr.bf16.mxu0 %v2052
    %2780 = vmatpush1.bf16.msra.mxu0 %v2051
    %2781 = vmatprep.subr.bf16.mxu0 %v2060
    %2782 = vmatpush1.bf16.msra.mxu0 %v2059
    %2783 = vmatprep.subr.bf16.mxu0 %v2068
    %2784 = vmatpush1.bf16.msra.mxu0 %v2067
    %2785 = vmatprep.subr.bf16.mxu0 %v2076
    %2786 = vmatpush1.bf16.msra.mxu0 %v2075
    %2787 = vmatprep.subr.bf16.mxu0 %v2084
    %2788 = vmatpush1.bf16.msra.mxu0 %v2083
    %2789 = vmatprep.subr.bf16.mxu0 %v2092
    %2790 = vmatpush1.bf16.msra.mxu0 %v2091
    %2791 = vmatprep.subr.bf16.mxu0 %v2100
    %2792 = vmatpush1.bf16.msra.mxu0 %v2099
    %2793 = vmatprep.subr.bf16.mxu0 %v2108
    %2794 = vmatpush1.bf16.msra.mxu0 %v2107
    %2795 = vmatprep.mubr.bf16.mxu0 %v117
    %2796 = vmatmul.mubr.bf16.gmra.mrb[0].mxu0 %v116
    %v2797 = vpop.f32.mrb[0].mxu0
    %v2798 = vadd.f32 %v2757, %v2797
    %v2799 = vpop.f32.mrb[0].mxu0
    %v2800 = vadd.f32 %v2759, %v2799
    %v2801 = vpop.f32.mrb[0].mxu0
    %v2802 = vpop.f32.mrb[0].mxu0
    %2803 = vdwg.mxu0
    %2804 = vmatprep.subr.bf16.mxu0 %v2116
    %2805 = vmatpush1.bf16.msra.mxu0 %v2115
    %2806 = vmatprep.subr.bf16.mxu0 0
    %2807 = vmatpush1.bf16.msra.mxu0 0
    %2808 = vmatprep.subr.bf16.mxu0 0
    %2809 = vmatpush1.bf16.msra.mxu0 0
    %2810 = vmatprep.subr.bf16.mxu0 0
    %2811 = vmatpush1.bf16.msra.mxu0 0
    %2812 = vmatprep.subr.bf16.mxu0 0
    %2813 = vmatpush1.bf16.msra.mxu0 0
    %2814 = vmatprep.subr.bf16.mxu0 0
    %2815 = vmatpush1.bf16.msra.mxu0 0
    %2816 = vmatprep.subr.bf16.mxu0 0
    %2817 = vmatpush1.bf16.msra.mxu0 0
    %2818 = vmatprep.subr.bf16.mxu0 0
    %2819 = vmatpush1.bf16.msra.mxu0 0
    %2820 = vmatprep.subr.bf16.mxu0 0
    %2821 = vmatpush1.bf16.msra.mxu0 0
    %2822 = vmatprep.subr.bf16.mxu0 0
    %2823 = vmatpush1.bf16.msra.mxu0 0
    %2824 = vmatprep.subr.bf16.mxu0 0
    %2825 = vmatpush1.bf16.msra.mxu0 0
    %2826 = vmatprep.subr.bf16.mxu0 0
    %2827 = vmatpush1.bf16.msra.mxu0 0
    %2828 = vmatprep.subr.bf16.mxu0 0
    %2829 = vmatpush1.bf16.msra.mxu0 0
    %2830 = vmatprep.subr.bf16.mxu0 0
    %2831 = vmatpush1.bf16.msra.mxu0 0
    %2832 = vmatprep.subr.bf16.mxu0 0
    %2833 = vmatpush1.bf16.msra.mxu0 0
    %2834 = vmatprep.subr.bf16.mxu0 0
    %2835 = vmatpush1.bf16.msra.mxu0 0
    %2836 = vmatprep.mubr.bf16.mxu0 0
    %2837 = vmatmul.mubr.bf16.gmra.mrb[0].mxu0 %v2515
    %v2838 = vpop.f32.mrb[0].mxu0
    %v2839 = vadd.f32 %v2798, %v2838
    %v2840 = vpop.f32.mrb[0].mxu0
    %v2841 = vadd.f32 %v2800, %v2840
    %v2842 = vpop.f32.mrb[0].mxu0
    %v2843 = vpop.f32.mrb[0].mxu0
    %2844 = vdwg.mxu0
    %2845 = vmatprep.subr.bf16.mxu0 %v1734
    %2846 = vmatpush1.bf16.msra.mxu0 %v1733
    %2847 = vmatprep.subr.bf16.mxu0 %v1742
    %2848 = vmatpush1.bf16.msra.mxu0 %v1741
    %2849 = vmatprep.subr.bf16.mxu0 %v1750
    %2850 = vmatpush1.bf16.msra.mxu0 %v1749
    %2851 = vmatprep.subr.bf16.mxu0 %v1758
    %2852 = vmatpush1.bf16.msra.mxu0 %v1757
    %2853 = vmatprep.subr.bf16.mxu0 %v1766
    %2854 = vmatpush1.bf16.msra.mxu0 %v1765
    %2855 = vmatprep.subr.bf16.mxu0 %v1774
    %2856 = vmatpush1.bf16.msra.mxu0 %v1773
    %2857 = vmatprep.subr.bf16.mxu0 %v1782
    %2858 = vmatpush1.bf16.msra.mxu0 %v1781
    %2859 = vmatprep.subr.bf16.mxu0 %v1790
    %2860 = vmatpush1.bf16.msra.mxu0 %v1789
    %2861 = vmatprep.subr.bf16.mxu0 %v1798
    %2862 = vmatpush1.bf16.msra.mxu0 %v1797
    %2863 = vmatprep.subr.bf16.mxu0 %v1806
    %2864 = vmatpush1.bf16.msra.mxu0 %v1805
    %2865 = vmatprep.subr.bf16.mxu0 %v1814
    %2866 = vmatpush1.bf16.msra.mxu0 %v1813
    %2867 = vmatprep.subr.bf16.mxu0 %v1822
    %2868 = vmatpush1.bf16.msra.mxu0 %v1821
    %2869 = vmatprep.subr.bf16.mxu0 %v1830
    %2870 = vmatpush1.bf16.msra.mxu0 %v1829
    %2871 = vmatprep.subr.bf16.mxu0 %v1838
    %2872 = vmatpush1.bf16.msra.mxu0 %v1837
    %2873 = vmatprep.subr.bf16.mxu0 %v1846
    %2874 = vmatpush1.bf16.msra.mxu0 %v1845
    %2875 = vmatprep.subr.bf16.mxu0 %v1854
    %2876 = vmatpush1.bf16.msra.mxu0 %v1853
    %2877 = vmatprep.mubr.bf16.mxu0 %v113
    %2878 = vmatmul.mubr.bf16.gmra.mrb[0].mxu0 %v112
    %v2879 = vpop.f32.mrb[0].mxu0
    %v2880 = vadd.f32 %v532, %v2879
    %v2881 = vpop.f32.mrb[0].mxu0
    %v2882 = vadd.f32 %v536, %v2881
    %v2883 = vpop.f32.mrb[0].mxu0
    %v2884 = vpop.f32.mrb[0].mxu0
    %2885 = vdwg.mxu0
    %2886 = vmatprep.subr.bf16.mxu0 %v1862
    %2887 = vmatpush1.bf16.msra.mxu0 %v1861
    %2888 = vmatprep.subr.bf16.mxu0 %v1870
    %2889 = vmatpush1.bf16.msra.mxu0 %v1869
    %2890 = vmatprep.subr.bf16.mxu0 %v1878
    %2891 = vmatpush1.bf16.msra.mxu0 %v1877
    %2892 = vmatprep.subr.bf16.mxu0 %v1886
    %2893 = vmatpush1.bf16.msra.mxu0 %v1885
    %2894 = vmatprep.subr.bf16.mxu0 %v1894
    %2895 = vmatpush1.bf16.msra.mxu0 %v1893
    %2896 = vmatprep.subr.bf16.mxu0 %v1902
    %2897 = vmatpush1.bf16.msra.mxu0 %v1901
    %2898 = vmatprep.subr.bf16.mxu0 %v1910
    %2899 = vmatpush1.bf16.msra.mxu0 %v1909
    %2900 = vmatprep.subr.bf16.mxu0 %v1918
    %2901 = vmatpush1.bf16.msra.mxu0 %v1917
    %2902 = vmatprep.subr.bf16.mxu0 %v1926
    %2903 = vmatpush1.bf16.msra.mxu0 %v1925
    %2904 = vmatprep.subr.bf16.mxu0 %v1934
    %2905 = vmatpush1.bf16.msra.mxu0 %v1933
    %2906 = vmatprep.subr.bf16.mxu0 %v1942
    %2907 = vmatpush1.bf16.msra.mxu0 %v1941
    %2908 = vmatprep.subr.bf16.mxu0 %v1950
    %2909 = vmatpush1.bf16.msra.mxu0 %v1949
    %2910 = vmatprep.subr.bf16.mxu0 %v1958
    %2911 = vmatpush1.bf16.msra.mxu0 %v1957
    %2912 = vmatprep.subr.bf16.mxu0 %v1966
    %2913 = vmatpush1.bf16.msra.mxu0 %v1965
    %2914 = vmatprep.subr.bf16.mxu0 %v1974
    %2915 = vmatpush1.bf16.msra.mxu0 %v1973
    %2916 = vmatprep.subr.bf16.mxu0 %v1982
    %2917 = vmatpush1.bf16.msra.mxu0 %v1981
    %2918 = vmatprep.mubr.bf16.mxu0 %v115
    %2919 = vmatmul.mubr.bf16.gmra.mrb[0].mxu0 %v114
    %v2920 = vpop.f32.mrb[0].mxu0
    %v2921 = vadd.f32 %v2880, %v2920
    %v2922 = vpop.f32.mrb[0].mxu0
    %v2923 = vadd.f32 %v2882, %v2922
    %v2924 = vpop.f32.mrb[0].mxu0
    %v2925 = vpop.f32.mrb[0].mxu0
    %2926 = vdwg.mxu0
    %2927 = vmatprep.subr.bf16.mxu0 %v1990
    %2928 = vmatpush1.bf16.msra.mxu0 %v1989
    %2929 = vmatprep.subr.bf16.mxu0 %v1998
    %2930 = vmatpush1.bf16.msra.mxu0 %v1997
    %2931 = vmatprep.subr.bf16.mxu0 %v2006
    %2932 = vmatpush1.bf16.msra.mxu0 %v2005
    %2933 = vmatprep.subr.bf16.mxu0 %v2014
    %2934 = vmatpush1.bf16.msra.mxu0 %v2013
    %2935 = vmatprep.subr.bf16.mxu0 %v2022
    %2936 = vmatpush1.bf16.msra.mxu0 %v2021
    %2937 = vmatprep.subr.bf16.mxu0 %v2030
    %2938 = vmatpush1.bf16.msra.mxu0 %v2029
    %2939 = vmatprep.subr.bf16.mxu0 %v2038
    %2940 = vmatpush1.bf16.msra.mxu0 %v2037
    %2941 = vmatprep.subr.bf16.mxu0 %v2046
    %2942 = vmatpush1.bf16.msra.mxu0 %v2045
    %2943 = vmatprep.subr.bf16.mxu0 %v2054
    %2944 = vmatpush1.bf16.msra.mxu0 %v2053
    %2945 = vmatprep.subr.bf16.mxu0 %v2062
    %2946 = vmatpush1.bf16.msra.mxu0 %v2061
    %2947 = vmatprep.subr.bf16.mxu0 %v2070
    %2948 = vmatpush1.bf16.msra.mxu0 %v2069
    %2949 = vmatprep.subr.bf16.mxu0 %v2078
    %2950 = vmatpush1.bf16.msra.mxu0 %v2077
    %2951 = vmatprep.subr.bf16.mxu0 %v2086
    %2952 = vmatpush1.bf16.msra.mxu0 %v2085
    %2953 = vmatprep.subr.bf16.mxu0 %v2094
    %2954 = vmatpush1.bf16.msra.mxu0 %v2093
    %2955 = vmatprep.subr.bf16.mxu0 %v2102
    %2956 = vmatpush1.bf16.msra.mxu0 %v2101
    %2957 = vmatprep.subr.bf16.mxu0 %v2110
    %2958 = vmatpush1.bf16.msra.mxu0 %v2109
    %2959 = vmatprep.mubr.bf16.mxu0 %v117
    %2960 = vmatmul.mubr.bf16.gmra.mrb[0].mxu0 %v116
    %v2961 = vpop.f32.mrb[0].mxu0
    %v2962 = vadd.f32 %v2921, %v2961
    %v2963 = vpop.f32.mrb[0].mxu0
    %v2964 = vadd.f32 %v2923, %v2963
    %v2965 = vpop.f32.mrb[0].mxu0
    %v2966 = vpop.f32.mrb[0].mxu0
    %2967 = vdwg.mxu0
    %2968 = vmatprep.subr.bf16.mxu0 %v2118
    %2969 = vmatpush1.bf16.msra.mxu0 %v2117
    %2970 = vmatprep.subr.bf16.mxu0 0
    %2971 = vmatpush1.bf16.msra.mxu0 0
    %2972 = vmatprep.subr.bf16.mxu0 0
    %2973 = vmatpush1.bf16.msra.mxu0 0
    %2974 = vmatprep.subr.bf16.mxu0 0
    %2975 = vmatpush1.bf16.msra.mxu0 0
    %2976 = vmatprep.subr.bf16.mxu0 0
    %2977 = vmatpush1.bf16.msra.mxu0 0
    %2978 = vmatprep.subr.bf16.mxu0 0
    %2979 = vmatpush1.bf16.msra.mxu0 0
    %2980 = vmatprep.subr.bf16.mxu0 0
    %2981 = vmatpush1.bf16.msra.mxu0 0
    %2982 = vmatprep.subr.bf16.mxu0 0
    %2983 = vmatpush1.bf16.msra.mxu0 0
    %2984 = vmatprep.subr.bf16.mxu0 0
    %2985 = vmatpush1.bf16.msra.mxu0 0
    %2986 = vmatprep.subr.bf16.mxu0 0
    %2987 = vmatpush1.bf16.msra.mxu0 0
    %2988 = vmatprep.subr.bf16.mxu0 0
    %2989 = vmatpush1.bf16.msra.mxu0 0
    %2990 = vmatprep.subr.bf16.mxu0 0
    %2991 = vmatpush1.bf16.msra.mxu0 0
    %2992 = vmatprep.subr.bf16.mxu0 0
    %2993 = vmatpush1.bf16.msra.mxu0 0
    %2994 = vmatprep.subr.bf16.mxu0 0
    %2995 = vmatpush1.bf16.msra.mxu0 0
    %2996 = vmatprep.subr.bf16.mxu0 0
    %2997 = vmatpush1.bf16.msra.mxu0 0
    %2998 = vmatprep.subr.bf16.mxu0 0
    %2999 = vmatpush1.bf16.msra.mxu0 0
    %3000 = vmatprep.mubr.bf16.mxu0 0
    %3001 = vmatmul.mubr.bf16.gmra.mrb[0].mxu0 %v2515
    %v3002 = vpop.f32.mrb[0].mxu0
    %v3003 = vadd.f32 %v2962, %v3002
    %v3004 = vpop.f32.mrb[0].mxu0
    %v3005 = vadd.f32 %v2964, %v3004
    %v3006 = vpop.f32.mrb[0].mxu0
    %v3007 = vpop.f32.mrb[0].mxu0
    %3008 = vdwg.mxu0
    %3009 = vmatprep.subr.bf16.mxu0 %v1736
    %3010 = vmatpush1.bf16.msra.mxu0 %v1735
    %3011 = vmatprep.subr.bf16.mxu0 %v1744
    %3012 = vmatpush1.bf16.msra.mxu0 %v1743
    %3013 = vmatprep.subr.bf16.mxu0 %v1752
    %3014 = vmatpush1.bf16.msra.mxu0 %v1751
    %3015 = vmatprep.subr.bf16.mxu0 %v1760
    %3016 = vmatpush1.bf16.msra.mxu0 %v1759
    %3017 = vmatprep.subr.bf16.mxu0 %v1768
    %3018 = vmatpush1.bf16.msra.mxu0 %v1767
    %3019 = vmatprep.subr.bf16.mxu0 %v1776
    %3020 = vmatpush1.bf16.msra.mxu0 %v1775
    %3021 = vmatprep.subr.bf16.mxu0 %v1784
    %3022 = vmatpush1.bf16.msra.mxu0 %v1783
    %3023 = vmatprep.subr.bf16.mxu0 %v1792
    %3024 = vmatpush1.bf16.msra.mxu0 %v1791
    %3025 = vmatprep.subr.bf16.mxu0 %v1800
    %3026 = vmatpush1.bf16.msra.mxu0 %v1799
    %3027 = vmatprep.subr.bf16.mxu0 %v1808
    %3028 = vmatpush1.bf16.msra.mxu0 %v1807
    %3029 = vmatprep.subr.bf16.mxu0 %v1816
    %3030 = vmatpush1.bf16.msra.mxu0 %v1815
    %3031 = vmatprep.subr.bf16.mxu0 %v1824
    %3032 = vmatpush1.bf16.msra.mxu0 %v1823
    %3033 = vmatprep.subr.bf16.mxu0 %v1832
    %3034 = vmatpush1.bf16.msra.mxu0 %v1831
    %3035 = vmatprep.subr.bf16.mxu0 %v1840
    %3036 = vmatpush1.bf16.msra.mxu0 %v1839
    %3037 = vmatprep.subr.bf16.mxu0 %v1848
    %3038 = vmatpush1.bf16.msra.mxu0 %v1847
    %3039 = vmatprep.subr.bf16.mxu0 %v1856
    %3040 = vmatpush1.bf16.msra.mxu0 %v1855
    %3041 = vmatprep.mubr.bf16.mxu0 %v113
    %3042 = vmatmul.mubr.bf16.gmra.mrb[0].mxu0 %v112
    %v3043 = vpop.f32.mrb[0].mxu0
    %v3044 = vadd.f32 %v540, %v3043
    %v3045 = vpop.f32.mrb[0].mxu0
    %v3046 = vadd.f32 %v544, %v3045
    %v3047 = vpop.f32.mrb[0].mxu0
    %v3048 = vpop.f32.mrb[0].mxu0
    %3049 = vdwg.mxu0
    %3050 = vmatprep.subr.bf16.mxu0 %v1864
    %3051 = vmatpush1.bf16.msra.mxu0 %v1863
    %3052 = vmatprep.subr.bf16.mxu0 %v1872
    %3053 = vmatpush1.bf16.msra.mxu0 %v1871
    %3054 = vmatprep.subr.bf16.mxu0 %v1880
    %3055 = vmatpush1.bf16.msra.mxu0 %v1879
    %3056 = vmatprep.subr.bf16.mxu0 %v1888
    %3057 = vmatpush1.bf16.msra.mxu0 %v1887
    %3058 = vmatprep.subr.bf16.mxu0 %v1896
    %3059 = vmatpush1.bf16.msra.mxu0 %v1895
    %3060 = vmatprep.subr.bf16.mxu0 %v1904
    %3061 = vmatpush1.bf16.msra.mxu0 %v1903
    %3062 = vmatprep.subr.bf16.mxu0 %v1912
    %3063 = vmatpush1.bf16.msra.mxu0 %v1911
    %3064 = vmatprep.subr.bf16.mxu0 %v1920
    %3065 = vmatpush1.bf16.msra.mxu0 %v1919
    %3066 = vmatprep.subr.bf16.mxu0 %v1928
    %3067 = vmatpush1.bf16.msra.mxu0 %v1927
    %3068 = vmatprep.subr.bf16.mxu0 %v1936
    %3069 = vmatpush1.bf16.msra.mxu0 %v1935
    %3070 = vmatprep.subr.bf16.mxu0 %v1944
    %3071 = vmatpush1.bf16.msra.mxu0 %v1943
    %3072 = vmatprep.subr.bf16.mxu0 %v1952
    %3073 = vmatpush1.bf16.msra.mxu0 %v1951
    %3074 = vmatprep.subr.bf16.mxu0 %v1960
    %3075 = vmatpush1.bf16.msra.mxu0 %v1959
    %3076 = vmatprep.subr.bf16.mxu0 %v1968
    %3077 = vmatpush1.bf16.msra.mxu0 %v1967
    %3078 = vmatprep.subr.bf16.mxu0 %v1976
    %3079 = vmatpush1.bf16.msra.mxu0 %v1975
    %3080 = vmatprep.subr.bf16.mxu0 %v1984
    %3081 = vmatpush1.bf16.msra.mxu0 %v1983
    %3082 = vmatprep.mubr.bf16.mxu0 %v115
    %3083 = vmatmul.mubr.bf16.gmra.mrb[0].mxu0 %v114
    %v3084 = vpop.f32.mrb[0].mxu0
    %v3085 = vadd.f32 %v3044, %v3084
    %v3086 = vpop.f32.mrb[0].mxu0
    %v3087 = vadd.f32 %v3046, %v3086
    %v3088 = vpop.f32.mrb[0].mxu0
    %v3089 = vpop.f32.mrb[0].mxu0
    %3090 = vdwg.mxu0
    %3091 = vmatprep.subr.bf16.mxu0 %v1992
    %3092 = vmatpush1.bf16.msra.mxu0 %v1991
    %3093 = vmatprep.subr.bf16.mxu0 %v2000
    %3094 = vmatpush1.bf16.msra.mxu0 %v1999
    %3095 = vmatprep.subr.bf16.mxu0 %v2008
    %3096 = vmatpush1.bf16.msra.mxu0 %v2007
    %3097 = vmatprep.subr.bf16.mxu0 %v2016
    %3098 = vmatpush1.bf16.msra.mxu0 %v2015
    %3099 = vmatprep.subr.bf16.mxu0 %v2024
    %3100 = vmatpush1.bf16.msra.mxu0 %v2023
    %3101 = vmatprep.subr.bf16.mxu0 %v2032
    %3102 = vmatpush1.bf16.msra.mxu0 %v2031
    %3103 = vmatprep.subr.bf16.mxu0 %v2040
    %3104 = vmatpush1.bf16.msra.mxu0 %v2039
    %3105 = vmatprep.subr.bf16.mxu0 %v2048
    %3106 = vmatpush1.bf16.msra.mxu0 %v2047
    %3107 = vmatprep.subr.bf16.mxu0 %v2056
    %3108 = vmatpush1.bf16.msra.mxu0 %v2055
    %3109 = vmatprep.subr.bf16.mxu0 %v2064
    %3110 = vmatpush1.bf16.msra.mxu0 %v2063
    %3111 = vmatprep.subr.bf16.mxu0 %v2072
    %3112 = vmatpush1.bf16.msra.mxu0 %v2071
    %3113 = vmatprep.subr.bf16.mxu0 %v2080
    %3114 = vmatpush1.bf16.msra.mxu0 %v2079
    %3115 = vmatprep.subr.bf16.mxu0 %v2088
    %3116 = vmatpush1.bf16.msra.mxu0 %v2087
    %3117 = vmatprep.subr.bf16.mxu0 %v2096
    %3118 = vmatpush1.bf16.msra.mxu0 %v2095
    %3119 = vmatprep.subr.bf16.mxu0 %v2104
    %3120 = vmatpush1.bf16.msra.mxu0 %v2103
    %3121 = vmatprep.subr.bf16.mxu0 %v2112
    %3122 = vmatpush1.bf16.msra.mxu0 %v2111
    %3123 = vmatprep.mubr.bf16.mxu0 %v117
    %3124 = vmatmul.mubr.bf16.gmra.mrb[0].mxu0 %v116
    %v3125 = vpop.f32.mrb[0].mxu0
    %v3126 = vadd.f32 %v3085, %v3125
    %v3127 = vpop.f32.mrb[0].mxu0
    %v3128 = vadd.f32 %v3087, %v3127
    %v3129 = vpop.f32.mrb[0].mxu0
    %v3130 = vpop.f32.mrb[0].mxu0
    %3131 = vdwg.mxu0
    %3132 = vmatprep.subr.bf16.mxu0 %v2120
    %3133 = vmatpush1.bf16.msra.mxu0 %v2119
    %3134 = vmatprep.subr.bf16.mxu0 0
    %3135 = vmatpush1.bf16.msra.mxu0 0
    %3136 = vmatprep.subr.bf16.mxu0 0
    %3137 = vmatpush1.bf16.msra.mxu0 0
    %3138 = vmatprep.subr.bf16.mxu0 0
    %3139 = vmatpush1.bf16.msra.mxu0 0
    %3140 = vmatprep.subr.bf16.mxu0 0
    %3141 = vmatpush1.bf16.msra.mxu0 0
    %3142 = vmatprep.subr.bf16.mxu0 0
    %3143 = vmatpush1.bf16.msra.mxu0 0
    %3144 = vmatprep.subr.bf16.mxu0 0
    %3145 = vmatpush1.bf16.msra.mxu0 0
    %3146 = vmatprep.subr.bf16.mxu0 0
    %3147 = vmatpush1.bf16.msra.mxu0 0
    %3148 = vmatprep.subr.bf16.mxu0 0
    %3149 = vmatpush1.bf16.msra.mxu0 0
    %3150 = vmatprep.subr.bf16.mxu0 0
    %3151 = vmatpush1.bf16.msra.mxu0 0
    %3152 = vmatprep.subr.bf16.mxu0 0
    %3153 = vmatpush1.bf16.msra.mxu0 0
    %3154 = vmatprep.subr.bf16.mxu0 0
    %3155 = vmatpush1.bf16.msra.mxu0 0
    %3156 = vmatprep.subr.bf16.mxu0 0
    %3157 = vmatpush1.bf16.msra.mxu0 0
    %3158 = vmatprep.subr.bf16.mxu0 0
    %3159 = vmatpush1.bf16.msra.mxu0 0
    %3160 = vmatprep.subr.bf16.mxu0 0
    %3161 = vmatpush1.bf16.msra.mxu0 0
    %3162 = vmatprep.subr.bf16.mxu0 0
    %3163 = vmatpush1.bf16.msra.mxu0 0
    %3164 = vmatprep.mubr.bf16.mxu0 0
    %3165 = vmatmul.mubr.bf16.gmra.mrb[0].mxu0 %v2515
    %v3166 = vpop.f32.mrb[0].mxu0
    %v3167 = vadd.f32 %v3126, %v3166
    %v3168 = vpop.f32.mrb[0].mxu0
    %v3169 = vadd.f32 %v3128, %v3168
    %v3170 = vpop.f32.mrb[0].mxu0
    %v3171 = vpop.f32.mrb[0].mxu0
    %3172 = vdwg.mxu0
    %v3173 = vmax.f32 %v2675, 0.0
    %v3174 = vmax.f32 %v2677, 0.0
    %v3175 = vmax.f32 %v2839, 0.0
    %v3176 = vmax.f32 %v2841, 0.0
    %v3177 = vmax.f32 %v3003, 0.0
    %v3178 = vmax.f32 %v3005, 0.0
    %v3179 = vmax.f32 %v3167, 0.0
    %v3180 = vmax.f32 %v3169, 0.0
    %v3181 = vpack.c.bf16 %v3173, %v3173
    %v3182 = vpack.c.bf16 %v3174, %v3174
    %v3183 = vpack.c.bf16 %v3175, %v3175
    %v3184 = vpack.c.bf16 %v3176, %v3176
    %v3185 = vpack.c.bf16 %v3177, %v3177
    %v3186 = vpack.c.bf16 %v3178, %v3178
    %v3187 = vpack.c.bf16 %v3179, %v3179
    %v3188 = vpack.c.bf16 %v3180, %v3180
    %v3189 = vld [vmem:[%s3] sm:$0xf]
    %v3190 = vld [vmem:[%s3 + $0x4] sm:$0xf]
    %v3191 = vld [vmem:[%s3 + $0x8] sm:$0xf]
    %v3192 = vld [vmem:[%s3 + $0xc] sm:$0xf]
    %v3193 = vld [vmem:[%s3 + $0x10] sm:$0xf]
    %v3194 = vld [vmem:[%s3 + $0x14] sm:$0xf]
    %v3195 = vld [vmem:[%s3 + $0x18] sm:$0xf]
    %v3196 = vld [vmem:[%s3 + $0x1c] sm:$0xf]
    %v3197 = vld [vmem:[%s3 + $0x20] sm:$0xf]
    %v3198 = vld [vmem:[%s3 + $0x24] sm:$0xf]
    %v3199 = vld [vmem:[%s3 + $0x28] sm:$0xf]
    %v3200 = vld [vmem:[%s3 + $0x2c] sm:$0xf]
    %v3201 = vld [vmem:[%s3 + $0x30] sm:$0xf]
    %v3202 = vld [vmem:[%s3 + $0x34] sm:$0xf]
    %v3203 = vld [vmem:[%s3 + $0x38] sm:$0xf]
    %v3204 = vld [vmem:[%s3 + $0x3c] sm:$0xf]
    %v3205 = vld [vmem:[%s3 + $0x40] sm:$0xf]
    %v3206 = vld [vmem:[%s3 + $0x44] sm:$0xf]
    %v3207 = vld [vmem:[%s3 + $0x48] sm:$0xf]
    %v3208 = vld [vmem:[%s3 + $0x4c] sm:$0xf]
    %v3209 = vld [vmem:[%s3 + $0x50] sm:$0xf]
    %v3210 = vld [vmem:[%s3 + $0x54] sm:$0xf]
    %v3211 = vld [vmem:[%s3 + $0x58] sm:$0xf]
    %v3212 = vld [vmem:[%s3 + $0x5c] sm:$0xf]
    %v3213 = vld [vmem:[%s3 + $0x60] sm:$0xf]
    %v3214 = vld [vmem:[%s3 + $0x64] sm:$0xf]
    %v3215 = vld [vmem:[%s3 + $0x68] sm:$0xf]
    %v3216 = vld [vmem:[%s3 + $0x6c] sm:$0xf]
    %v3217 = vld [vmem:[%s3 + $0x70] sm:$0xf]
    %v3218 = vld [vmem:[%s3 + $0x74] sm:$0xf]
    %v3219 = vld [vmem:[%s3 + $0x78] sm:$0xf]
    %v3220 = vld [vmem:[%s3 + $0x7c] sm:$0xf]
    %v3221 = vld [vmem:[%s3 + $0x80] sm:$0xf]
    %v3222 = vld [vmem:[%s3 + $0x84] sm:$0xf]
    %v3223 = vld [vmem:[%s3 + $0x88] sm:$0xf]
    %v3224 = vld [vmem:[%s3 + $0x8c] sm:$0xf]
    %v3225 = vld [vmem:[%s3 + $0x90] sm:$0xf]
    %v3226 = vld [vmem:[%s3 + $0x94] sm:$0xf]
    %v3227 = vld [vmem:[%s3 + $0x98] sm:$0xf]
    %v3228 = vld [vmem:[%s3 + $0x9c] sm:$0xf]
    %v3229 = vld [vmem:[%s3 + $0xa0] sm:$0xf]
    %v3230 = vld [vmem:[%s3 + $0xa4] sm:$0xf]
    %v3231 = vld [vmem:[%s3 + $0xa8] sm:$0xf]
    %v3232 = vld [vmem:[%s3 + $0xac] sm:$0xf]
    %v3233 = vld [vmem:[%s3 + $0xb0] sm:$0xf]
    %v3234 = vld [vmem:[%s3 + $0xb4] sm:$0xf]
    %v3235 = vld [vmem:[%s3 + $0xb8] sm:$0xf]
    %v3236 = vld [vmem:[%s3 + $0xbc] sm:$0xf]
    %v3237 = vld [vmem:[%s3 + $0xc0] sm:$0xf]
    %v3238 = vld [vmem:[%s3 + $0xc4] sm:$0xf]
    %v3239 = vld [vmem:[%s3 + $0xc8] sm:$0xf]
    %v3240 = vld [vmem:[%s3 + $0xcc] sm:$0xf]
    %v3241 = vld [vmem:[%s3 + $0xd0] sm:$0xf]
    %v3242 = vld [vmem:[%s3 + $0xd4] sm:$0xf]
    %v3243 = vld [vmem:[%s3 + $0xd8] sm:$0xf]
    %v3244 = vld [vmem:[%s3 + $0xdc] sm:$0xf]
    %v3245 = vld [vmem:[%s3 + $0xe0] sm:$0xf]
    %v3246 = vld [vmem:[%s3 + $0xe4] sm:$0xf]
    %v3247 = vld [vmem:[%s3 + $0xe8] sm:$0xf]
    %v3248 = vld [vmem:[%s3 + $0xec] sm:$0xf]
    %v3249 = vld [vmem:[%s3 + $0xf0] sm:$0xf]
    %v3250 = vld [vmem:[%s3 + $0xf4] sm:$0xf]
    %v3251 = vld [vmem:[%s3 + $0xf8] sm:$0xf]
    %v3252 = vld [vmem:[%s3 + $0xfc] sm:$0xf]
    %v3253 = vld [vmem:[%s3 + $0x100] sm:$0xf]
    %v3254 = vld [vmem:[%s3 + $0x104] sm:$0xf]
    %v3255 = vld [vmem:[%s3 + $0x108] sm:$0xf]
    %v3256 = vld [vmem:[%s3 + $0x10c] sm:$0xf]
    %v3257 = vld [vmem:[%s3 + $0x110] sm:$0xf]
    %v3258 = vld [vmem:[%s3 + $0x114] sm:$0xf]
    %v3259 = vld [vmem:[%s3 + $0x118] sm:$0xf]
    %v3260 = vld [vmem:[%s3 + $0x11c] sm:$0xf]
    %v3261 = vld [vmem:[%s3 + $0x120] sm:$0xf]
    %v3262 = vld [vmem:[%s3 + $0x124] sm:$0xf]
    %v3263 = vld [vmem:[%s3 + $0x128] sm:$0xf]
    %v3264 = vld [vmem:[%s3 + $0x12c] sm:$0xf]
    %v3265 = vld [vmem:[%s3 + $0x130] sm:$0xf]
    %v3266 = vld [vmem:[%s3 + $0x134] sm:$0xf]
    %v3267 = vld [vmem:[%s3 + $0x138] sm:$0xf]
    %v3268 = vld [vmem:[%s3 + $0x13c] sm:$0xf]
    %v3269 = vld [vmem:[%s3 + $0x140] sm:$0xf]
    %v3270 = vld [vmem:[%s3 + $0x144] sm:$0xf]
    %v3271 = vld [vmem:[%s3 + $0x148] sm:$0xf]
    %v3272 = vld [vmem:[%s3 + $0x14c] sm:$0xf]
    %v3273 = vld [vmem:[%s3 + $0x150] sm:$0xf]
    %v3274 = vld [vmem:[%s3 + $0x154] sm:$0xf]
    %v3275 = vld [vmem:[%s3 + $0x158] sm:$0xf]
    %v3276 = vld [vmem:[%s3 + $0x15c] sm:$0xf]
    %v3277 = vld [vmem:[%s3 + $0x160] sm:$0xf]
    %v3278 = vld [vmem:[%s3 + $0x164] sm:$0xf]
    %v3279 = vld [vmem:[%s3 + $0x168] sm:$0xf]
    %v3280 = vld [vmem:[%s3 + $0x16c] sm:$0xf]
    %v3281 = vld [vmem:[%s3 + $0x170] sm:$0xf]
    %v3282 = vld [vmem:[%s3 + $0x174] sm:$0xf]
    %v3283 = vld [vmem:[%s3 + $0x178] sm:$0xf]
    %v3284 = vld [vmem:[%s3 + $0x17c] sm:$0xf]
    %v3285 = vld [vmem:[%s3 + $0x180] sm:$0xf]
    %v3286 = vld [vmem:[%s3 + $0x184] sm:$0xf]
    %v3287 = vld [vmem:[%s3 + $0x188] sm:$0xf]
    %v3288 = vld [vmem:[%s3 + $0x18c] sm:$0xf]
    %v3289 = vld [vmem:[%s3 + $0x190] sm:$0xf]
    %v3290 = vld [vmem:[%s3 + $0x194] sm:$0xf]
    %v3291 = vld [vmem:[%s3 + $0x198] sm:$0xf]
    %v3292 = vld [vmem:[%s3 + $0x19c] sm:$0xf]
    %v3293 = vld [vmem:[%s3 + $0x1a0] sm:$0xf]
    %v3294 = vld [vmem:[%s3 + $0x1a4] sm:$0xf]
    %v3295 = vld [vmem:[%s3 + $0x1a8] sm:$0xf]
    %v3296 = vld [vmem:[%s3 + $0x1ac] sm:$0xf]
    %v3297 = vld [vmem:[%s3 + $0x1b0] sm:$0xf]
    %v3298 = vld [vmem:[%s3 + $0x1b4] sm:$0xf]
    %v3299 = vld [vmem:[%s3 + $0x1b8] sm:$0xf]
    %v3300 = vld [vmem:[%s3 + $0x1bc] sm:$0xf]
    %v3301 = vld [vmem:[%s3 + $0x1c0] sm:$0xf]
    %v3302 = vld [vmem:[%s3 + $0x1c4] sm:$0xf]
    %v3303 = vld [vmem:[%s3 + $0x1c8] sm:$0xf]
    %v3304 = vld [vmem:[%s3 + $0x1cc] sm:$0xf]
    %v3305 = vld [vmem:[%s3 + $0x1d0] sm:$0xf]
    %v3306 = vld [vmem:[%s3 + $0x1d4] sm:$0xf]
    %v3307 = vld [vmem:[%s3 + $0x1d8] sm:$0xf]
    %v3308 = vld [vmem:[%s3 + $0x1dc] sm:$0xf]
    %v3309 = vld [vmem:[%s3 + $0x1e0] sm:$0xf]
    %v3310 = vld [vmem:[%s3 + $0x1e4] sm:$0xf]
    %v3311 = vld [vmem:[%s3 + $0x1e8] sm:$0xf]
    %v3312 = vld [vmem:[%s3 + $0x1ec] sm:$0xf]
    %v3313 = vld [vmem:[%s3 + $0x1f0] sm:$0xf]
    %v3314 = vld [vmem:[%s3 + $0x1f4] sm:$0xf]
    %v3315 = vld [vmem:[%s3 + $0x1f8] sm:$0xf]
    %v3316 = vld [vmem:[%s3 + $0x1fc] sm:$0xf]
    %v3317 = vld [vmem:[#allocation7] sm:$0x1]
    %v3319 = vlaneseq
    %v3320 = vshrl.u32 %v3319, 7
    %v3321 = vsub.s32 0, %v3320
    %v3322 = vrot.slane %v3317, %v3321
    %v3452 = vunpack.c.l.b16 %v3189
    %v3453 = vunpack.c.l.b16 %v3190
    %v3454 = vunpack.c.l.b16 %v3191
    %v3455 = vunpack.c.l.b16 %v3192
    %v3456 = vunpack.c.l.b16 %v3193
    %v3457 = vunpack.c.l.b16 %v3194
    %v3458 = vunpack.c.l.b16 %v3195
    %v3459 = vunpack.c.l.b16 %v3196
    %v3460 = vunpack.c.l.b16 %v3197
    %v3461 = vunpack.c.l.b16 %v3198
    %v3462 = vunpack.c.l.b16 %v3199
    %v3463 = vunpack.c.l.b16 %v3200
    %v3464 = vunpack.c.l.b16 %v3201
    %v3465 = vunpack.c.l.b16 %v3202
    %v3466 = vunpack.c.l.b16 %v3203
    %v3467 = vunpack.c.l.b16 %v3204
    %v3468 = vunpack.c.l.b16 %v3205
    %v3469 = vunpack.c.l.b16 %v3206
    %v3470 = vunpack.c.l.b16 %v3207
    %v3471 = vunpack.c.l.b16 %v3208
    %v3472 = vunpack.c.l.b16 %v3209
    %v3473 = vunpack.c.l.b16 %v3210
    %v3474 = vunpack.c.l.b16 %v3211
    %v3475 = vunpack.c.l.b16 %v3212
    %v3476 = vunpack.c.l.b16 %v3213
    %v3477 = vunpack.c.l.b16 %v3214
    %v3478 = vunpack.c.l.b16 %v3215
    %v3479 = vunpack.c.l.b16 %v3216
    %v3480 = vunpack.c.l.b16 %v3217
    %v3481 = vunpack.c.l.b16 %v3218
    %v3482 = vunpack.c.l.b16 %v3219
    %v3483 = vunpack.c.l.b16 %v3220
    %v3484 = vunpack.c.l.b16 %v3221
    %v3485 = vunpack.c.l.b16 %v3222
    %v3486 = vunpack.c.l.b16 %v3223
    %v3487 = vunpack.c.l.b16 %v3224
    %v3488 = vunpack.c.l.b16 %v3225
    %v3489 = vunpack.c.l.b16 %v3226
    %v3490 = vunpack.c.l.b16 %v3227
    %v3491 = vunpack.c.l.b16 %v3228
    %v3492 = vunpack.c.l.b16 %v3229
    %v3493 = vunpack.c.l.b16 %v3230
    %v3494 = vunpack.c.l.b16 %v3231
    %v3495 = vunpack.c.l.b16 %v3232
    %v3496 = vunpack.c.l.b16 %v3233
    %v3497 = vunpack.c.l.b16 %v3234
    %v3498 = vunpack.c.l.b16 %v3235
    %v3499 = vunpack.c.l.b16 %v3236
    %v3500 = vunpack.c.l.b16 %v3237
    %v3501 = vunpack.c.l.b16 %v3238
    %v3502 = vunpack.c.l.b16 %v3239
    %v3503 = vunpack.c.l.b16 %v3240
    %v3504 = vunpack.c.l.b16 %v3241
    %v3505 = vunpack.c.l.b16 %v3242
    %v3506 = vunpack.c.l.b16 %v3243
    %v3507 = vunpack.c.l.b16 %v3244
    %v3508 = vunpack.c.l.b16 %v3245
    %v3509 = vunpack.c.l.b16 %v3246
    %v3510 = vunpack.c.l.b16 %v3247
    %v3511 = vunpack.c.l.b16 %v3248
    %v3512 = vunpack.c.l.b16 %v3249
    %v3513 = vunpack.c.l.b16 %v3250
    %v3514 = vunpack.c.l.b16 %v3251
    %v3515 = vunpack.c.l.b16 %v3252
    %v3516 = vunpack.c.l.b16 %v3253
    %v3517 = vunpack.c.l.b16 %v3254
    %v3518 = vunpack.c.l.b16 %v3255
    %v3519 = vunpack.c.l.b16 %v3256
    %v3520 = vunpack.c.l.b16 %v3257
    %v3521 = vunpack.c.l.b16 %v3258
    %v3522 = vunpack.c.l.b16 %v3259
    %v3523 = vunpack.c.l.b16 %v3260
    %v3524 = vunpack.c.l.b16 %v3261
    %v3525 = vunpack.c.l.b16 %v3262
    %v3526 = vunpack.c.l.b16 %v3263
    %v3527 = vunpack.c.l.b16 %v3264
    %v3528 = vunpack.c.l.b16 %v3265
    %v3529 = vunpack.c.l.b16 %v3266
    %v3530 = vunpack.c.l.b16 %v3267
    %v3531 = vunpack.c.l.b16 %v3268
    %v3532 = vunpack.c.l.b16 %v3269
    %v3533 = vunpack.c.l.b16 %v3270
    %v3534 = vunpack.c.l.b16 %v3271
    %v3535 = vunpack.c.l.b16 %v3272
    %v3536 = vunpack.c.l.b16 %v3273
    %v3537 = vunpack.c.l.b16 %v3274
    %v3538 = vunpack.c.l.b16 %v3275
    %v3539 = vunpack.c.l.b16 %v3276
    %v3540 = vunpack.c.l.b16 %v3277
    %v3541 = vunpack.c.l.b16 %v3278
    %v3542 = vunpack.c.l.b16 %v3279
    %v3543 = vunpack.c.l.b16 %v3280
    %v3544 = vunpack.c.l.b16 %v3281
    %v3545 = vunpack.c.l.b16 %v3282
    %v3546 = vunpack.c.l.b16 %v3283
    %v3547 = vunpack.c.l.b16 %v3284
    %v3548 = vunpack.c.l.b16 %v3285
    %v3549 = vunpack.c.l.b16 %v3286
    %v3550 = vunpack.c.l.b16 %v3287
    %v3551 = vunpack.c.l.b16 %v3288
    %v3552 = vunpack.c.l.b16 %v3289
    %v3553 = vunpack.c.l.b16 %v3290
    %v3554 = vunpack.c.l.b16 %v3291
    %v3555 = vunpack.c.l.b16 %v3292
    %v3556 = vunpack.c.l.b16 %v3293
    %v3557 = vunpack.c.l.b16 %v3294
    %v3558 = vunpack.c.l.b16 %v3295
    %v3559 = vunpack.c.l.b16 %v3296
    %v3560 = vunpack.c.l.b16 %v3297
    %v3561 = vunpack.c.l.b16 %v3298
    %v3562 = vunpack.c.l.b16 %v3299
    %v3563 = vunpack.c.l.b16 %v3300
    %v3564 = vunpack.c.l.b16 %v3301
    %v3565 = vunpack.c.l.b16 %v3302
    %v3566 = vunpack.c.l.b16 %v3303
    %v3567 = vunpack.c.l.b16 %v3304
    %v3568 = vunpack.c.l.b16 %v3305
    %v3569 = vunpack.c.l.b16 %v3306
    %v3570 = vunpack.c.l.b16 %v3307
    %v3571 = vunpack.c.l.b16 %v3308
    %v3572 = vunpack.c.l.b16 %v3309
    %v3573 = vunpack.c.l.b16 %v3310
    %v3574 = vunpack.c.l.b16 %v3311
    %v3575 = vunpack.c.l.b16 %v3312
    %v3576 = vunpack.c.l.b16 %v3313
    %v3577 = vunpack.c.l.b16 %v3314
    %v3578 = vunpack.c.l.b16 %v3315
    %v3579 = vunpack.c.l.b16 %v3316
    %v3580 = vpack.c.b16 %v3453, %v3452
    %v3581 = vpack.c.b16 %v3455, %v3454
    %v3582 = vpack.c.b16 %v3457, %v3456
    %v3583 = vpack.c.b16 %v3459, %v3458
    %v3584 = vpack.c.b16 %v3461, %v3460
    %v3585 = vpack.c.b16 %v3463, %v3462
    %v3586 = vpack.c.b16 %v3465, %v3464
    %v3587 = vpack.c.b16 %v3467, %v3466
    %v3588 = vpack.c.b16 %v3469, %v3468
    %v3589 = vpack.c.b16 %v3471, %v3470
    %v3590 = vpack.c.b16 %v3473, %v3472
    %v3591 = vpack.c.b16 %v3475, %v3474
    %v3592 = vpack.c.b16 %v3477, %v3476
    %v3593 = vpack.c.b16 %v3479, %v3478
    %v3594 = vpack.c.b16 %v3481, %v3480
    %v3595 = vpack.c.b16 %v3483, %v3482
    %v3596 = vpack.c.b16 %v3485, %v3484
    %v3597 = vpack.c.b16 %v3487, %v3486
    %v3598 = vpack.c.b16 %v3489, %v3488
    %v3599 = vpack.c.b16 %v3491, %v3490
    %v3600 = vpack.c.b16 %v3493, %v3492
    %v3601 = vpack.c.b16 %v3495, %v3494
    %v3602 = vpack.c.b16 %v3497, %v3496
    %v3603 = vpack.c.b16 %v3499, %v3498
    %v3604 = vpack.c.b16 %v3501, %v3500
    %v3605 = vpack.c.b16 %v3503, %v3502
    %v3606 = vpack.c.b16 %v3505, %v3504
    %v3607 = vpack.c.b16 %v3507, %v3506
    %v3608 = vpack.c.b16 %v3509, %v3508
    %v3609 = vpack.c.b16 %v3511, %v3510
    %v3610 = vpack.c.b16 %v3513, %v3512
    %v3611 = vpack.c.b16 %v3515, %v3514
    %v3612 = vpack.c.b16 %v3517, %v3516
    %v3613 = vpack.c.b16 %v3519, %v3518
    %v3614 = vpack.c.b16 %v3521, %v3520
    %v3615 = vpack.c.b16 %v3523, %v3522
    %v3616 = vpack.c.b16 %v3525, %v3524
    %v3617 = vpack.c.b16 %v3527, %v3526
    %v3618 = vpack.c.b16 %v3529, %v3528
    %v3619 = vpack.c.b16 %v3531, %v3530
    %v3620 = vpack.c.b16 %v3533, %v3532
    %v3621 = vpack.c.b16 %v3535, %v3534
    %v3622 = vpack.c.b16 %v3537, %v3536
    %v3623 = vpack.c.b16 %v3539, %v3538
    %v3624 = vpack.c.b16 %v3541, %v3540
    %v3625 = vpack.c.b16 %v3543, %v3542
    %v3626 = vpack.c.b16 %v3545, %v3544
    %v3627 = vpack.c.b16 %v3547, %v3546
    %v3628 = vpack.c.b16 %v3549, %v3548
    %v3629 = vpack.c.b16 %v3551, %v3550
    %v3630 = vpack.c.b16 %v3553, %v3552
    %v3631 = vpack.c.b16 %v3555, %v3554
    %v3632 = vpack.c.b16 %v3557, %v3556
    %v3633 = vpack.c.b16 %v3559, %v3558
    %v3634 = vpack.c.b16 %v3561, %v3560
    %v3635 = vpack.c.b16 %v3563, %v3562
    %v3636 = vpack.c.b16 %v3565, %v3564
    %v3637 = vpack.c.b16 %v3567, %v3566
    %v3638 = vpack.c.b16 %v3569, %v3568
    %v3639 = vpack.c.b16 %v3571, %v3570
    %v3640 = vpack.c.b16 %v3573, %v3572
    %v3641 = vpack.c.b16 %v3575, %v3574
    %v3642 = vpack.c.b16 %v3577, %v3576
    %v3643 = vpack.c.b16 %v3579, %v3578
    %3708 = vmatprep.subr.bf16.mxu0 0
    %3709 = vmatpush1.bf16.msra.mxu0 %v3580
    %3710 = vmatprep.subr.bf16.mxu0 0
    %3711 = vmatpush1.bf16.msra.mxu0 %v3581
    %3712 = vmatprep.subr.bf16.mxu0 0
    %3713 = vmatpush1.bf16.msra.mxu0 %v3582
    %3714 = vmatprep.subr.bf16.mxu0 0
    %3715 = vmatpush1.bf16.msra.mxu0 %v3583
    %3716 = vmatprep.subr.bf16.mxu0 0
    %3717 = vmatpush1.bf16.msra.mxu0 %v3584
    %3718 = vmatprep.subr.bf16.mxu0 0
    %3719 = vmatpush1.bf16.msra.mxu0 %v3585
    %3720 = vmatprep.subr.bf16.mxu0 0
    %3721 = vmatpush1.bf16.msra.mxu0 %v3586
    %3722 = vmatprep.subr.bf16.mxu0 0
    %3723 = vmatpush1.bf16.msra.mxu0 %v3587
    %3724 = vmatprep.subr.bf16.mxu0 0
    %3725 = vmatpush1.bf16.msra.mxu0 %v3588
    %3726 = vmatprep.subr.bf16.mxu0 0
    %3727 = vmatpush1.bf16.msra.mxu0 %v3589
    %3728 = vmatprep.subr.bf16.mxu0 0
    %3729 = vmatpush1.bf16.msra.mxu0 %v3590
    %3730 = vmatprep.subr.bf16.mxu0 0
    %3731 = vmatpush1.bf16.msra.mxu0 %v3591
    %3732 = vmatprep.subr.bf16.mxu0 0
    %3733 = vmatpush1.bf16.msra.mxu0 %v3592
    %3734 = vmatprep.subr.bf16.mxu0 0
    %3735 = vmatpush1.bf16.msra.mxu0 %v3593
    %3736 = vmatprep.subr.bf16.mxu0 0
    %3737 = vmatpush1.bf16.msra.mxu0 %v3594
    %3738 = vmatprep.subr.bf16.mxu0 0
    %3739 = vmatpush1.bf16.msra.mxu0 %v3595
    %3740 = vmatprep.mubr.bf16.mxu0 %v3182
    %3741 = vmatmul.mubr.bf16.gmra.mrb[0].mxu0 %v3181
    %v3742 = vpop.f32.mrb[0].mxu0
    %v3743 = vadd.f32 %v3322, %v3742
    %v3744 = vpop.f32.mrb[0].mxu0
    %v3745 = vpop.f32.mrb[0].mxu0
    %v3746 = vpop.f32.mrb[0].mxu0
    %3747 = vdwg.mxu0
    %3748 = vmatprep.subr.bf16.mxu0 0
    %3749 = vmatpush1.bf16.msra.mxu0 %v3596
    %3750 = vmatprep.subr.bf16.mxu0 0
    %3751 = vmatpush1.bf16.msra.mxu0 %v3597
    %3752 = vmatprep.subr.bf16.mxu0 0
    %3753 = vmatpush1.bf16.msra.mxu0 %v3598
    %3754 = vmatprep.subr.bf16.mxu0 0
    %3755 = vmatpush1.bf16.msra.mxu0 %v3599
    %3756 = vmatprep.subr.bf16.mxu0 0
    %3757 = vmatpush1.bf16.msra.mxu0 %v3600
    %3758 = vmatprep.subr.bf16.mxu0 0
    %3759 = vmatpush1.bf16.msra.mxu0 %v3601
    %3760 = vmatprep.subr.bf16.mxu0 0
    %3761 = vmatpush1.bf16.msra.mxu0 %v3602
    %3762 = vmatprep.subr.bf16.mxu0 0
    %3763 = vmatpush1.bf16.msra.mxu0 %v3603
    %3764 = vmatprep.subr.bf16.mxu0 0
    %3765 = vmatpush1.bf16.msra.mxu0 %v3604
    %3766 = vmatprep.subr.bf16.mxu0 0
    %3767 = vmatpush1.bf16.msra.mxu0 %v3605
    %3768 = vmatprep.subr.bf16.mxu0 0
    %3769 = vmatpush1.bf16.msra.mxu0 %v3606
    %3770 = vmatprep.subr.bf16.mxu0 0
    %3771 = vmatpush1.bf16.msra.mxu0 %v3607
    %3772 = vmatprep.subr.bf16.mxu0 0
    %3773 = vmatpush1.bf16.msra.mxu0 %v3608
    %3774 = vmatprep.subr.bf16.mxu0 0
    %3775 = vmatpush1.bf16.msra.mxu0 %v3609
    %3776 = vmatprep.subr.bf16.mxu0 0
    %3777 = vmatpush1.bf16.msra.mxu0 %v3610
    %3778 = vmatprep.subr.bf16.mxu0 0
    %3779 = vmatpush1.bf16.msra.mxu0 %v3611
    %3780 = vmatprep.mubr.bf16.mxu0 %v3184
    %3781 = vmatmul.mubr.bf16.gmra.mrb[0].mxu0 %v3183
    %v3782 = vpop.f32.mrb[0].mxu0
    %v3783 = vadd.f32 %v3743, %v3782
    %v3784 = vpop.f32.mrb[0].mxu0
    %v3785 = vpop.f32.mrb[0].mxu0
    %v3786 = vpop.f32.mrb[0].mxu0
    %3787 = vdwg.mxu0
    %3788 = vmatprep.subr.bf16.mxu0 0
    %3789 = vmatpush1.bf16.msra.mxu0 %v3612
    %3790 = vmatprep.subr.bf16.mxu0 0
    %3791 = vmatpush1.bf16.msra.mxu0 %v3613
    %3792 = vmatprep.subr.bf16.mxu0 0
    %3793 = vmatpush1.bf16.msra.mxu0 %v3614
    %3794 = vmatprep.subr.bf16.mxu0 0
    %3795 = vmatpush1.bf16.msra.mxu0 %v3615
    %3796 = vmatprep.subr.bf16.mxu0 0
    %3797 = vmatpush1.bf16.msra.mxu0 %v3616
    %3798 = vmatprep.subr.bf16.mxu0 0
    %3799 = vmatpush1.bf16.msra.mxu0 %v3617
    %3800 = vmatprep.subr.bf16.mxu0 0
    %3801 = vmatpush1.bf16.msra.mxu0 %v3618
    %3802 = vmatprep.subr.bf16.mxu0 0
    %3803 = vmatpush1.bf16.msra.mxu0 %v3619
    %3804 = vmatprep.subr.bf16.mxu0 0
    %3805 = vmatpush1.bf16.msra.mxu0 %v3620
    %3806 = vmatprep.subr.bf16.mxu0 0
    %3807 = vmatpush1.bf16.msra.mxu0 %v3621
    %3808 = vmatprep.subr.bf16.mxu0 0
    %3809 = vmatpush1.bf16.msra.mxu0 %v3622
    %3810 = vmatprep.subr.bf16.mxu0 0
    %3811 = vmatpush1.bf16.msra.mxu0 %v3623
    %3812 = vmatprep.subr.bf16.mxu0 0
    %3813 = vmatpush1.bf16.msra.mxu0 %v3624
    %3814 = vmatprep.subr.bf16.mxu0 0
    %3815 = vmatpush1.bf16.msra.mxu0 %v3625
    %3816 = vmatprep.subr.bf16.mxu0 0
    %3817 = vmatpush1.bf16.msra.mxu0 %v3626
    %3818 = vmatprep.subr.bf16.mxu0 0
    %3819 = vmatpush1.bf16.msra.mxu0 %v3627
    %3820 = vmatprep.mubr.bf16.mxu0 %v3186
    %3821 = vmatmul.mubr.bf16.gmra.mrb[0].mxu0 %v3185
    %v3822 = vpop.f32.mrb[0].mxu0
    %v3823 = vadd.f32 %v3783, %v3822
    %v3824 = vpop.f32.mrb[0].mxu0
    %v3825 = vpop.f32.mrb[0].mxu0
    %v3826 = vpop.f32.mrb[0].mxu0
    %3827 = vdwg.mxu0
    %3828 = vmatprep.subr.bf16.mxu0 0
    %3829 = vmatpush1.bf16.msra.mxu0 %v3628
    %3830 = vmatprep.subr.bf16.mxu0 0
    %3831 = vmatpush1.bf16.msra.mxu0 %v3629
    %3832 = vmatprep.subr.bf16.mxu0 0
    %3833 = vmatpush1.bf16.msra.mxu0 %v3630
    %3834 = vmatprep.subr.bf16.mxu0 0
    %3835 = vmatpush1.bf16.msra.mxu0 %v3631
    %3836 = vmatprep.subr.bf16.mxu0 0
    %3837 = vmatpush1.bf16.msra.mxu0 %v3632
    %3838 = vmatprep.subr.bf16.mxu0 0
    %3839 = vmatpush1.bf16.msra.mxu0 %v3633
    %3840 = vmatprep.subr.bf16.mxu0 0
    %3841 = vmatpush1.bf16.msra.mxu0 %v3634
    %3842 = vmatprep.subr.bf16.mxu0 0
    %3843 = vmatpush1.bf16.msra.mxu0 %v3635
    %3844 = vmatprep.subr.bf16.mxu0 0
    %3845 = vmatpush1.bf16.msra.mxu0 %v3636
    %3846 = vmatprep.subr.bf16.mxu0 0
    %3847 = vmatpush1.bf16.msra.mxu0 %v3637
    %3848 = vmatprep.subr.bf16.mxu0 0
    %3849 = vmatpush1.bf16.msra.mxu0 %v3638
    %3850 = vmatprep.subr.bf16.mxu0 0
    %3851 = vmatpush1.bf16.msra.mxu0 %v3639
    %3852 = vmatprep.subr.bf16.mxu0 0
    %3853 = vmatpush1.bf16.msra.mxu0 %v3640
    %3854 = vmatprep.subr.bf16.mxu0 0
    %3855 = vmatpush1.bf16.msra.mxu0 %v3641
    %3856 = vmatprep.subr.bf16.mxu0 0
    %3857 = vmatpush1.bf16.msra.mxu0 %v3642
    %3858 = vmatprep.subr.bf16.mxu0 0
    %3859 = vmatpush1.bf16.msra.mxu0 %v3643
    %3860 = vmatprep.mubr.bf16.mxu0 %v3188
    %3861 = vmatmul.mubr.bf16.gmra.mrb[0].mxu0 %v3187
    %v3862 = vpop.f32.mrb[0].mxu0
    %v3863 = vadd.f32 %v3823, %v3862
    %v3864 = vpop.f32.mrb[0].mxu0
    %v3865 = vpop.f32.mrb[0].mxu0
    %v3866 = vpop.f32.mrb[0].mxu0
    %3867 = vdwg.mxu0
    %v3868 = vmax.f32 %v3863, 0.0
    %v3869 = vpack.c.bf16 %v3868, %v3868
    %v3870 = vld [vmem:[#allocation8] sm:$0xf]
    %v3871 = vld [vmem:[#allocation8 + $0x4] sm:$0xf]
    %v3872 = vld [vmem:[#allocation8 + $0x8] sm:$0xf]
    %v3873 = vld [vmem:[#allocation8 + $0xc] sm:$0xf]
    %v3874 = vld [vmem:[#allocation8 + $0x10] sm:$0xf]
    %v3875 = vld [vmem:[#allocation8 + $0x14] sm:$0xf]
    %v3876 = vld [vmem:[#allocation8 + $0x18] sm:$0x1]
    %v3877 = vld [vmem:[#allocation10] sm:$0x1]
    %v3879 = vlaneseq
    %v3880 = vshrl.u32 %v3879, 7
    %v3881 = vsub.s32 0, %v3880
    %v3882 = vrot.slane %v3877, %v3881
    %v3891 = vunpack.c.l.b16 %v3870
    %v3892 = vunpack.c.l.b16 %v3871
    %v3893 = vunpack.c.l.b16 %v3872
    %v3894 = vunpack.c.l.b16 %v3873
    %v3895 = vunpack.c.l.b16 %v3874
    %v3896 = vunpack.c.l.b16 %v3875
    %v3897 = vunpack.c.l.b16 %v3876
    %v3898 = vpack.c.b16 %v3892, %v3891
    %v3899 = vpack.c.b16 %v3894, %v3893
    %v3900 = vpack.c.b16 %v3896, %v3895
    %v3901 = vpack.c.b16 %v3897, %v3897
    %vm3905 = vcmask 408576
    %v3907 = vsel %vm3905, %v3869, 0
    %vm3909 = vcmask 1040384
    %v3911 = vsel %vm3909, %v3901, 0
    %3913 = vmatprep.subr.bf16.mxu0 0
    %3914 = vmatpush1.bf16.msra.mxu0 %v3898
    %3915 = vmatprep.subr.bf16.mxu0 0
    %3916 = vmatpush1.bf16.msra.mxu0 %v3899
    %3917 = vmatprep.subr.bf16.mxu0 0
    %3918 = vmatpush1.bf16.msra.mxu0 %v3900
    %3919 = vmatprep.subr.bf16.mxu0 0
    %3920 = vmatpush1.bf16.msra.mxu0 %v3911
    %3921 = vmatprep.subr.bf16.mxu0 0
    %3922 = vmatpush1.bf16.msra.mxu0 0
    %3923 = vmatprep.subr.bf16.mxu0 0
    %3924 = vmatpush1.bf16.msra.mxu0 0
    %3925 = vmatprep.subr.bf16.mxu0 0
    %3926 = vmatpush1.bf16.msra.mxu0 0
    %3927 = vmatprep.subr.bf16.mxu0 0
    %3928 = vmatpush1.bf16.msra.mxu0 0
    %3929 = vmatprep.subr.bf16.mxu0 0
    %3930 = vmatpush1.bf16.msra.mxu0 0
    %3931 = vmatprep.subr.bf16.mxu0 0
    %3932 = vmatpush1.bf16.msra.mxu0 0
    %3933 = vmatprep.subr.bf16.mxu0 0
    %3934 = vmatpush1.bf16.msra.mxu0 0
    %3935 = vmatprep.subr.bf16.mxu0 0
    %3936 = vmatpush1.bf16.msra.mxu0 0
    %3937 = vmatprep.subr.bf16.mxu0 0
    %3938 = vmatpush1.bf16.msra.mxu0 0
    %3939 = vmatprep.subr.bf16.mxu0 0
    %3940 = vmatpush1.bf16.msra.mxu0 0
    %3941 = vmatprep.subr.bf16.mxu0 0
    %3942 = vmatpush1.bf16.msra.mxu0 0
    %3943 = vmatprep.subr.bf16.mxu0 0
    %3944 = vmatpush1.bf16.msra.mxu0 0
    %3945 = vmatprep.mubr.bf16.mxu0 0
    %3946 = vmatmul.mubr.bf16.gmra.mrb[0].mxu0 %v3907
    %v3947 = vpop.f32.mrb[0].mxu0
    %v3948 = vadd.f32 %v3882, %v3947
    %v3949 = vpop.f32.mrb[0].mxu0
    %v3950 = vpop.f32.mrb[0].mxu0
    %v3951 = vpop.f32.mrb[0].mxu0
    %3952 = vdwg.mxu0
    %v3953 = vmax.f32 %v3948, 0.0
    %v3954 = vld [vmem:[#allocation11] sm:$0x1]
    %v3956 = vlaneseq
    %v3957 = vshrl.u32 %v3956, 7
    %v3958 = vsub.s32 0, %v3957
    %v3959 = vrot.slane %v3954, %v3958
    %v3961 = vadd.f32 %v3953, %v3959
    %3962 = vmax.xlane.f32.xlu0 %v3961
    %v3963 = vpop.xlane.xlu0 %3962
    %v3964 = vsub.f32 %v3961, %v3963
    %v3965 = vmul.f32 %v3964, 1.442695
    %v3966 = vpow.pop %v3965
    %3967 = vadd.xlane.f32.xlu0 %v3966
    %v3968 = vpop.xlane.xlu0 %3967
    %v3969 = vlog2.pop %v3968
    %v3970 = vmul.f32 %v3969, 0.6931472
    %v3971 = vsub.f32 %v3964, %v3970
    %3972 = vst [vmem:[#allocation13] sm:$0xff] %v3971
    // Predicated region
    $region58: #{firstnet_forward.1} parent=1 // pred_check
      _
    $region59: #{firstnet_forward.1} parent=1 // pred_check_branch
      %3974 = sbr.rel (0) target = $region61
    $region60: #{firstnet_forward.1} parent=1 // pred_region
      %s3976 = ssub.s32 128, 128
      %3977 = vsyncadd [#allocation4], %s3976
      %s3979 = sshll.u32 [#allocation13], 4
      %s3980 = int_to_ptr.vmem [resolvable:$true] %s3979
      %3982 = dma.vmem_to_hbm [thread:$0]  %s3980, 128, %s8, [#allocation4]
    $region61: #{firstnet_forward.1} parent=1 // pred_fallthru
      _
    // Predicated region
    $region62: #{firstnet_forward.1} parent=1 // pred_check
      _
    $region63: #{firstnet_forward.1} parent=1 // pred_check_branch
      %3984 = sbr.rel (0) target = $region65
    $region64: #{firstnet_forward.1} parent=1 // pred_region
      %3985 = dma.done [#allocation4], 128
    $region65: #{firstnet_forward.1} parent=1 // pred_fallthru
      _
    %3986 = vsyncpa [#allocation3], 1
    %3987 = vsyncpa [#allocation6], 1
    %3988 = vsyncpa [#allocation9], 1
    %3989 = vsyncpa [#allocation12], 1
    %3990 = vsyncpa [#allocation4], 1

</llo_original>
